<compile_context>
chip_gen: v7x
topology: tpu7x:2x2x1
jax: 0.10.0
libtpu: 0.0.40
codegen_flags: <defaults>
</compile_context>

<pallas_src>
import functools
import math

import jax
import jax.numpy as jnp
from jax.experimental import pallas as pl
from jax.experimental.pallas import tpu as pltpu


MXU_DTYPE = jnp.bfloat16   # matmul operand dtype (accumulate in f32)
LN_EPS = 1e-5
OUT_LANES = 128            # lane-dense output padding


# ----------------------------------------------------------------------------
# In-kernel helpers
# ----------------------------------------------------------------------------
def _mm(a, w_bf16):
    """MXU matmul: bf16 operands (weights pre-cast), f32 accumulation."""
    return jnp.dot(a.astype(MXU_DTYPE), w_bf16,
                   preferred_element_type=jnp.float32)


def _layernorm(x, g, b):
    """PyTorch LayerNorm over the last axis (eps=1e-5), f32 math."""
    mean = jnp.mean(x, axis=-1, keepdims=True)
    xc = x - mean
    var = jnp.mean(xc * xc, axis=-1, keepdims=True)
    return xc * jax.lax.rsqrt(var + LN_EPS) * g + b


def _erf(x):
    """Abramowitz & Stegun 7.1.26 polynomial erf (|err| < 1.5e-7)."""
    p = 0.3275911
    a1, a2, a3, a4, a5 = (0.254829592, -0.284496736, 1.421413741,
                          -1.453152027, 1.061405429)
    s = jnp.where(x < 0.0, -1.0, 1.0)
    z = jnp.abs(x)
    t = 1.0 / (1.0 + p * z)
    poly = t * (a1 + t * (a2 + t * (a3 + t * (a4 + t * a5))))
    return s * (1.0 - poly * jnp.exp(-z * z))


def _gelu_exact(x):
    """Exact-erf GELU (PyTorch F.gelu default), via the polynomial erf."""
    return 0.5 * x * (1.0 + _erf(x * (1.0 / math.sqrt(2.0))))


# ----------------------------------------------------------------------------
# Fused whole-model kernel (grid over layers, activation resident in VMEM)
# ----------------------------------------------------------------------------
def _mints_kernel(x_ref, in_w_ref, pe_ref,
                  qkv_w_ref, qkv_b_ref, ao_w_ref, ao_b_ref,
                  f1_w_ref, f1_b_ref, f2_w_ref, f2_b_ref,
                  ln1_g_ref, ln1_b_ref, ln2_g_ref, ln2_b_ref,
                  fin_g_ref, fin_b_ref, out_w_ref, out_b_ref,
                  y_ref, act_ref, *, num_heads, use_layer_norm):
    l = pl.program_id(0)
    num_layers = pl.num_programs(0)

    B, S, _ = x_ref.shape
    BS, D = act_ref.shape
    dh = D // num_heads
    scale = 1.0 / math.sqrt(dh)

    # ---- first step: fused input projection + positional encoding --------
    @pl.when(l == 0)
    def _():
        x2 = x_ref[...].reshape(BS, x_ref.shape[-1])          # (BS, I_pad) f32
        # pe_ref already has the in-proj bias folded in and is tiled over B.
        act_ref[...] = _mm(x2, in_w_ref[...]) + pe_ref[...]   # (BS, D) f32

    # ---- transformer encoder layer `l` (post-LN, batch folded into rows) --
    xin = act_ref[...]                                         # (BS, D) f32
    qkv = _mm(xin, qkv_w_ref[...]) + qkv_b_ref[...]            # (BS, 3D) f32
    q = qkv[:, 0 * D:1 * D] * scale                            # fold 1/sqrt(dh)
    k = qkv[:, 1 * D:2 * D]
    v = qkv[:, 2 * D:3 * D]

    ao_w = ao_w_ref[...]                                       # (D, D) bf16
    attn = jnp.zeros((BS, D), jnp.float32)
    for h in range(num_heads):                                 # static unroll
        sl = slice(h * dh, (h + 1) * dh)
        qh = q[:, sl].reshape(B, S, dh).astype(MXU_DTYPE)      # (B, S, dh)
        kh = k[:, sl].reshape(B, S, dh).astype(MXU_DTYPE)
        vh = v[:, sl].reshape(B, S, dh).astype(MXU_DTYPE)
        s = jnp.einsum("bqd,bkd->bqk", qh, kh,
                       preferred_element_type=jnp.float32)     # (B, S, S)
        m = jnp.max(s, axis=-1, keepdims=True)
        p = jnp.exp(s - m)
        p = p * pl.reciprocal(jnp.sum(p, axis=-1, keepdims=True), approx=True)
        ctx = jnp.einsum("bqk,bkd->bqd", p.astype(MXU_DTYPE), vh,
                         preferred_element_type=jnp.float32)   # (B, S, dh)
        # Fold this head straight into the attention output projection
        # (avoids the head concat entirely).
        attn = attn + _mm(ctx.reshape(BS, dh), ao_w[sl, :])
    attn = attn + ao_b_ref[...]

    h1 = _layernorm(xin + attn, ln1_g_ref[...], ln1_b_ref[...])

    ff = _mm(h1, f1_w_ref[...]) + f1_b_ref[...]                # (BS, 4D)
    ff = _gelu_exact(ff)
    ff = _mm(ff, f2_w_ref[...]) + f2_b_ref[...]                # (BS, D)
    h2 = _layernorm(h1 + ff, ln2_g_ref[...], ln2_b_ref[...])
    act_ref[...] = h2

    # ---- last step: fused final LayerNorm + lane-dense output projection --
    @pl.when(l == num_layers - 1)
    def _():
        z = h2
        if use_layer_norm:
            z = _layernorm(z, fin_g_ref[...], fin_b_ref[...])
        y = _mm(z, out_w_ref[...]) + out_b_ref[...]            # (BS, 128)
        y_ref[...] = y.reshape(B, S, OUT_LANES).astype(y_ref.dtype)


# ----------------------------------------------------------------------------
# Wrapper: one pallas_call for the whole forward
# ----------------------------------------------------------------------------
def _const_spec(shape):
    zeros = (0,) * len(shape)
    return pl.BlockSpec(shape, lambda l: zeros)


def _layer_spec(shape):
    zeros = (0,) * len(shape)
    return pl.BlockSpec((None,) + shape, lambda l: (l,) + zeros)


def mints_pallas_forward(packed, x, cfg):
    """x: (B, S, input_size) -> (B, S, input_size)."""
    B, S, I = x.shape
    D = cfg["hidden_dim"]
    H = cfg["num_heads"]
    L = cfg["num_layers"]
    F = 4 * D
    I_pad = packed["in_w"].shape[0]

    x_p = jnp.pad(x, ((0, 0), (0, 0), (0, I_pad - I)))   # pad K=4 -> 8

    kernel = functools.partial(_mints_kernel, num_heads=H,
                               use_layer_norm=cfg["use_layer_norm"])

    y_pad = pl.pallas_call(
        kernel,
        out_shape=jax.ShapeDtypeStruct((B, S, OUT_LANES), jnp.float32),
        grid=(L,),
        in_specs=[
            _const_spec((B, S, I_pad)),        # x (DMA'd once: constant index)
            _const_spec((I_pad, D)),           # input-proj W (bf16)
            _const_spec((B * S, D)),           # pos-enc (+ in bias), tiled over B
            _layer_spec((D, 3 * D)),           # qkv W (bf16)
            _layer_spec((1, 3 * D)),           # qkv b
            _layer_spec((D, D)),               # attn-out W (bf16)
            _layer_spec((1, D)),               # attn-out b
            _layer_spec((D, F)),               # ffn1 W (bf16)
            _layer_spec((1, F)),               # ffn1 b
            _layer_spec((F, D)),               # ffn2 W (bf16)
            _layer_spec((1, D)),               # ffn2 b
            _layer_spec((1, D)),               # ln1 gamma
            _layer_spec((1, D)),               # ln1 beta
            _layer_spec((1, D)),               # ln2 gamma
            _layer_spec((1, D)),               # ln2 beta
            _const_spec((1, D)),               # final ln gamma
            _const_spec((1, D)),               # final ln beta
            _const_spec((D, OUT_LANES)),       # out-proj W, lane-dense padded (bf16)
            _const_spec((1, OUT_LANES)),       # out-proj b, padded
        ],
        out_specs=pl.BlockSpec((B, S, OUT_LANES), lambda l: (0, 0, 0)),
        scratch_shapes=[pltpu.VMEM((B * S, D), jnp.float32)],  # carried activation
        compiler_params=pltpu.CompilerParams(
            dimension_semantics=("arbitrary",)),   # layers are sequential
    )(x_p, packed["in_w"], packed["pe"],
      packed["qkv_w"], packed["qkv_b"], packed["ao_w"], packed["ao_b"],
      packed["f1_w"], packed["f1_b"], packed["f2_w"], packed["f2_b"],
      packed["ln1_g"], packed["ln1_b"], packed["ln2_g"], packed["ln2_b"],
      packed["fin_g"], packed["fin_b"], packed["out_w"], packed["out_b"])

    return y_pad[:, :, :I]


# ----------------------------------------------------------------------------
# Parameter construction (deterministic, synthetic) + packing
# ----------------------------------------------------------------------------
def make_positional_encoding(d_model, max_len):
    position = jnp.arange(max_len, dtype=jnp.float32)[:, None]
    div_term = jnp.exp(
        jnp.arange(0, d_model, 2, dtype=jnp.float32)
        * (-jnp.log(jnp.float32(10000.0)) / d_model))
    pe = jnp.zeros((max_len, d_model), dtype=jnp.float32)
    pe = pe.at[:, 0::2].set(jnp.sin(position * div_term))
    pe = pe.at[:, 1::2].set(jnp.cos(position * div_term))
    return pe  # (max_len, d_model)


def init_params(key, cfg):
    D = cfg["hidden_dim"]
    I = cfg["input_size"]
    L = cfg["num_layers"]
    F = 4 * D

    def dense(k, fan_in, fan_out):
        return jax.random.normal(k, (fan_in, fan_out), jnp.float32) * 0.02

    keys = jax.random.split(key, 2 + 4 * L)
    params = {
        "in_proj_w": dense(keys[0], I, D),
        "in_proj_b": jnp.zeros((D,), jnp.float32),
        "out_proj_w": dense(keys[1], D, I),
        "out_proj_b": jnp.zeros((I,), jnp.float32),
        "final_ln_g": jnp.ones((D,), jnp.float32),
        "final_ln_b": jnp.zeros((D,), jnp.float32),
        "layers": [],
    }
    for l in range(L):
        kk = keys[2 + 4 * l: 2 + 4 * (l + 1)]
        params["layers"].append({
            "qkv_w": dense(kk[0], D, 3 * D),
            "qkv_b": jnp.zeros((3 * D,), jnp.float32),
            "attn_out_w": dense(kk[1], D, D),
            "attn_out_b": jnp.zeros((D,), jnp.float32),
            "ffn1_w": dense(kk[2], D, F),
            "ffn1_b": jnp.zeros((F,), jnp.float32),
            "ffn2_w": dense(kk[3], F, D),
            "ffn2_b": jnp.zeros((D,), jnp.float32),
            "ln1_g": jnp.ones((D,), jnp.float32),
            "ln1_b": jnp.zeros((D,), jnp.float32),
            "ln2_g": jnp.ones((D,), jnp.float32),
            "ln2_b": jnp.zeros((D,), jnp.float32),
        })
    return params


def pack_params(params, cfg, batch_size, seq_len):
    """Stack per-layer weights along L, pre-cast matmul weights to bf16,
    fold the in-proj bias into the positional encoding, pad K / output lanes."""
    D = cfg["hidden_dim"]
    I = cfg["input_size"]
    I_pad = ((I + 7) // 8) * 8

    in_w = jnp.zeros((I_pad, D), jnp.float32).at[:I].set(params["in_proj_w"])
    pe = make_positional_encoding(D, cfg["max_seq_length"])[:seq_len]
    pe_bias = jnp.tile(pe + params["in_proj_b"][None, :], (batch_size, 1))

    out_w = jnp.zeros((D, OUT_LANES), jnp.float32).at[:, :I].set(
        params["out_proj_w"])
    out_b = jnp.zeros((1, OUT_LANES), jnp.float32).at[0, :I].set(
        params["out_proj_b"])

    stack = lambda name: jnp.stack([lp[name] for lp in params["layers"]])

    return dict(
        in_w=in_w.astype(MXU_DTYPE),
        pe=pe_bias.astype(jnp.float32),                 # (B*S, D), bias folded
        qkv_w=stack("qkv_w").astype(MXU_DTYPE),
        qkv_b=stack("qkv_b")[:, None, :],
        ao_w=stack("attn_out_w").astype(MXU_DTYPE),
        ao_b=stack("attn_out_b")[:, None, :],
        f1_w=stack("ffn1_w").astype(MXU_DTYPE),
        f1_b=stack("ffn1_b")[:, None, :],
        f2_w=stack("ffn2_w").astype(MXU_DTYPE),
        f2_b=stack("ffn2_b")[:, None, :],
        ln1_g=stack("ln1_g")[:, None, :],
        ln1_b=stack("ln1_b")[:, None, :],
        ln2_g=stack("ln2_g")[:, None, :],
        ln2_b=stack("ln2_b")[:, None, :],
        fin_g=params["final_ln_g"][None, :],
        fin_b=params["final_ln_b"][None, :],
        out_w=out_w.astype(MXU_DTYPE),
        out_b=out_b,
    )


# ----------------------------------------------------------------------------
if __name__ == "__main__":
    cfg = dict(
        input_size=4,
        hidden_dim=32,
        num_layers=2,
        num_heads=4,
        dropout=0.0,          # inference: dropout is identity
        use_residual=True,    # (not used by the reference forward)
        use_layer_norm=True,
        max_seq_length=64,
    )
    B, S = 2, 8

    key = jax.random.PRNGKey(0)
    k_param, k_x = jax.random.split(key)
    params = init_params(k_param, cfg)
    packed = pack_params(params, cfg, B, S)

    x = jax.random.normal(k_x, (B, S, cfg["input_size"]), jnp.float32)

    fwd = jax.jit(functools.partial(mints_pallas_forward, cfg=cfg))
    out = fwd(packed, x)
    jax.block_until_ready(out)

    assert out.shape == (B, S, cfg["input_size"])
    assert bool(jnp.all(jnp.isfinite(out)))
    print("KERNEL_OK")
</pallas_src>

<mosaic_0001>
module attributes {stable_mosaic.version = 11 : i64} {
  func.func @_mints_kernel(%arg0: i32, %arg1: memref<2x8x8xf32, #tpu.memory_space<vmem>>, %arg2: memref<8x32xbf16, #tpu.memory_space<vmem>>, %arg3: memref<16x32xf32, #tpu.memory_space<vmem>>, %arg4: memref<1x32x96xbf16, #tpu.memory_space<vmem>>, %arg5: memref<1x1x96xf32, #tpu.memory_space<vmem>>, %arg6: memref<1x32x32xbf16, #tpu.memory_space<vmem>>, %arg7: memref<1x1x32xf32, #tpu.memory_space<vmem>>, %arg8: memref<1x32x128xbf16, #tpu.memory_space<vmem>>, %arg9: memref<1x1x128xf32, #tpu.memory_space<vmem>>, %arg10: memref<1x128x32xbf16, #tpu.memory_space<vmem>>, %arg11: memref<1x1x32xf32, #tpu.memory_space<vmem>>, %arg12: memref<1x1x32xf32, #tpu.memory_space<vmem>>, %arg13: memref<1x1x32xf32, #tpu.memory_space<vmem>>, %arg14: memref<1x1x32xf32, #tpu.memory_space<vmem>>, %arg15: memref<1x1x32xf32, #tpu.memory_space<vmem>>, %arg16: memref<1x32xf32, #tpu.memory_space<vmem>>, %arg17: memref<1x32xf32, #tpu.memory_space<vmem>>, %arg18: memref<32x128xbf16, #tpu.memory_space<vmem>>, %arg19: memref<1x128xf32, #tpu.memory_space<vmem>>, %arg20: memref<2x8x128xf32, #tpu.memory_space<vmem>>, %arg21: memref<16x32xf32, #tpu.memory_space<vmem>>) attributes {dimension_semantics = [#tpu.dimension_semantics<arbitrary>], iteration_bounds = array<i64: 2>, scalar_prefetch = 0 : i64, scratch_operands = 1 : i64, tpu.core_type = #tpu.core_type<tc>, window_params = [{pipeline_mode = #tpu.pipeline_mode<synchronous>, transform_indices = @transform_0, window_bounds = array<i64: 2, 8, 8>}, {pipeline_mode = #tpu.pipeline_mode<synchronous>, transform_indices = @transform_1, window_bounds = array<i64: 8, 32>}, {pipeline_mode = #tpu.pipeline_mode<synchronous>, transform_indices = @transform_2, window_bounds = array<i64: 16, 32>}, {transform_indices = @transform_3, window_bounds = array<i64: 1, 32, 96>}, {transform_indices = @transform_4, window_bounds = array<i64: 1, 1, 96>}, {transform_indices = @transform_5, window_bounds = array<i64: 1, 32, 32>}, {transform_indices = @transform_6, window_bounds = array<i64: 1, 1, 32>}, {transform_indices = @transform_7, window_bounds = array<i64: 1, 32, 128>}, {transform_indices = @transform_8, window_bounds = array<i64: 1, 1, 128>}, {transform_indices = @transform_9, window_bounds = array<i64: 1, 128, 32>}, {transform_indices = @transform_10, window_bounds = array<i64: 1, 1, 32>}, {transform_indices = @transform_11, window_bounds = array<i64: 1, 1, 32>}, {transform_indices = @transform_12, window_bounds = array<i64: 1, 1, 32>}, {transform_indices = @transform_13, window_bounds = array<i64: 1, 1, 32>}, {transform_indices = @transform_14, window_bounds = array<i64: 1, 1, 32>}, {pipeline_mode = #tpu.pipeline_mode<synchronous>, transform_indices = @transform_15, window_bounds = array<i64: 1, 32>}, {pipeline_mode = #tpu.pipeline_mode<synchronous>, transform_indices = @transform_16, window_bounds = array<i64: 1, 32>}, {pipeline_mode = #tpu.pipeline_mode<synchronous>, transform_indices = @transform_17, window_bounds = array<i64: 32, 128>}, {pipeline_mode = #tpu.pipeline_mode<synchronous>, transform_indices = @transform_18, window_bounds = array<i64: 1, 128>}, {pipeline_mode = #tpu.pipeline_mode<synchronous>, transform_indices = @transform_19, window_bounds = array<i64: 2, 8, 128>}]} {
    %c0_i32 = arith.constant 0 : i32
    %0 = arith.cmpi eq, %arg0, %c0_i32 : i32
    %1 = arith.extui %0 : i1 to i32
    %c0_i32_0 = arith.constant 0 : i32
    %2 = arith.cmpi ne, %1, %c0_i32_0 : i32
    scf.if %2 {
      %c0_91 = arith.constant 0 : index
      %c0_92 = arith.constant 0 : index
      %c0_93 = arith.constant 0 : index
      %243 = vector.load %arg1[%c0_91, %c0_92, %c0_93] : memref<2x8x8xf32, #tpu.memory_space<vmem>>, vector<2x8x8xf32>
      %244 = vector.shape_cast %243 : vector<2x8x8xf32> to vector<16x8xf32>
      %c0_94 = arith.constant 0 : index
      %c0_95 = arith.constant 0 : index
      %245 = vector.load %arg2[%c0_94, %c0_95] : memref<8x32xbf16, #tpu.memory_space<vmem>>, vector<8x32xbf16>
      %246 = arith.truncf %244 : vector<16x8xf32> to vector<16x8xbf16>
      %cst_96 = arith.constant dense<0.000000e+00> : vector<16x32xf32>
      %247 = tpu.matmul %246, %245, %cst_96 {dimension_numbers = #tpu.dot_dimension_numbers<[1], [0], [0], [1], [0, 0, 1, 1], [], []>} : vector<16x8xbf16>, vector<8x32xbf16>, vector<16x32xf32> -> vector<16x32xf32>
      %c0_97 = arith.constant 0 : index
      %c0_98 = arith.constant 0 : index
      %248 = vector.load %arg3[%c0_97, %c0_98] : memref<16x32xf32, #tpu.memory_space<vmem>>, vector<16x32xf32>
      %249 = arith.addf %247, %248 : vector<16x32xf32>
      %c0_99 = arith.constant 0 : index
      %c0_100 = arith.constant 0 : index
      %250 = vector.load %arg21[%c0_99, %c0_100] : memref<16x32xf32, #tpu.memory_space<vmem>>, vector<16x32xf32>
      tpu.vector_store %arg21[%c0_99, %c0_100], %249 {strides = array<i32>} : memref<16x32xf32, #tpu.memory_space<vmem>>, vector<16x32xf32>,
    } else {
    }
    %c0 = arith.constant 0 : index
    %c0_1 = arith.constant 0 : index
    %3 = vector.load %arg21[%c0, %c0_1] : memref<16x32xf32, #tpu.memory_space<vmem>>, vector<16x32xf32>
    %c0_2 = arith.constant 0 : index
    %c0_3 = arith.constant 0 : index
    %c0_4 = arith.constant 0 : index
    %4 = vector.load %arg4[%c0_2, %c0_3, %c0_4] : memref<1x32x96xbf16, #tpu.memory_space<vmem>>, vector<1x32x96xbf16>
    %5 = vector.shape_cast %4 : vector<1x32x96xbf16> to vector<32x96xbf16>
    %6 = arith.truncf %3 : vector<16x32xf32> to vector<16x32xbf16>
    %cst = arith.constant dense<0.000000e+00> : vector<16x96xf32>
    %7 = tpu.matmul %6, %5, %cst {dimension_numbers = #tpu.dot_dimension_numbers<[1], [0], [0], [1], [0, 0, 1, 1], [], []>} : vector<16x32xbf16>, vector<32x96xbf16>, vector<16x96xf32> -> vector<16x96xf32>
    %c0_5 = arith.constant 0 : index
    %c0_6 = arith.constant 0 : index
    %c0_7 = arith.constant 0 : index
    %8 = vector.load %arg5[%c0_5, %c0_6, %c0_7] : memref<1x1x96xf32, #tpu.memory_space<vmem>>, vector<1x1x96xf32>
    %9 = vector.shape_cast %8 : vector<1x1x96xf32> to vector<1x96xf32>
    %10 = vector.broadcast %9 : vector<1x96xf32> to vector<16x96xf32>
    %11 = arith.addf %7, %10 : vector<16x96xf32>
    %12 = vector.extract_strided_slice %11 {offsets = [0, 0], sizes = [16, 32], strides = [1, 1]} : vector<16x96xf32> to vector<16x32xf32>
    %cst_8 = arith.constant 0.353553385 : f32
    %13 = vector.broadcast %cst_8 : f32 to vector<16x32xf32>
    %14 = arith.mulf %12, %13 : vector<16x32xf32>
    %15 = vector.extract_strided_slice %11 {offsets = [0, 32], sizes = [16, 32], strides = [1, 1]} : vector<16x96xf32> to vector<16x32xf32>
    %16 = vector.extract_strided_slice %11 {offsets = [0, 64], sizes = [16, 32], strides = [1, 1]} : vector<16x96xf32> to vector<16x32xf32>
    %c0_9 = arith.constant 0 : index
    %c0_10 = arith.constant 0 : index
    %c0_11 = arith.constant 0 : index
    %17 = vector.load %arg6[%c0_9, %c0_10, %c0_11] : memref<1x32x32xbf16, #tpu.memory_space<vmem>>, vector<1x32x32xbf16>
    %18 = vector.shape_cast %17 : vector<1x32x32xbf16> to vector<32x32xbf16>
    %cst_12 = arith.constant 0.000000e+00 : f32
    %19 = vector.broadcast %cst_12 : f32 to vector<16x32xf32>
    %20 = vector.extract_strided_slice %14 {offsets = [0, 0], sizes = [16, 8], strides = [1, 1]} : vector<16x32xf32> to vector<16x8xf32>
    %21 = vector.shape_cast %20 : vector<16x8xf32> to vector<2x8x8xf32>
    %22 = arith.truncf %21 : vector<2x8x8xf32> to vector<2x8x8xbf16>
    %23 = vector.extract_strided_slice %15 {offsets = [0, 0], sizes = [16, 8], strides = [1, 1]} : vector<16x32xf32> to vector<16x8xf32>
    %24 = vector.shape_cast %23 : vector<16x8xf32> to vector<2x8x8xf32>
    %25 = arith.truncf %24 : vector<2x8x8xf32> to vector<2x8x8xbf16>
    %26 = vector.extract_strided_slice %16 {offsets = [0, 0], sizes = [16, 8], strides = [1, 1]} : vector<16x32xf32> to vector<16x8xf32>
    %27 = vector.shape_cast %26 : vector<16x8xf32> to vector<2x8x8xf32>
    %28 = arith.truncf %27 : vector<2x8x8xf32> to vector<2x8x8xbf16>
    "tpu.trace_start"() <{level = 10 : i32, message = "bqd,bkd->bqk"}> : () -> ()
    %cst_13 = arith.constant dense<0.000000e+00> : vector<2x8x8xf32>
    %29 = tpu.matmul %22, %25, %cst_13 {dimension_numbers = #tpu.dot_dimension_numbers<[2], [2], [1], [1], [0, 0, 0, 1, 1, 1], [0], [0]>} : vector<2x8x8xbf16>, vector<2x8x8xbf16>, vector<2x8x8xf32> -> vector<2x8x8xf32>
    "tpu.trace_stop"() : () -> ()
    %cst_14 = arith.constant dense<0xFF800000> : vector<2x8xf32>
    %30 = vector.multi_reduction <maximumf>, %29, %cst_14 [2] : vector<2x8x8xf32> to vector<2x8xf32>
    %31 = vector.shape_cast %30 : vector<2x8xf32> to vector<2x8x1xf32>
    %32 = vector.broadcast %31 : vector<2x8x1xf32> to vector<2x8x8xf32>
    %33 = arith.subf %29, %32 : vector<2x8x8xf32>
    %34 = math.exp %33 : vector<2x8x8xf32>
    %cst_15 = arith.constant dense<0.000000e+00> : vector<2x8xf32>
    %35 = vector.multi_reduction <add>, %34, %cst_15 [2] : vector<2x8x8xf32> to vector<2x8xf32>
    %36 = vector.shape_cast %35 : vector<2x8xf32> to vector<2x8x1xf32>
    %37 = tpu.reciprocal %36 {approx = true} : vector<2x8x1xf32> -> vector<2x8x1xf32>
    %38 = vector.broadcast %37 : vector<2x8x1xf32> to vector<2x8x8xf32>
    %39 = arith.mulf %34, %38 : vector<2x8x8xf32>
    %40 = arith.truncf %39 : vector<2x8x8xf32> to vector<2x8x8xbf16>
    "tpu.trace_start"() <{level = 10 : i32, message = "bqk,bkd->bqd"}> : () -> ()
    %cst_16 = arith.constant dense<0.000000e+00> : vector<2x8x8xf32>
    %41 = tpu.matmul %40, %28, %cst_16 {dimension_numbers = #tpu.dot_dimension_numbers<[2], [1], [1], [2], [0, 0, 0, 1, 1, 2], [0], [0]>} : vector<2x8x8xbf16>, vector<2x8x8xbf16>, vector<2x8x8xf32> -> vector<2x8x8xf32>
    "tpu.trace_stop"() : () -> ()
    %42 = vector.shape_cast %41 : vector<2x8x8xf32> to vector<16x8xf32>
    %43 = vector.extract_strided_slice %18 {offsets = [0, 0], sizes = [8, 32], strides = [1, 1]} : vector<32x32xbf16> to vector<8x32xbf16>
    %44 = arith.truncf %42 : vector<16x8xf32> to vector<16x8xbf16>
    %cst_17 = arith.constant dense<0.000000e+00> : vector<16x32xf32>
    %45 = tpu.matmul %44, %43, %cst_17 {dimension_numbers = #tpu.dot_dimension_numbers<[1], [0], [0], [1], [0, 0, 1, 1], [], []>} : vector<16x8xbf16>, vector<8x32xbf16>, vector<16x32xf32> -> vector<16x32xf32>
    %46 = arith.addf %19, %45 : vector<16x32xf32>
    %47 = vector.extract_strided_slice %14 {offsets = [0, 8], sizes = [16, 8], strides = [1, 1]} : vector<16x32xf32> to vector<16x8xf32>
    %48 = vector.shape_cast %47 : vector<16x8xf32> to vector<2x8x8xf32>
    %49 = arith.truncf %48 : vector<2x8x8xf32> to vector<2x8x8xbf16>
    %50 = vector.extract_strided_slice %15 {offsets = [0, 8], sizes = [16, 8], strides = [1, 1]} : vector<16x32xf32> to vector<16x8xf32>
    %51 = vector.shape_cast %50 : vector<16x8xf32> to vector<2x8x8xf32>
    %52 = arith.truncf %51 : vector<2x8x8xf32> to vector<2x8x8xbf16>
    %53 = vector.extract_strided_slice %16 {offsets = [0, 8], sizes = [16, 8], strides = [1, 1]} : vector<16x32xf32> to vector<16x8xf32>
    %54 = vector.shape_cast %53 : vector<16x8xf32> to vector<2x8x8xf32>
    %55 = arith.truncf %54 : vector<2x8x8xf32> to vector<2x8x8xbf16>
    "tpu.trace_start"() <{level = 10 : i32, message = "bqd,bkd->bqk"}> : () -> ()
    %cst_18 = arith.constant dense<0.000000e+00> : vector<2x8x8xf32>
    %56 = tpu.matmul %49, %52, %cst_18 {dimension_numbers = #tpu.dot_dimension_numbers<[2], [2], [1], [1], [0, 0, 0, 1, 1, 1], [0], [0]>} : vector<2x8x8xbf16>, vector<2x8x8xbf16>, vector<2x8x8xf32> -> vector<2x8x8xf32>
    "tpu.trace_stop"() : () -> ()
    %cst_19 = arith.constant dense<0xFF800000> : vector<2x8xf32>
    %57 = vector.multi_reduction <maximumf>, %56, %cst_19 [2] : vector<2x8x8xf32> to vector<2x8xf32>
    %58 = vector.shape_cast %57 : vector<2x8xf32> to vector<2x8x1xf32>
    %59 = vector.broadcast %58 : vector<2x8x1xf32> to vector<2x8x8xf32>
    %60 = arith.subf %56, %59 : vector<2x8x8xf32>
    %61 = math.exp %60 : vector<2x8x8xf32>
    %cst_20 = arith.constant dense<0.000000e+00> : vector<2x8xf32>
    %62 = vector.multi_reduction <add>, %61, %cst_20 [2] : vector<2x8x8xf32> to vector<2x8xf32>
    %63 = vector.shape_cast %62 : vector<2x8xf32> to vector<2x8x1xf32>
    %64 = tpu.reciprocal %63 {approx = true} : vector<2x8x1xf32> -> vector<2x8x1xf32>
    %65 = vector.broadcast %64 : vector<2x8x1xf32> to vector<2x8x8xf32>
    %66 = arith.mulf %61, %65 : vector<2x8x8xf32>
    %67 = arith.truncf %66 : vector<2x8x8xf32> to vector<2x8x8xbf16>
    "tpu.trace_start"() <{level = 10 : i32, message = "bqk,bkd->bqd"}> : () -> ()
    %cst_21 = arith.constant dense<0.000000e+00> : vector<2x8x8xf32>
    %68 = tpu.matmul %67, %55, %cst_21 {dimension_numbers = #tpu.dot_dimension_numbers<[2], [1], [1], [2], [0, 0, 0, 1, 1, 2], [0], [0]>} : vector<2x8x8xbf16>, vector<2x8x8xbf16>, vector<2x8x8xf32> -> vector<2x8x8xf32>
    "tpu.trace_stop"() : () -> ()
    %69 = vector.shape_cast %68 : vector<2x8x8xf32> to vector<16x8xf32>
    %70 = vector.extract_strided_slice %18 {offsets = [8, 0], sizes = [8, 32], strides = [1, 1]} : vector<32x32xbf16> to vector<8x32xbf16>
    %71 = arith.truncf %69 : vector<16x8xf32> to vector<16x8xbf16>
    %cst_22 = arith.constant dense<0.000000e+00> : vector<16x32xf32>
    %72 = tpu.matmul %71, %70, %cst_22 {dimension_numbers = #tpu.dot_dimension_numbers<[1], [0], [0], [1], [0, 0, 1, 1], [], []>} : vector<16x8xbf16>, vector<8x32xbf16>, vector<16x32xf32> -> vector<16x32xf32>
    %73 = arith.addf %46, %72 : vector<16x32xf32>
    %74 = vector.extract_strided_slice %14 {offsets = [0, 16], sizes = [16, 8], strides = [1, 1]} : vector<16x32xf32> to vector<16x8xf32>
    %75 = vector.shape_cast %74 : vector<16x8xf32> to vector<2x8x8xf32>
    %76 = arith.truncf %75 : vector<2x8x8xf32> to vector<2x8x8xbf16>
    %77 = vector.extract_strided_slice %15 {offsets = [0, 16], sizes = [16, 8], strides = [1, 1]} : vector<16x32xf32> to vector<16x8xf32>
    %78 = vector.shape_cast %77 : vector<16x8xf32> to vector<2x8x8xf32>
    %79 = arith.truncf %78 : vector<2x8x8xf32> to vector<2x8x8xbf16>
    %80 = vector.extract_strided_slice %16 {offsets = [0, 16], sizes = [16, 8], strides = [1, 1]} : vector<16x32xf32> to vector<16x8xf32>
    %81 = vector.shape_cast %80 : vector<16x8xf32> to vector<2x8x8xf32>
    %82 = arith.truncf %81 : vector<2x8x8xf32> to vector<2x8x8xbf16>
    "tpu.trace_start"() <{level = 10 : i32, message = "bqd,bkd->bqk"}> : () -> ()
    %cst_23 = arith.constant dense<0.000000e+00> : vector<2x8x8xf32>
    %83 = tpu.matmul %76, %79, %cst_23 {dimension_numbers = #tpu.dot_dimension_numbers<[2], [2], [1], [1], [0, 0, 0, 1, 1, 1], [0], [0]>} : vector<2x8x8xbf16>, vector<2x8x8xbf16>, vector<2x8x8xf32> -> vector<2x8x8xf32>
    "tpu.trace_stop"() : () -> ()
    %cst_24 = arith.constant dense<0xFF800000> : vector<2x8xf32>
    %84 = vector.multi_reduction <maximumf>, %83, %cst_24 [2] : vector<2x8x8xf32> to vector<2x8xf32>
    %85 = vector.shape_cast %84 : vector<2x8xf32> to vector<2x8x1xf32>
    %86 = vector.broadcast %85 : vector<2x8x1xf32> to vector<2x8x8xf32>
    %87 = arith.subf %83, %86 : vector<2x8x8xf32>
    %88 = math.exp %87 : vector<2x8x8xf32>
    %cst_25 = arith.constant dense<0.000000e+00> : vector<2x8xf32>
    %89 = vector.multi_reduction <add>, %88, %cst_25 [2] : vector<2x8x8xf32> to vector<2x8xf32>
    %90 = vector.shape_cast %89 : vector<2x8xf32> to vector<2x8x1xf32>
    %91 = tpu.reciprocal %90 {approx = true} : vector<2x8x1xf32> -> vector<2x8x1xf32>
    %92 = vector.broadcast %91 : vector<2x8x1xf32> to vector<2x8x8xf32>
    %93 = arith.mulf %88, %92 : vector<2x8x8xf32>
    %94 = arith.truncf %93 : vector<2x8x8xf32> to vector<2x8x8xbf16>
    "tpu.trace_start"() <{level = 10 : i32, message = "bqk,bkd->bqd"}> : () -> ()
    %cst_26 = arith.constant dense<0.000000e+00> : vector<2x8x8xf32>
    %95 = tpu.matmul %94, %82, %cst_26 {dimension_numbers = #tpu.dot_dimension_numbers<[2], [1], [1], [2], [0, 0, 0, 1, 1, 2], [0], [0]>} : vector<2x8x8xbf16>, vector<2x8x8xbf16>, vector<2x8x8xf32> -> vector<2x8x8xf32>
    "tpu.trace_stop"() : () -> ()
    %96 = vector.shape_cast %95 : vector<2x8x8xf32> to vector<16x8xf32>
    %97 = vector.extract_strided_slice %18 {offsets = [16, 0], sizes = [8, 32], strides = [1, 1]} : vector<32x32xbf16> to vector<8x32xbf16>
    %98 = arith.truncf %96 : vector<16x8xf32> to vector<16x8xbf16>
    %cst_27 = arith.constant dense<0.000000e+00> : vector<16x32xf32>
    %99 = tpu.matmul %98, %97, %cst_27 {dimension_numbers = #tpu.dot_dimension_numbers<[1], [0], [0], [1], [0, 0, 1, 1], [], []>} : vector<16x8xbf16>, vector<8x32xbf16>, vector<16x32xf32> -> vector<16x32xf32>
    %100 = arith.addf %73, %99 : vector<16x32xf32>
    %101 = vector.extract_strided_slice %14 {offsets = [0, 24], sizes = [16, 8], strides = [1, 1]} : vector<16x32xf32> to vector<16x8xf32>
    %102 = vector.shape_cast %101 : vector<16x8xf32> to vector<2x8x8xf32>
    %103 = arith.truncf %102 : vector<2x8x8xf32> to vector<2x8x8xbf16>
    %104 = vector.extract_strided_slice %15 {offsets = [0, 24], sizes = [16, 8], strides = [1, 1]} : vector<16x32xf32> to vector<16x8xf32>
    %105 = vector.shape_cast %104 : vector<16x8xf32> to vector<2x8x8xf32>
    %106 = arith.truncf %105 : vector<2x8x8xf32> to vector<2x8x8xbf16>
    %107 = vector.extract_strided_slice %16 {offsets = [0, 24], sizes = [16, 8], strides = [1, 1]} : vector<16x32xf32> to vector<16x8xf32>
    %108 = vector.shape_cast %107 : vector<16x8xf32> to vector<2x8x8xf32>
    %109 = arith.truncf %108 : vector<2x8x8xf32> to vector<2x8x8xbf16>
    "tpu.trace_start"() <{level = 10 : i32, message = "bqd,bkd->bqk"}> : () -> ()
    %cst_28 = arith.constant dense<0.000000e+00> : vector<2x8x8xf32>
    %110 = tpu.matmul %103, %106, %cst_28 {dimension_numbers = #tpu.dot_dimension_numbers<[2], [2], [1], [1], [0, 0, 0, 1, 1, 1], [0], [0]>} : vector<2x8x8xbf16>, vector<2x8x8xbf16>, vector<2x8x8xf32> -> vector<2x8x8xf32>
    "tpu.trace_stop"() : () -> ()
    %cst_29 = arith.constant dense<0xFF800000> : vector<2x8xf32>
    %111 = vector.multi_reduction <maximumf>, %110, %cst_29 [2] : vector<2x8x8xf32> to vector<2x8xf32>
    %112 = vector.shape_cast %111 : vector<2x8xf32> to vector<2x8x1xf32>
    %113 = vector.broadcast %112 : vector<2x8x1xf32> to vector<2x8x8xf32>
    %114 = arith.subf %110, %113 : vector<2x8x8xf32>
    %115 = math.exp %114 : vector<2x8x8xf32>
    %cst_30 = arith.constant dense<0.000000e+00> : vector<2x8xf32>
    %116 = vector.multi_reduction <add>, %115, %cst_30 [2] : vector<2x8x8xf32> to vector<2x8xf32>
    %117 = vector.shape_cast %116 : vector<2x8xf32> to vector<2x8x1xf32>
    %118 = tpu.reciprocal %117 {approx = true} : vector<2x8x1xf32> -> vector<2x8x1xf32>
    %119 = vector.broadcast %118 : vector<2x8x1xf32> to vector<2x8x8xf32>
    %120 = arith.mulf %115, %119 : vector<2x8x8xf32>
    %121 = arith.truncf %120 : vector<2x8x8xf32> to vector<2x8x8xbf16>
    "tpu.trace_start"() <{level = 10 : i32, message = "bqk,bkd->bqd"}> : () -> ()
    %cst_31 = arith.constant dense<0.000000e+00> : vector<2x8x8xf32>
    %122 = tpu.matmul %121, %109, %cst_31 {dimension_numbers = #tpu.dot_dimension_numbers<[2], [1], [1], [2], [0, 0, 0, 1, 1, 2], [0], [0]>} : vector<2x8x8xbf16>, vector<2x8x8xbf16>, vector<2x8x8xf32> -> vector<2x8x8xf32>
    "tpu.trace_stop"() : () -> ()
    %123 = vector.shape_cast %122 : vector<2x8x8xf32> to vector<16x8xf32>
    %124 = vector.extract_strided_slice %18 {offsets = [24, 0], sizes = [8, 32], strides = [1, 1]} : vector<32x32xbf16> to vector<8x32xbf16>
    %125 = arith.truncf %123 : vector<16x8xf32> to vector<16x8xbf16>
    %cst_32 = arith.constant dense<0.000000e+00> : vector<16x32xf32>
    %126 = tpu.matmul %125, %124, %cst_32 {dimension_numbers = #tpu.dot_dimension_numbers<[1], [0], [0], [1], [0, 0, 1, 1], [], []>} : vector<16x8xbf16>, vector<8x32xbf16>, vector<16x32xf32> -> vector<16x32xf32>
    %127 = arith.addf %100, %126 : vector<16x32xf32>
    %c0_33 = arith.constant 0 : index
    %c0_34 = arith.constant 0 : index
    %c0_35 = arith.constant 0 : index
    %128 = vector.load %arg7[%c0_33, %c0_34, %c0_35] : memref<1x1x32xf32, #tpu.memory_space<vmem>>, vector<1x1x32xf32>
    %129 = vector.shape_cast %128 : vector<1x1x32xf32> to vector<1x32xf32>
    %130 = vector.broadcast %129 : vector<1x32xf32> to vector<16x32xf32>
    %131 = arith.addf %127, %130 : vector<16x32xf32>
    %132 = arith.addf %3, %131 : vector<16x32xf32>
    %c0_36 = arith.constant 0 : index
    %c0_37 = arith.constant 0 : index
    %c0_38 = arith.constant 0 : index
    %133 = vector.load %arg12[%c0_36, %c0_37, %c0_38] : memref<1x1x32xf32, #tpu.memory_space<vmem>>, vector<1x1x32xf32>
    %134 = vector.shape_cast %133 : vector<1x1x32xf32> to vector<1x32xf32>
    %c0_39 = arith.constant 0 : index
    %c0_40 = arith.constant 0 : index
    %c0_41 = arith.constant 0 : index
    %135 = vector.load %arg13[%c0_39, %c0_40, %c0_41] : memref<1x1x32xf32, #tpu.memory_space<vmem>>, vector<1x1x32xf32>
    %136 = vector.shape_cast %135 : vector<1x1x32xf32> to vector<1x32xf32>
    %cst_42 = arith.constant dense<0.000000e+00> : vector<16xf32>
    %137 = vector.multi_reduction <add>, %132, %cst_42 [1] : vector<16x32xf32> to vector<16xf32>
    %138 = vector.shape_cast %137 : vector<16xf32> to vector<16x1xf32>
    %cst_43 = arith.constant 3.200000e+01 : f32
    %139 = vector.broadcast %cst_43 : f32 to vector<16x1xf32>
    %140 = arith.divf %138, %139 : vector<16x1xf32>
    %141 = vector.broadcast %140 : vector<16x1xf32> to vector<16x32xf32>
    %142 = arith.subf %132, %141 : vector<16x32xf32>
    %143 = arith.mulf %142, %142 : vector<16x32xf32>
    %cst_44 = arith.constant dense<0.000000e+00> : vector<16xf32>
    %144 = vector.multi_reduction <add>, %143, %cst_44 [1] : vector<16x32xf32> to vector<16xf32>
    %145 = vector.shape_cast %144 : vector<16xf32> to vector<16x1xf32>
    %cst_45 = arith.constant 3.200000e+01 : f32
    %146 = vector.broadcast %cst_45 : f32 to vector<16x1xf32>
    %147 = arith.divf %145, %146 : vector<16x1xf32>
    %cst_46 = arith.constant 9.99999974E-6 : f32
    %148 = vector.broadcast %cst_46 : f32 to vector<16x1xf32>
    %149 = arith.addf %147, %148 : vector<16x1xf32>
    %150 = math.rsqrt %149 : vector<16x1xf32>
    %151 = vector.broadcast %150 : vector<16x1xf32> to vector<16x32xf32>
    %152 = arith.mulf %142, %151 : vector<16x32xf32>
    %153 = vector.broadcast %134 : vector<1x32xf32> to vector<16x32xf32>
    %154 = arith.mulf %152, %153 : vector<16x32xf32>
    %155 = vector.broadcast %136 : vector<1x32xf32> to vector<16x32xf32>
    %156 = arith.addf %154, %155 : vector<16x32xf32>
    %c0_47 = arith.constant 0 : index
    %c0_48 = arith.constant 0 : index
    %c0_49 = arith.constant 0 : index
    %157 = vector.load %arg8[%c0_47, %c0_48, %c0_49] : memref<1x32x128xbf16, #tpu.memory_space<vmem>>, vector<1x32x128xbf16>
    %158 = vector.shape_cast %157 : vector<1x32x128xbf16> to vector<32x128xbf16>
    %159 = arith.truncf %156 : vector<16x32xf32> to vector<16x32xbf16>
    %cst_50 = arith.constant dense<0.000000e+00> : vector<16x128xf32>
    %160 = tpu.matmul %159, %158, %cst_50 {dimension_numbers = #tpu.dot_dimension_numbers<[1], [0], [0], [1], [0, 0, 1, 1], [], []>} : vector<16x32xbf16>, vector<32x128xbf16>, vector<16x128xf32> -> vector<16x128xf32>
    %c0_51 = arith.constant 0 : index
    %c0_52 = arith.constant 0 : index
    %c0_53 = arith.constant 0 : index
    %161 = vector.load %arg9[%c0_51, %c0_52, %c0_53] : memref<1x1x128xf32, #tpu.memory_space<vmem>>, vector<1x1x128xf32>
    %162 = vector.shape_cast %161 : vector<1x1x128xf32> to vector<1x128xf32>
    %163 = vector.broadcast %162 : vector<1x128xf32> to vector<16x128xf32>
    %164 = arith.addf %160, %163 : vector<16x128xf32>
    %cst_54 = arith.constant 5.000000e-01 : f32
    %165 = vector.broadcast %cst_54 : f32 to vector<16x128xf32>
    %166 = arith.mulf %165, %164 : vector<16x128xf32>
    %cst_55 = arith.constant 0.707106769 : f32
    %167 = vector.broadcast %cst_55 : f32 to vector<16x128xf32>
    %168 = arith.mulf %164, %167 : vector<16x128xf32>
    %cst_56 = arith.constant 0.000000e+00 : f32
    %169 = vector.broadcast %cst_56 : f32 to vector<16x128xf32>
    %170 = arith.cmpf olt, %168, %169 : vector<16x128xf32>
    %cst_57 = arith.constant -1.000000e+00 : f32
    %cst_58 = arith.constant 1.000000e+00 : f32
    %171 = vector.broadcast %cst_57 : f32 to vector<16x128xf32>
    %172 = vector.broadcast %cst_58 : f32 to vector<16x128xf32>
    %173 = arith.select %170, %171, %172 : vector<16x128xi1>, vector<16x128xf32>
    %174 = math.absf %168 : vector<16x128xf32>
    %cst_59 = arith.constant 0.327591091 : f32
    %175 = vector.broadcast %cst_59 : f32 to vector<16x128xf32>
    %176 = arith.mulf %175, %174 : vector<16x128xf32>
    %cst_60 = arith.constant 1.000000e+00 : f32
    %177 = vector.broadcast %cst_60 : f32 to vector<16x128xf32>
    %178 = arith.addf %177, %176 : vector<16x128xf32>
    %cst_61 = arith.constant 1.000000e+00 : f32
    %179 = vector.broadcast %cst_61 : f32 to vector<16x128xf32>
    %180 = arith.divf %179, %178 : vector<16x128xf32>
    %cst_62 = arith.constant 1.06140542 : f32
    %181 = vector.broadcast %cst_62 : f32 to vector<16x128xf32>
    %182 = arith.mulf %180, %181 : vector<16x128xf32>
    %cst_63 = arith.constant -1.45315206 : f32
    %183 = vector.broadcast %cst_63 : f32 to vector<16x128xf32>
    %184 = arith.addf %183, %182 : vector<16x128xf32>
    %185 = arith.mulf %180, %184 : vector<16x128xf32>
    %cst_64 = arith.constant 1.42141378 : f32
    %186 = vector.broadcast %cst_64 : f32 to vector<16x128xf32>
    %187 = arith.addf %186, %185 : vector<16x128xf32>
    %188 = arith.mulf %180, %187 : vector<16x128xf32>
    %cst_65 = arith.constant -0.284496725 : f32
    %189 = vector.broadcast %cst_65 : f32 to vector<16x128xf32>
    %190 = arith.addf %189, %188 : vector<16x128xf32>
    %191 = arith.mulf %180, %190 : vector<16x128xf32>
    %cst_66 = arith.constant 0.254829586 : f32
    %192 = vector.broadcast %cst_66 : f32 to vector<16x128xf32>
    %193 = arith.addf %192, %191 : vector<16x128xf32>
    %194 = arith.mulf %180, %193 : vector<16x128xf32>
    %cst_67 = arith.constant 0.000000e+00 : f32
    %195 = vector.broadcast %cst_67 : f32 to vector<16x128xf32>
    %196 = arith.subf %195, %174 : vector<16x128xf32>
    %197 = arith.mulf %196, %174 : vector<16x128xf32>
    %198 = math.exp %197 : vector<16x128xf32>
    %199 = arith.mulf %194, %198 : vector<16x128xf32>
    %cst_68 = arith.constant 1.000000e+00 : f32
    %200 = vector.broadcast %cst_68 : f32 to vector<16x128xf32>
    %201 = arith.subf %200, %199 : vector<16x128xf32>
    %202 = arith.mulf %173, %201 : vector<16x128xf32>
    %cst_69 = arith.constant 1.000000e+00 : f32
    %203 = vector.broadcast %cst_69 : f32 to vector<16x128xf32>
    %204 = arith.addf %203, %202 : vector<16x128xf32>
    %205 = arith.mulf %166, %204 : vector<16x128xf32>
    %c0_70 = arith.constant 0 : index
    %c0_71 = arith.constant 0 : index
    %c0_72 = arith.constant 0 : index
    %206 = vector.load %arg10[%c0_70, %c0_71, %c0_72] : memref<1x128x32xbf16, #tpu.memory_space<vmem>>, vector<1x128x32xbf16>
    %207 = vector.shape_cast %206 : vector<1x128x32xbf16> to vector<128x32xbf16>
    %208 = arith.truncf %205 : vector<16x128xf32> to vector<16x128xbf16>
    %cst_73 = arith.constant dense<0.000000e+00> : vector<16x32xf32>
    %209 = tpu.matmul %208, %207, %cst_73 {dimension_numbers = #tpu.dot_dimension_numbers<[1], [0], [0], [1], [0, 0, 1, 1], [], []>} : vector<16x128xbf16>, vector<128x32xbf16>, vector<16x32xf32> -> vector<16x32xf32>
    %c0_74 = arith.constant 0 : index
    %c0_75 = arith.constant 0 : index
    %c0_76 = arith.constant 0 : index
    %210 = vector.load %arg11[%c0_74, %c0_75, %c0_76] : memref<1x1x32xf32, #tpu.memory_space<vmem>>, vector<1x1x32xf32>
    %211 = vector.shape_cast %210 : vector<1x1x32xf32> to vector<1x32xf32>
    %212 = vector.broadcast %211 : vector<1x32xf32> to vector<16x32xf32>
    %213 = arith.addf %209, %212 : vector<16x32xf32>
    %214 = arith.addf %156, %213 : vector<16x32xf32>
    %c0_77 = arith.constant 0 : index
    %c0_78 = arith.constant 0 : index
    %c0_79 = arith.constant 0 : index
    %215 = vector.load %arg14[%c0_77, %c0_78, %c0_79] : memref<1x1x32xf32, #tpu.memory_space<vmem>>, vector<1x1x32xf32>
    %216 = vector.shape_cast %215 : vector<1x1x32xf32> to vector<1x32xf32>
    %c0_80 = arith.constant 0 : index
    %c0_81 = arith.constant 0 : index
    %c0_82 = arith.constant 0 : index
    %217 = vector.load %arg15[%c0_80, %c0_81, %c0_82] : memref<1x1x32xf32, #tpu.memory_space<vmem>>, vector<1x1x32xf32>
    %218 = vector.shape_cast %217 : vector<1x1x32xf32> to vector<1x32xf32>
    %cst_83 = arith.constant dense<0.000000e+00> : vector<16xf32>
    %219 = vector.multi_reduction <add>, %214, %cst_83 [1] : vector<16x32xf32> to vector<16xf32>
    %220 = vector.shape_cast %219 : vector<16xf32> to vector<16x1xf32>
    %cst_84 = arith.constant 3.200000e+01 : f32
    %221 = vector.broadcast %cst_84 : f32 to vector<16x1xf32>
    %222 = arith.divf %220, %221 : vector<16x1xf32>
    %223 = vector.broadcast %222 : vector<16x1xf32> to vector<16x32xf32>
    %224 = arith.subf %214, %223 : vector<16x32xf32>
    %225 = arith.mulf %224, %224 : vector<16x32xf32>
    %cst_85 = arith.constant dense<0.000000e+00> : vector<16xf32>
    %226 = vector.multi_reduction <add>, %225, %cst_85 [1] : vector<16x32xf32> to vector<16xf32>
    %227 = vector.shape_cast %226 : vector<16xf32> to vector<16x1xf32>
    %cst_86 = arith.constant 3.200000e+01 : f32
    %228 = vector.broadcast %cst_86 : f32 to vector<16x1xf32>
    %229 = arith.divf %227, %228 : vector<16x1xf32>
    %cst_87 = arith.constant 9.99999974E-6 : f32
    %230 = vector.broadcast %cst_87 : f32 to vector<16x1xf32>
    %231 = arith.addf %229, %230 : vector<16x1xf32>
    %232 = math.rsqrt %231 : vector<16x1xf32>
    %233 = vector.broadcast %232 : vector<16x1xf32> to vector<16x32xf32>
    %234 = arith.mulf %224, %233 : vector<16x32xf32>
    %235 = vector.broadcast %216 : vector<1x32xf32> to vector<16x32xf32>
    %236 = arith.mulf %234, %235 : vector<16x32xf32>
    %237 = vector.broadcast %218 : vector<1x32xf32> to vector<16x32xf32>
    %238 = arith.addf %236, %237 : vector<16x32xf32>
    %c0_88 = arith.constant 0 : index
    %c0_89 = arith.constant 0 : index
    %239 = vector.load %arg21[%c0_88, %c0_89] : memref<16x32xf32, #tpu.memory_space<vmem>>, vector<16x32xf32>
    tpu.vector_store %arg21[%c0_88, %c0_89], %238 {strides = array<i32>} : memref<16x32xf32, #tpu.memory_space<vmem>>, vector<16x32xf32>,
    %c1_i32 = arith.constant 1 : i32
    %240 = arith.cmpi eq, %arg0, %c1_i32 : i32
    %241 = arith.extui %240 : i1 to i32
    %c0_i32_90 = arith.constant 0 : i32
    %242 = arith.cmpi ne, %241, %c0_i32_90 : i32
    scf.if %242 {
      %c0_91 = arith.constant 0 : index
      %c0_92 = arith.constant 0 : index
      %243 = vector.load %arg16[%c0_91, %c0_92] : memref<1x32xf32, #tpu.memory_space<vmem>>, vector<1x32xf32>
      %c0_93 = arith.constant 0 : index
      %c0_94 = arith.constant 0 : index
      %244 = vector.load %arg17[%c0_93, %c0_94] : memref<1x32xf32, #tpu.memory_space<vmem>>, vector<1x32xf32>
      %cst_95 = arith.constant dense<0.000000e+00> : vector<16xf32>
      %245 = vector.multi_reduction <add>, %238, %cst_95 [1] : vector<16x32xf32> to vector<16xf32>
      %246 = vector.shape_cast %245 : vector<16xf32> to vector<16x1xf32>
      %cst_96 = arith.constant 3.200000e+01 : f32
      %247 = vector.broadcast %cst_96 : f32 to vector<16x1xf32>
      %248 = arith.divf %246, %247 : vector<16x1xf32>
      %249 = vector.broadcast %248 : vector<16x1xf32> to vector<16x32xf32>
      %250 = arith.subf %238, %249 : vector<16x32xf32>
      %251 = arith.mulf %250, %250 : vector<16x32xf32>
      %cst_97 = arith.constant dense<0.000000e+00> : vector<16xf32>
      %252 = vector.multi_reduction <add>, %251, %cst_97 [1] : vector<16x32xf32> to vector<16xf32>
      %253 = vector.shape_cast %252 : vector<16xf32> to vector<16x1xf32>
      %cst_98 = arith.constant 3.200000e+01 : f32
      %254 = vector.broadcast %cst_98 : f32 to vector<16x1xf32>
      %255 = arith.divf %253, %254 : vector<16x1xf32>
      %cst_99 = arith.constant 9.99999974E-6 : f32
      %256 = vector.broadcast %cst_99 : f32 to vector<16x1xf32>
      %257 = arith.addf %255, %256 : vector<16x1xf32>
      %258 = math.rsqrt %257 : vector<16x1xf32>
      %259 = vector.broadcast %258 : vector<16x1xf32> to vector<16x32xf32>
      %260 = arith.mulf %250, %259 : vector<16x32xf32>
      %261 = vector.broadcast %243 : vector<1x32xf32> to vector<16x32xf32>
      %262 = arith.mulf %260, %261 : vector<16x32xf32>
      %263 = vector.broadcast %244 : vector<1x32xf32> to vector<16x32xf32>
      %264 = arith.addf %262, %263 : vector<16x32xf32>
      %c0_100 = arith.constant 0 : index
      %c0_101 = arith.constant 0 : index
      %265 = vector.load %arg18[%c0_100, %c0_101] : memref<32x128xbf16, #tpu.memory_space<vmem>>, vector<32x128xbf16>
      %266 = arith.truncf %264 : vector<16x32xf32> to vector<16x32xbf16>
      %cst_102 = arith.constant dense<0.000000e+00> : vector<16x128xf32>
      %267 = tpu.matmul %266, %265, %cst_102 {dimension_numbers = #tpu.dot_dimension_numbers<[1], [0], [0], [1], [0, 0, 1, 1], [], []>} : vector<16x32xbf16>, vector<32x128xbf16>, vector<16x128xf32> -> vector<16x128xf32>
      %c0_103 = arith.constant 0 : index
      %c0_104 = arith.constant 0 : index
      %268 = vector.load %arg19[%c0_103, %c0_104] : memref<1x128xf32, #tpu.memory_space<vmem>>, vector<1x128xf32>
      %269 = vector.broadcast %268 : vector<1x128xf32> to vector<16x128xf32>
      %270 = arith.addf %267, %269 : vector<16x128xf32>
      %271 = vector.shape_cast %270 : vector<16x128xf32> to vector<2x8x128xf32>
      %c0_105 = arith.constant 0 : index
      %c0_106 = arith.constant 0 : index
      %c0_107 = arith.constant 0 : index
      %272 = vector.load %arg20[%c0_105, %c0_106, %c0_107] : memref<2x8x128xf32, #tpu.memory_space<vmem>>, vector<2x8x128xf32>
      tpu.vector_store %arg20[%c0_105, %c0_106, %c0_107], %271 {strides = array<i32>} : memref<2x8x128xf32, #tpu.memory_space<vmem>>, vector<2x8x128xf32>,
    } else {
    }
    return
  }
  func.func @transform_0(%arg0: i32) -> (i32, i32, i32) {
    %c0_i32 = arith.constant 0 : i32
    %c0_i32_0 = arith.constant 0 : i32
    %c0_i32_1 = arith.constant 0 : i32
    %c0_i32_2 = arith.constant 0 : i32
    return %c0_i32, %c0_i32_0, %c0_i32_1 : i32, i32, i32
  }
  func.func @transform_1(%arg0: i32) -> (i32, i32) {
    %c0_i32 = arith.constant 0 : i32
    %c0_i32_0 = arith.constant 0 : i32
    %c0_i32_1 = arith.constant 0 : i32
    return %c0_i32, %c0_i32_0 : i32, i32
  }
  func.func @transform_2(%arg0: i32) -> (i32, i32) {
    %c0_i32 = arith.constant 0 : i32
    %c0_i32_0 = arith.constant 0 : i32
    %c0_i32_1 = arith.constant 0 : i32
    return %c0_i32, %c0_i32_0 : i32, i32
  }
  func.func @transform_3(%arg0: i32) -> (i32, i32, i32) {
    %c0_i32 = arith.constant 0 : i32
    %c0_i32_0 = arith.constant 0 : i32
    %c0_i32_1 = arith.constant 0 : i32
    return %arg0, %c0_i32, %c0_i32_0 : i32, i32, i32
  }
  func.func @transform_4(%arg0: i32) -> (i32, i32, i32) {
    %c0_i32 = arith.constant 0 : i32
    %c0_i32_0 = arith.constant 0 : i32
    %c0_i32_1 = arith.constant 0 : i32
    return %arg0, %c0_i32, %c0_i32_0 : i32, i32, i32
  }
  func.func @transform_5(%arg0: i32) -> (i32, i32, i32) {
    %c0_i32 = arith.constant 0 : i32
    %c0_i32_0 = arith.constant 0 : i32
    %c0_i32_1 = arith.constant 0 : i32
    return %arg0, %c0_i32, %c0_i32_0 : i32, i32, i32
  }
  func.func @transform_6(%arg0: i32) -> (i32, i32, i32) {
    %c0_i32 = arith.constant 0 : i32
    %c0_i32_0 = arith.constant 0 : i32
    %c0_i32_1 = arith.constant 0 : i32
    return %arg0, %c0_i32, %c0_i32_0 : i32, i32, i32
  }
  func.func @transform_7(%arg0: i32) -> (i32, i32, i32) {
    %c0_i32 = arith.constant 0 : i32
    %c0_i32_0 = arith.constant 0 : i32
    %c0_i32_1 = arith.constant 0 : i32
    return %arg0, %c0_i32, %c0_i32_0 : i32, i32, i32
  }
  func.func @transform_8(%arg0: i32) -> (i32, i32, i32) {
    %c0_i32 = arith.constant 0 : i32
    %c0_i32_0 = arith.constant 0 : i32
    %c0_i32_1 = arith.constant 0 : i32
    return %arg0, %c0_i32, %c0_i32_0 : i32, i32, i32
  }
  func.func @transform_9(%arg0: i32) -> (i32, i32, i32) {
    %c0_i32 = arith.constant 0 : i32
    %c0_i32_0 = arith.constant 0 : i32
    %c0_i32_1 = arith.constant 0 : i32
    return %arg0, %c0_i32, %c0_i32_0 : i32, i32, i32
  }
  func.func @transform_10(%arg0: i32) -> (i32, i32, i32) {
    %c0_i32 = arith.constant 0 : i32
    %c0_i32_0 = arith.constant 0 : i32
    %c0_i32_1 = arith.constant 0 : i32
    return %arg0, %c0_i32, %c0_i32_0 : i32, i32, i32
  }
  func.func @transform_11(%arg0: i32) -> (i32, i32, i32) {
    %c0_i32 = arith.constant 0 : i32
    %c0_i32_0 = arith.constant 0 : i32
    %c0_i32_1 = arith.constant 0 : i32
    return %arg0, %c0_i32, %c0_i32_0 : i32, i32, i32
  }
  func.func @transform_12(%arg0: i32) -> (i32, i32, i32) {
    %c0_i32 = arith.constant 0 : i32
    %c0_i32_0 = arith.constant 0 : i32
    %c0_i32_1 = arith.constant 0 : i32
    return %arg0, %c0_i32, %c0_i32_0 : i32, i32, i32
  }
  func.func @transform_13(%arg0: i32) -> (i32, i32, i32) {
    %c0_i32 = arith.constant 0 : i32
    %c0_i32_0 = arith.constant 0 : i32
    %c0_i32_1 = arith.constant 0 : i32
    return %arg0, %c0_i32, %c0_i32_0 : i32, i32, i32
  }
  func.func @transform_14(%arg0: i32) -> (i32, i32, i32) {
    %c0_i32 = arith.constant 0 : i32
    %c0_i32_0 = arith.constant 0 : i32
    %c0_i32_1 = arith.constant 0 : i32
    return %arg0, %c0_i32, %c0_i32_0 : i32, i32, i32
  }
  func.func @transform_15(%arg0: i32) -> (i32, i32) {
    %c0_i32 = arith.constant 0 : i32
    %c0_i32_0 = arith.constant 0 : i32
    %c0_i32_1 = arith.constant 0 : i32
    return %c0_i32, %c0_i32_0 : i32, i32
  }
  func.func @transform_16(%arg0: i32) -> (i32, i32) {
    %c0_i32 = arith.constant 0 : i32
    %c0_i32_0 = arith.constant 0 : i32
    %c0_i32_1 = arith.constant 0 : i32
    return %c0_i32, %c0_i32_0 : i32, i32
  }
  func.func @transform_17(%arg0: i32) -> (i32, i32) {
    %c0_i32 = arith.constant 0 : i32
    %c0_i32_0 = arith.constant 0 : i32
    %c0_i32_1 = arith.constant 0 : i32
    return %c0_i32, %c0_i32_0 : i32, i32
  }
  func.func @transform_18(%arg0: i32) -> (i32, i32) {
    %c0_i32 = arith.constant 0 : i32
    %c0_i32_0 = arith.constant 0 : i32
    %c0_i32_1 = arith.constant 0 : i32
    return %c0_i32, %c0_i32_0 : i32, i32
  }
  func.func @transform_19(%arg0: i32) -> (i32, i32, i32) {
    %c0_i32 = arith.constant 0 : i32
    %c0_i32_0 = arith.constant 0 : i32
    %c0_i32_1 = arith.constant 0 : i32
    %c0_i32_2 = arith.constant 0 : i32
    return %c0_i32, %c0_i32_0, %c0_i32_1 : i32, i32, i32
  }
}

</mosaic_0001>

<llo_original>
// kernel: mints_pallas_forward.1
$region0: #{mints_pallas_forward.1}
  #allocation0 [shape = 'u32[]', space=smem, size = 0x4, offset = 0x4, fixed_abs, tag = 'smem constant byte address 0x4 - core index']
  #allocation1 [shape = 'u32[144,128]{1,0:T(1,128)}', space=vmem, size = 0x12000, scoped, tag = 'internal scratch']
  #allocation2 [shape = 'f32[16,32]{1,0:T(8,128)}', space=vmem, size = 0x2000, scoped, tag = 'scratch operand']
  %s0 = inlined_call_operand.vmem [shape: f32[2,8,8], index: 0, kind: input, shape index: {}]
  %s1 = inlined_call_operand.vmem [shape: bf16[8,32], index: 1, kind: input, shape index: {}]
  %s2 = inlined_call_operand.vmem [shape: f32[16,32], index: 2, kind: input, shape index: {}]
  %s3 = inlined_call_operand.vmem [shape: bf16[2,32,96], index: 3, kind: input, shape index: {}]
  %s4 = inlined_call_operand.vmem [shape: f32[2,1,96], index: 4, kind: input, shape index: {}]
  %s5 = inlined_call_operand.vmem [shape: bf16[2,32,32], index: 5, kind: input, shape index: {}]
  %s6 = inlined_call_operand.vmem [shape: f32[2,1,32], index: 6, kind: input, shape index: {}]
  %s7 = inlined_call_operand.vmem [shape: bf16[2,32,128], index: 7, kind: input, shape index: {}]
  %s8 = inlined_call_operand.vmem [shape: f32[2,1,128], index: 8, kind: input, shape index: {}]
  %s9 = inlined_call_operand.vmem [shape: bf16[2,128,32], index: 9, kind: input, shape index: {}]
  %s10 = inlined_call_operand.vmem [shape: f32[2,1,32], index: 10, kind: input, shape index: {}]
  %s11 = inlined_call_operand.vmem [shape: f32[2,1,32], index: 11, kind: input, shape index: {}]
  %s12 = inlined_call_operand.vmem [shape: f32[2,1,32], index: 12, kind: input, shape index: {}]
  %s13 = inlined_call_operand.vmem [shape: f32[2,1,32], index: 13, kind: input, shape index: {}]
  %s14 = inlined_call_operand.vmem [shape: f32[2,1,32], index: 14, kind: input, shape index: {}]
  %s15 = inlined_call_operand.vmem [shape: f32[1,32], index: 15, kind: input, shape index: {}]
  %s16 = inlined_call_operand.vmem [shape: f32[1,32], index: 16, kind: input, shape index: {}]
  %s17 = inlined_call_operand.vmem [shape: bf16[32,128], index: 17, kind: input, shape index: {}]
  %s18 = inlined_call_operand.vmem [shape: f32[1,128], index: 18, kind: input, shape index: {}]
  %s19 = inlined_call_operand.vmem [shape: f32[2,8,128], index: 19, kind: output, shape index: {}]
  %s20 = sld [smem:[#allocation0]]
  $region117: #{mints_pallas_forward.1} parent=0
    _
  %s22 = ssub.s32 1, %s20
  %s23 = scalar_select 0, %s22, %s20
  loop: start=0, step=1, limit=4
  $region2: #{mints_pallas_forward.1} parent=0 // loop_pre_header
    _
  $region3: #{mints_pallas_forward.1} parent=0 // loop_header
    %s25 = sphi 0, %s29
    %p26 = scmp.ge.s32.totalorder %s25, 4
    %s33 = sphi 0, %s33
    %s35 = sphi 0, %s33
    %s36 = sphi 0, %s35
    %s50 = sphi 0, %s36
    %s54 = sphi 0, %s54
    %s56 = sphi 0, %s54
    %s57 = sphi 0, %s56
    %s71 = sphi 0, %s57
    %s75 = sphi 0, %s75
    %s77 = sphi 0, %s75
    %s78 = sphi 0, %s77
    %s92 = sphi 0, %s78
    %s98 = sphi 0, %s100
    %s101 = sphi 0, %s98
    %s102 = sphi 0, %s101
    %s118 = sphi 0, %s102
    %s124 = sphi 0, %s126
    %s127 = sphi 0, %s124
    %s128 = sphi 0, %s127
    %s144 = sphi 0, %s128
    %s150 = sphi 0, %s152
    %s153 = sphi 0, %s150
    %s154 = sphi 0, %s153
    %s170 = sphi 0, %s154
    %s176 = sphi 0, %s178
    %s179 = sphi 0, %s176
    %s180 = sphi 0, %s179
    %s196 = sphi 0, %s180
    %s202 = sphi 0, %s204
    %s205 = sphi 0, %s202
    %s206 = sphi 0, %s205
    %s222 = sphi 0, %s206
    %s228 = sphi 0, %s230
    %s231 = sphi 0, %s228
    %s232 = sphi 0, %s231
    %s248 = sphi 0, %s232
    %s254 = sphi 0, %s256
    %s257 = sphi 0, %s254
    %s258 = sphi 0, %s257
    %s274 = sphi 0, %s258
    %s280 = sphi 0, %s282
    %s283 = sphi 0, %s280
    %s284 = sphi 0, %s283
    %s300 = sphi 0, %s284
    %s306 = sphi 0, %s308
    %s309 = sphi 0, %s306
    %s310 = sphi 0, %s309
    %s326 = sphi 0, %s310
    %s332 = sphi 0, %s334
    %s335 = sphi 0, %s332
    %s336 = sphi 0, %s335
    %s352 = sphi 0, %s336
    %s358 = sphi 0, %s360
    %s361 = sphi 0, %s358
    %s362 = sphi 0, %s361
    %s378 = sphi 0, %s362
    %s384 = sphi 0, %s386
    %s387 = sphi 0, %s384
    %s388 = sphi 0, %s387
    %s404 = sphi 0, %s388
    %s408 = sphi 0, %s408
    %s410 = sphi 0, %s408
    %s411 = sphi 0, %s410
    %s425 = sphi 0, %s411
    %s429 = sphi 0, %s429
    %s431 = sphi 0, %s429
    %s432 = sphi 0, %s431
    %s446 = sphi 0, %s432
    %s450 = sphi 0, %s450
    %s452 = sphi 0, %s450
    %s453 = sphi 0, %s452
    %s467 = sphi 0, %s453
    %s471 = sphi 0, %s471
    %s473 = sphi 0, %s471
    %s474 = sphi 0, %s473
    %s488 = sphi 0, %s474
    %s492 = sphi 0, %s492
    %s494 = sphi 0, %s492
    %s495 = sphi 0, %s494
    %s509 = sphi 0, %s495
  $region4: #{mints_pallas_forward.1} parent=0 // loop_header_branch
    %28 = sbr.rel (%p26) target = $region8
  $region5: #{mints_pallas_forward.1} parent=0 // loop_body
    %s30 = ssub.s32 %s25, 1
    %s31 = ssub.s32 %s25, 2
    %s32 = sadd.s32 %s25, 1
    %s34 = sadd.s32 %s33, 1
    %p37 = scmp.eq.s32.totalorder %s25, 1
    %p38 = scmp.ne.s32.totalorder %s33, %s35
    %p39 = scmp.eq.s32.totalorder %s25, 0
    %p40 = por %p38, %p39
    %p41 = scmp.ne.s32.totalorder %s33, %s35
    %p42 = scmp.eq.s32.totalorder %s30, 1
    %p43 = por %p41, %p42
    %p44 = scmp.ne.s32.totalorder %s35, %s36
    %p45 = scmp.eq.s32.totalorder %s30, 0
    %p46 = por %p44, %p45
    %p47 = scmp.ne.s32.totalorder %s35, %s36
    %p48 = scmp.eq.s32.totalorder %s31, 1
    %p49 = por %p47, %p48
    %p51 = scmp.ne.s32.totalorder %s36, %s50
    %p52 = scmp.eq.s32.totalorder %s31, 0
    %p53 = por %p51, %p52
    %s55 = sadd.s32 %s54, 1
    %p58 = scmp.eq.s32.totalorder %s25, 1
    %p59 = scmp.ne.s32.totalorder %s54, %s56
    %p60 = scmp.eq.s32.totalorder %s25, 0
    %p61 = por %p59, %p60
    %p62 = scmp.ne.s32.totalorder %s54, %s56
    %p63 = scmp.eq.s32.totalorder %s30, 1
    %p64 = por %p62, %p63
    %p65 = scmp.ne.s32.totalorder %s56, %s57
    %p66 = scmp.eq.s32.totalorder %s30, 0
    %p67 = por %p65, %p66
    %p68 = scmp.ne.s32.totalorder %s56, %s57
    %p69 = scmp.eq.s32.totalorder %s31, 1
    %p70 = por %p68, %p69
    %p72 = scmp.ne.s32.totalorder %s57, %s71
    %p73 = scmp.eq.s32.totalorder %s31, 0
    %p74 = por %p72, %p73
    %s76 = sadd.s32 %s75, 1
    %p79 = scmp.eq.s32.totalorder %s25, 1
    %p80 = scmp.ne.s32.totalorder %s75, %s77
    %p81 = scmp.eq.s32.totalorder %s25, 0
    %p82 = por %p80, %p81
    %p83 = scmp.ne.s32.totalorder %s75, %s77
    %p84 = scmp.eq.s32.totalorder %s30, 1
    %p85 = por %p83, %p84
    %p86 = scmp.ne.s32.totalorder %s77, %s78
    %p87 = scmp.eq.s32.totalorder %s30, 0
    %p88 = por %p86, %p87
    %p89 = scmp.ne.s32.totalorder %s77, %s78
    %p90 = scmp.eq.s32.totalorder %s31, 1
    %p91 = por %p89, %p90
    %p93 = scmp.ne.s32.totalorder %s78, %s92
    %p94 = scmp.eq.s32.totalorder %s31, 0
    %p95 = por %p93, %p94
    %s96 = ssub.s32 %s25, %s32
    %p97 = scmp.eq.s32.totalorder %s96, 0
    %s99 = sadd.s32 %s98, 1
    %s100 = scalar_select %p97, %s98, %s99
    %p103 = pneg %p97
    %p104 = scmp.eq.s32.totalorder %s25, 1
    %p105 = por %p103, %p104
    %p106 = scmp.ne.s32.totalorder %s98, %s101
    %p107 = scmp.eq.s32.totalorder %s25, 0
    %p108 = por %p106, %p107
    %p109 = scmp.ne.s32.totalorder %s98, %s101
    %p110 = scmp.eq.s32.totalorder %s30, 1
    %p111 = por %p109, %p110
    %p112 = scmp.ne.s32.totalorder %s101, %s102
    %p113 = scmp.eq.s32.totalorder %s30, 0
    %p114 = por %p112, %p113
    %p115 = scmp.ne.s32.totalorder %s101, %s102
    %p116 = scmp.eq.s32.totalorder %s31, 1
    %p117 = por %p115, %p116
    %p119 = scmp.ne.s32.totalorder %s102, %s118
    %p120 = scmp.eq.s32.totalorder %s31, 0
    %p121 = por %p119, %p120
    %s122 = ssub.s32 %s25, %s32
    %p123 = scmp.eq.s32.totalorder %s122, 0
    %s125 = sadd.s32 %s124, 1
    %s126 = scalar_select %p123, %s124, %s125
    %p129 = pneg %p123
    %p130 = scmp.eq.s32.totalorder %s25, 1
    %p131 = por %p129, %p130
    %p132 = scmp.ne.s32.totalorder %s124, %s127
    %p133 = scmp.eq.s32.totalorder %s25, 0
    %p134 = por %p132, %p133
    %p135 = scmp.ne.s32.totalorder %s124, %s127
    %p136 = scmp.eq.s32.totalorder %s30, 1
    %p137 = por %p135, %p136
    %p138 = scmp.ne.s32.totalorder %s127, %s128
    %p139 = scmp.eq.s32.totalorder %s30, 0
    %p140 = por %p138, %p139
    %p141 = scmp.ne.s32.totalorder %s127, %s128
    %p142 = scmp.eq.s32.totalorder %s31, 1
    %p143 = por %p141, %p142
    %p145 = scmp.ne.s32.totalorder %s128, %s144
    %p146 = scmp.eq.s32.totalorder %s31, 0
    %p147 = por %p145, %p146
    %s148 = ssub.s32 %s25, %s32
    %p149 = scmp.eq.s32.totalorder %s148, 0
    %s151 = sadd.s32 %s150, 1
    %s152 = scalar_select %p149, %s150, %s151
    %p155 = pneg %p149
    %p156 = scmp.eq.s32.totalorder %s25, 1
    %p157 = por %p155, %p156
    %p158 = scmp.ne.s32.totalorder %s150, %s153
    %p159 = scmp.eq.s32.totalorder %s25, 0
    %p160 = por %p158, %p159
    %p161 = scmp.ne.s32.totalorder %s150, %s153
    %p162 = scmp.eq.s32.totalorder %s30, 1
    %p163 = por %p161, %p162
    %p164 = scmp.ne.s32.totalorder %s153, %s154
    %p165 = scmp.eq.s32.totalorder %s30, 0
    %p166 = por %p164, %p165
    %p167 = scmp.ne.s32.totalorder %s153, %s154
    %p168 = scmp.eq.s32.totalorder %s31, 1
    %p169 = por %p167, %p168
    %p171 = scmp.ne.s32.totalorder %s154, %s170
    %p172 = scmp.eq.s32.totalorder %s31, 0
    %p173 = por %p171, %p172
    %s174 = ssub.s32 %s25, %s32
    %p175 = scmp.eq.s32.totalorder %s174, 0
    %s177 = sadd.s32 %s176, 1
    %s178 = scalar_select %p175, %s176, %s177
    %p181 = pneg %p175
    %p182 = scmp.eq.s32.totalorder %s25, 1
    %p183 = por %p181, %p182
    %p184 = scmp.ne.s32.totalorder %s176, %s179
    %p185 = scmp.eq.s32.totalorder %s25, 0
    %p186 = por %p184, %p185
    %p187 = scmp.ne.s32.totalorder %s176, %s179
    %p188 = scmp.eq.s32.totalorder %s30, 1
    %p189 = por %p187, %p188
    %p190 = scmp.ne.s32.totalorder %s179, %s180
    %p191 = scmp.eq.s32.totalorder %s30, 0
    %p192 = por %p190, %p191
    %p193 = scmp.ne.s32.totalorder %s179, %s180
    %p194 = scmp.eq.s32.totalorder %s31, 1
    %p195 = por %p193, %p194
    %p197 = scmp.ne.s32.totalorder %s180, %s196
    %p198 = scmp.eq.s32.totalorder %s31, 0
    %p199 = por %p197, %p198
    %s200 = ssub.s32 %s25, %s32
    %p201 = scmp.eq.s32.totalorder %s200, 0
    %s203 = sadd.s32 %s202, 1
    %s204 = scalar_select %p201, %s202, %s203
    %p207 = pneg %p201
    %p208 = scmp.eq.s32.totalorder %s25, 1
    %p209 = por %p207, %p208
    %p210 = scmp.ne.s32.totalorder %s202, %s205
    %p211 = scmp.eq.s32.totalorder %s25, 0
    %p212 = por %p210, %p211
    %p213 = scmp.ne.s32.totalorder %s202, %s205
    %p214 = scmp.eq.s32.totalorder %s30, 1
    %p215 = por %p213, %p214
    %p216 = scmp.ne.s32.totalorder %s205, %s206
    %p217 = scmp.eq.s32.totalorder %s30, 0
    %p218 = por %p216, %p217
    %p219 = scmp.ne.s32.totalorder %s205, %s206
    %p220 = scmp.eq.s32.totalorder %s31, 1
    %p221 = por %p219, %p220
    %p223 = scmp.ne.s32.totalorder %s206, %s222
    %p224 = scmp.eq.s32.totalorder %s31, 0
    %p225 = por %p223, %p224
    %s226 = ssub.s32 %s25, %s32
    %p227 = scmp.eq.s32.totalorder %s226, 0
    %s229 = sadd.s32 %s228, 1
    %s230 = scalar_select %p227, %s228, %s229
    %p233 = pneg %p227
    %p234 = scmp.eq.s32.totalorder %s25, 1
    %p235 = por %p233, %p234
    %p236 = scmp.ne.s32.totalorder %s228, %s231
    %p237 = scmp.eq.s32.totalorder %s25, 0
    %p238 = por %p236, %p237
    %p239 = scmp.ne.s32.totalorder %s228, %s231
    %p240 = scmp.eq.s32.totalorder %s30, 1
    %p241 = por %p239, %p240
    %p242 = scmp.ne.s32.totalorder %s231, %s232
    %p243 = scmp.eq.s32.totalorder %s30, 0
    %p244 = por %p242, %p243
    %p245 = scmp.ne.s32.totalorder %s231, %s232
    %p246 = scmp.eq.s32.totalorder %s31, 1
    %p247 = por %p245, %p246
    %p249 = scmp.ne.s32.totalorder %s232, %s248
    %p250 = scmp.eq.s32.totalorder %s31, 0
    %p251 = por %p249, %p250
    %s252 = ssub.s32 %s25, %s32
    %p253 = scmp.eq.s32.totalorder %s252, 0
    %s255 = sadd.s32 %s254, 1
    %s256 = scalar_select %p253, %s254, %s255
    %p259 = pneg %p253
    %p260 = scmp.eq.s32.totalorder %s25, 1
    %p261 = por %p259, %p260
    %p262 = scmp.ne.s32.totalorder %s254, %s257
    %p263 = scmp.eq.s32.totalorder %s25, 0
    %p264 = por %p262, %p263
    %p265 = scmp.ne.s32.totalorder %s254, %s257
    %p266 = scmp.eq.s32.totalorder %s30, 1
    %p267 = por %p265, %p266
    %p268 = scmp.ne.s32.totalorder %s257, %s258
    %p269 = scmp.eq.s32.totalorder %s30, 0
    %p270 = por %p268, %p269
    %p271 = scmp.ne.s32.totalorder %s257, %s258
    %p272 = scmp.eq.s32.totalorder %s31, 1
    %p273 = por %p271, %p272
    %p275 = scmp.ne.s32.totalorder %s258, %s274
    %p276 = scmp.eq.s32.totalorder %s31, 0
    %p277 = por %p275, %p276
    %s278 = ssub.s32 %s25, %s32
    %p279 = scmp.eq.s32.totalorder %s278, 0
    %s281 = sadd.s32 %s280, 1
    %s282 = scalar_select %p279, %s280, %s281
    %p285 = pneg %p279
    %p286 = scmp.eq.s32.totalorder %s25, 1
    %p287 = por %p285, %p286
    %p288 = scmp.ne.s32.totalorder %s280, %s283
    %p289 = scmp.eq.s32.totalorder %s25, 0
    %p290 = por %p288, %p289
    %p291 = scmp.ne.s32.totalorder %s280, %s283
    %p292 = scmp.eq.s32.totalorder %s30, 1
    %p293 = por %p291, %p292
    %p294 = scmp.ne.s32.totalorder %s283, %s284
    %p295 = scmp.eq.s32.totalorder %s30, 0
    %p296 = por %p294, %p295
    %p297 = scmp.ne.s32.totalorder %s283, %s284
    %p298 = scmp.eq.s32.totalorder %s31, 1
    %p299 = por %p297, %p298
    %p301 = scmp.ne.s32.totalorder %s284, %s300
    %p302 = scmp.eq.s32.totalorder %s31, 0
    %p303 = por %p301, %p302
    %s304 = ssub.s32 %s25, %s32
    %p305 = scmp.eq.s32.totalorder %s304, 0
    %s307 = sadd.s32 %s306, 1
    %s308 = scalar_select %p305, %s306, %s307
    %p311 = pneg %p305
    %p312 = scmp.eq.s32.totalorder %s25, 1
    %p313 = por %p311, %p312
    %p314 = scmp.ne.s32.totalorder %s306, %s309
    %p315 = scmp.eq.s32.totalorder %s25, 0
    %p316 = por %p314, %p315
    %p317 = scmp.ne.s32.totalorder %s306, %s309
    %p318 = scmp.eq.s32.totalorder %s30, 1
    %p319 = por %p317, %p318
    %p320 = scmp.ne.s32.totalorder %s309, %s310
    %p321 = scmp.eq.s32.totalorder %s30, 0
    %p322 = por %p320, %p321
    %p323 = scmp.ne.s32.totalorder %s309, %s310
    %p324 = scmp.eq.s32.totalorder %s31, 1
    %p325 = por %p323, %p324
    %p327 = scmp.ne.s32.totalorder %s310, %s326
    %p328 = scmp.eq.s32.totalorder %s31, 0
    %p329 = por %p327, %p328
    %s330 = ssub.s32 %s25, %s32
    %p331 = scmp.eq.s32.totalorder %s330, 0
    %s333 = sadd.s32 %s332, 1
    %s334 = scalar_select %p331, %s332, %s333
    %p337 = pneg %p331
    %p338 = scmp.eq.s32.totalorder %s25, 1
    %p339 = por %p337, %p338
    %p340 = scmp.ne.s32.totalorder %s332, %s335
    %p341 = scmp.eq.s32.totalorder %s25, 0
    %p342 = por %p340, %p341
    %p343 = scmp.ne.s32.totalorder %s332, %s335
    %p344 = scmp.eq.s32.totalorder %s30, 1
    %p345 = por %p343, %p344
    %p346 = scmp.ne.s32.totalorder %s335, %s336
    %p347 = scmp.eq.s32.totalorder %s30, 0
    %p348 = por %p346, %p347
    %p349 = scmp.ne.s32.totalorder %s335, %s336
    %p350 = scmp.eq.s32.totalorder %s31, 1
    %p351 = por %p349, %p350
    %p353 = scmp.ne.s32.totalorder %s336, %s352
    %p354 = scmp.eq.s32.totalorder %s31, 0
    %p355 = por %p353, %p354
    %s356 = ssub.s32 %s25, %s32
    %p357 = scmp.eq.s32.totalorder %s356, 0
    %s359 = sadd.s32 %s358, 1
    %s360 = scalar_select %p357, %s358, %s359
    %p363 = pneg %p357
    %p364 = scmp.eq.s32.totalorder %s25, 1
    %p365 = por %p363, %p364
    %p366 = scmp.ne.s32.totalorder %s358, %s361
    %p367 = scmp.eq.s32.totalorder %s25, 0
    %p368 = por %p366, %p367
    %p369 = scmp.ne.s32.totalorder %s358, %s361
    %p370 = scmp.eq.s32.totalorder %s30, 1
    %p371 = por %p369, %p370
    %p372 = scmp.ne.s32.totalorder %s361, %s362
    %p373 = scmp.eq.s32.totalorder %s30, 0
    %p374 = por %p372, %p373
    %p375 = scmp.ne.s32.totalorder %s361, %s362
    %p376 = scmp.eq.s32.totalorder %s31, 1
    %p377 = por %p375, %p376
    %p379 = scmp.ne.s32.totalorder %s362, %s378
    %p380 = scmp.eq.s32.totalorder %s31, 0
    %p381 = por %p379, %p380
    %s382 = ssub.s32 %s25, %s32
    %p383 = scmp.eq.s32.totalorder %s382, 0
    %s385 = sadd.s32 %s384, 1
    %s386 = scalar_select %p383, %s384, %s385
    %p389 = pneg %p383
    %p390 = scmp.eq.s32.totalorder %s25, 1
    %p391 = por %p389, %p390
    %p392 = scmp.ne.s32.totalorder %s384, %s387
    %p393 = scmp.eq.s32.totalorder %s25, 0
    %p394 = por %p392, %p393
    %p395 = scmp.ne.s32.totalorder %s384, %s387
    %p396 = scmp.eq.s32.totalorder %s30, 1
    %p397 = por %p395, %p396
    %p398 = scmp.ne.s32.totalorder %s387, %s388
    %p399 = scmp.eq.s32.totalorder %s30, 0
    %p400 = por %p398, %p399
    %p401 = scmp.ne.s32.totalorder %s387, %s388
    %p402 = scmp.eq.s32.totalorder %s31, 1
    %p403 = por %p401, %p402
    %p405 = scmp.ne.s32.totalorder %s388, %s404
    %p406 = scmp.eq.s32.totalorder %s31, 0
    %p407 = por %p405, %p406
    %s409 = sadd.s32 %s408, 1
    %p412 = scmp.eq.s32.totalorder %s25, 1
    %p413 = scmp.ne.s32.totalorder %s408, %s410
    %p414 = scmp.eq.s32.totalorder %s25, 0
    %p415 = por %p413, %p414
    %p416 = scmp.ne.s32.totalorder %s408, %s410
    %p417 = scmp.eq.s32.totalorder %s30, 1
    %p418 = por %p416, %p417
    %p419 = scmp.ne.s32.totalorder %s410, %s411
    %p420 = scmp.eq.s32.totalorder %s30, 0
    %p421 = por %p419, %p420
    %p422 = scmp.ne.s32.totalorder %s410, %s411
    %p423 = scmp.eq.s32.totalorder %s31, 1
    %p424 = por %p422, %p423
    %p426 = scmp.ne.s32.totalorder %s411, %s425
    %p427 = scmp.eq.s32.totalorder %s31, 0
    %p428 = por %p426, %p427
    %s430 = sadd.s32 %s429, 1
    %p433 = scmp.eq.s32.totalorder %s25, 1
    %p434 = scmp.ne.s32.totalorder %s429, %s431
    %p435 = scmp.eq.s32.totalorder %s25, 0
    %p436 = por %p434, %p435
    %p437 = scmp.ne.s32.totalorder %s429, %s431
    %p438 = scmp.eq.s32.totalorder %s30, 1
    %p439 = por %p437, %p438
    %p440 = scmp.ne.s32.totalorder %s431, %s432
    %p441 = scmp.eq.s32.totalorder %s30, 0
    %p442 = por %p440, %p441
    %p443 = scmp.ne.s32.totalorder %s431, %s432
    %p444 = scmp.eq.s32.totalorder %s31, 1
    %p445 = por %p443, %p444
    %p447 = scmp.ne.s32.totalorder %s432, %s446
    %p448 = scmp.eq.s32.totalorder %s31, 0
    %p449 = por %p447, %p448
    %s451 = sadd.s32 %s450, 1
    %p454 = scmp.eq.s32.totalorder %s25, 1
    %p455 = scmp.ne.s32.totalorder %s450, %s452
    %p456 = scmp.eq.s32.totalorder %s25, 0
    %p457 = por %p455, %p456
    %p458 = scmp.ne.s32.totalorder %s450, %s452
    %p459 = scmp.eq.s32.totalorder %s30, 1
    %p460 = por %p458, %p459
    %p461 = scmp.ne.s32.totalorder %s452, %s453
    %p462 = scmp.eq.s32.totalorder %s30, 0
    %p463 = por %p461, %p462
    %p464 = scmp.ne.s32.totalorder %s452, %s453
    %p465 = scmp.eq.s32.totalorder %s31, 1
    %p466 = por %p464, %p465
    %p468 = scmp.ne.s32.totalorder %s453, %s467
    %p469 = scmp.eq.s32.totalorder %s31, 0
    %p470 = por %p468, %p469
    %s472 = sadd.s32 %s471, 1
    %p475 = scmp.eq.s32.totalorder %s25, 1
    %p476 = scmp.ne.s32.totalorder %s471, %s473
    %p477 = scmp.eq.s32.totalorder %s25, 0
    %p478 = por %p476, %p477
    %p479 = scmp.ne.s32.totalorder %s471, %s473
    %p480 = scmp.eq.s32.totalorder %s30, 1
    %p481 = por %p479, %p480
    %p482 = scmp.ne.s32.totalorder %s473, %s474
    %p483 = scmp.eq.s32.totalorder %s30, 0
    %p484 = por %p482, %p483
    %p485 = scmp.ne.s32.totalorder %s473, %s474
    %p486 = scmp.eq.s32.totalorder %s31, 1
    %p487 = por %p485, %p486
    %p489 = scmp.ne.s32.totalorder %s474, %s488
    %p490 = scmp.eq.s32.totalorder %s31, 0
    %p491 = por %p489, %p490
    %s493 = sadd.s32 %s492, 1
    %p496 = scmp.eq.s32.totalorder %s25, 1
    %p497 = scmp.ne.s32.totalorder %s492, %s494
    %p498 = scmp.eq.s32.totalorder %s25, 0
    %p499 = por %p497, %p498
    %p500 = scmp.ne.s32.totalorder %s492, %s494
    %p501 = scmp.eq.s32.totalorder %s30, 1
    %p502 = por %p500, %p501
    %p503 = scmp.ne.s32.totalorder %s494, %s495
    %p504 = scmp.eq.s32.totalorder %s30, 0
    %p505 = por %p503, %p504
    %p506 = scmp.ne.s32.totalorder %s494, %s495
    %p507 = scmp.eq.s32.totalorder %s31, 1
    %p508 = por %p506, %p507
    %p510 = scmp.ne.s32.totalorder %s495, %s509
    %p511 = scmp.eq.s32.totalorder %s31, 0
    %p512 = por %p510, %p511
    %p513 = scmp.le.s32.totalorder 1, %s25
    %p514 = scmp.lt.s32.totalorder %s25, 3
    %p515 = pnand %p513, %p514
    %p516 = pneg %p515
    // Predicated region
    $region9: #{mints_pallas_forward.1} parent=5 // pred_check
      _
    $region10: #{mints_pallas_forward.1} parent=5 // pred_check_branch
      %518 = sbr.rel (%p515) target = $region12
    $region11: #{mints_pallas_forward.1} parent=5 // pred_region
      %s519 = ssub.s32 %s25, 1
      // Predicated region
      $region13: #{mints_pallas_forward.1} parent=11 // pred_check
        %p520 = pneg %p46
      $region14: #{mints_pallas_forward.1} parent=11 // pred_check_branch
        %522 = sbr.rel (%p520) target = $region16
      $region15: #{mints_pallas_forward.1} parent=11 // pred_region
        _
      $region16: #{mints_pallas_forward.1} parent=11 // pred_fallthru
        _
      // Predicated region
      $region17: #{mints_pallas_forward.1} parent=11 // pred_check
        %p523 = pneg %p67
      $region18: #{mints_pallas_forward.1} parent=11 // pred_check_branch
        %525 = sbr.rel (%p523) target = $region20
      $region19: #{mints_pallas_forward.1} parent=11 // pred_region
        _
      $region20: #{mints_pallas_forward.1} parent=11 // pred_fallthru
        _
      // Predicated region
      $region21: #{mints_pallas_forward.1} parent=11 // pred_check
        %p526 = pneg %p88
      $region22: #{mints_pallas_forward.1} parent=11 // pred_check_branch
        %528 = sbr.rel (%p526) target = $region24
      $region23: #{mints_pallas_forward.1} parent=11 // pred_region
        _
      $region24: #{mints_pallas_forward.1} parent=11 // pred_fallthru
        _
      // Predicated region
      $region25: #{mints_pallas_forward.1} parent=11 // pred_check
        %p529 = pneg %p421
      $region26: #{mints_pallas_forward.1} parent=11 // pred_check_branch
        %531 = sbr.rel (%p529) target = $region28
      $region27: #{mints_pallas_forward.1} parent=11 // pred_region
        _
      $region28: #{mints_pallas_forward.1} parent=11 // pred_fallthru
        _
      // Predicated region
      $region29: #{mints_pallas_forward.1} parent=11 // pred_check
        %p532 = pneg %p442
      $region30: #{mints_pallas_forward.1} parent=11 // pred_check_branch
        %534 = sbr.rel (%p532) target = $region32
      $region31: #{mints_pallas_forward.1} parent=11 // pred_region
        _
      $region32: #{mints_pallas_forward.1} parent=11 // pred_fallthru
        _
      // Predicated region
      $region33: #{mints_pallas_forward.1} parent=11 // pred_check
        %p535 = pneg %p463
      $region34: #{mints_pallas_forward.1} parent=11 // pred_check_branch
        %537 = sbr.rel (%p535) target = $region36
      $region35: #{mints_pallas_forward.1} parent=11 // pred_region
        _
      $region36: #{mints_pallas_forward.1} parent=11 // pred_fallthru
        _
      // Predicated region
      $region37: #{mints_pallas_forward.1} parent=11 // pred_check
        %p538 = pneg %p484
      $region38: #{mints_pallas_forward.1} parent=11 // pred_check_branch
        %540 = sbr.rel (%p538) target = $region40
      $region39: #{mints_pallas_forward.1} parent=11 // pred_region
        _
      $region40: #{mints_pallas_forward.1} parent=11 // pred_fallthru
        _
    $region12: #{mints_pallas_forward.1} parent=5 // pred_fallthru
      _
    %p541 = scmp.lt.s32.totalorder %s25, 2
    // Predicated region
    $region41: #{mints_pallas_forward.1} parent=5 // pred_check
      %p542 = pneg %p541
    $region42: #{mints_pallas_forward.1} parent=5 // pred_check_branch
      %544 = sbr.rel (%p542) target = $region44
    $region43: #{mints_pallas_forward.1} parent=5 // pred_region
      // Predicated region
      $region45: #{mints_pallas_forward.1} parent=43 // pred_check
        %p545 = pneg %p108
      $region46: #{mints_pallas_forward.1} parent=43 // pred_check_branch
        %547 = sbr.rel (%p545) target = $region48
      $region47: #{mints_pallas_forward.1} parent=43 // pred_region
        %p548 = scmp.lt.s32.totalorder %s25, 1
        %s549 = scalar_select %p548, %s25, 1
        %s550 = smul.addr %s549, 4
        %s551 = smul.addr %s550, 4
        %s552 = scalar_lea.vmem %s3, %s551
      $region48: #{mints_pallas_forward.1} parent=43 // pred_fallthru
        _
      // Predicated region
      $region49: #{mints_pallas_forward.1} parent=43 // pred_check
        %p553 = pneg %p134
      $region50: #{mints_pallas_forward.1} parent=43 // pred_check_branch
        %555 = sbr.rel (%p553) target = $region52
      $region51: #{mints_pallas_forward.1} parent=43 // pred_region
        %p556 = scmp.lt.s32.totalorder %s25, 1
        %s557 = scalar_select %p556, %s25, 1
        %s558 = scalar_lea.vmem %s4, %s557
      $region52: #{mints_pallas_forward.1} parent=43 // pred_fallthru
        _
      // Predicated region
      $region53: #{mints_pallas_forward.1} parent=43 // pred_check
        %p559 = pneg %p160
      $region54: #{mints_pallas_forward.1} parent=43 // pred_check_branch
        %561 = sbr.rel (%p559) target = $region56
      $region55: #{mints_pallas_forward.1} parent=43 // pred_region
        %p562 = scmp.lt.s32.totalorder %s25, 1
        %s563 = scalar_select %p562, %s25, 1
        %s564 = smul.addr %s563, 4
        %s565 = smul.addr %s564, 4
        %s566 = scalar_lea.vmem %s5, %s565
      $region56: #{mints_pallas_forward.1} parent=43 // pred_fallthru
        _
      // Predicated region
      $region57: #{mints_pallas_forward.1} parent=43 // pred_check
        %p567 = pneg %p186
      $region58: #{mints_pallas_forward.1} parent=43 // pred_check_branch
        %569 = sbr.rel (%p567) target = $region60
      $region59: #{mints_pallas_forward.1} parent=43 // pred_region
        %p570 = scmp.lt.s32.totalorder %s25, 1
        %s571 = scalar_select %p570, %s25, 1
        %s572 = scalar_lea.vmem %s6, %s571
      $region60: #{mints_pallas_forward.1} parent=43 // pred_fallthru
        _
      // Predicated region
      $region61: #{mints_pallas_forward.1} parent=43 // pred_check
        %p573 = pneg %p212
      $region62: #{mints_pallas_forward.1} parent=43 // pred_check_branch
        %575 = sbr.rel (%p573) target = $region64
      $region63: #{mints_pallas_forward.1} parent=43 // pred_region
        %p576 = scmp.lt.s32.totalorder %s25, 1
        %s577 = scalar_select %p576, %s25, 1
        %s578 = smul.addr %s577, 4
        %s579 = smul.addr %s578, 4
        %s580 = scalar_lea.vmem %s7, %s579
      $region64: #{mints_pallas_forward.1} parent=43 // pred_fallthru
        _
      // Predicated region
      $region65: #{mints_pallas_forward.1} parent=43 // pred_check
        %p581 = pneg %p238
      $region66: #{mints_pallas_forward.1} parent=43 // pred_check_branch
        %583 = sbr.rel (%p581) target = $region68
      $region67: #{mints_pallas_forward.1} parent=43 // pred_region
        %p584 = scmp.lt.s32.totalorder %s25, 1
        %s585 = scalar_select %p584, %s25, 1
        %s586 = scalar_lea.vmem %s8, %s585
      $region68: #{mints_pallas_forward.1} parent=43 // pred_fallthru
        _
      // Predicated region
      $region69: #{mints_pallas_forward.1} parent=43 // pred_check
        %p587 = pneg %p264
      $region70: #{mints_pallas_forward.1} parent=43 // pred_check_branch
        %589 = sbr.rel (%p587) target = $region72
      $region71: #{mints_pallas_forward.1} parent=43 // pred_region
        %p590 = scmp.lt.s32.totalorder %s25, 1
        %s591 = scalar_select %p590, %s25, 1
        %s592 = smul.addr %s591, 16
        %s593 = smul.addr %s592, 4
        %s594 = scalar_lea.vmem %s9, %s593
      $region72: #{mints_pallas_forward.1} parent=43 // pred_fallthru
        _
      // Predicated region
      $region73: #{mints_pallas_forward.1} parent=43 // pred_check
        %p595 = pneg %p290
      $region74: #{mints_pallas_forward.1} parent=43 // pred_check_branch
        %597 = sbr.rel (%p595) target = $region76
      $region75: #{mints_pallas_forward.1} parent=43 // pred_region
        %p598 = scmp.lt.s32.totalorder %s25, 1
        %s599 = scalar_select %p598, %s25, 1
        %s600 = scalar_lea.vmem %s10, %s599
      $region76: #{mints_pallas_forward.1} parent=43 // pred_fallthru
        _
      // Predicated region
      $region77: #{mints_pallas_forward.1} parent=43 // pred_check
        %p601 = pneg %p316
      $region78: #{mints_pallas_forward.1} parent=43 // pred_check_branch
        %603 = sbr.rel (%p601) target = $region80
      $region79: #{mints_pallas_forward.1} parent=43 // pred_region
        %p604 = scmp.lt.s32.totalorder %s25, 1
        %s605 = scalar_select %p604, %s25, 1
        %s606 = scalar_lea.vmem %s11, %s605
      $region80: #{mints_pallas_forward.1} parent=43 // pred_fallthru
        _
      // Predicated region
      $region81: #{mints_pallas_forward.1} parent=43 // pred_check
        %p607 = pneg %p342
      $region82: #{mints_pallas_forward.1} parent=43 // pred_check_branch
        %609 = sbr.rel (%p607) target = $region84
      $region83: #{mints_pallas_forward.1} parent=43 // pred_region
        %p610 = scmp.lt.s32.totalorder %s25, 1
        %s611 = scalar_select %p610, %s25, 1
        %s612 = scalar_lea.vmem %s12, %s611
      $region84: #{mints_pallas_forward.1} parent=43 // pred_fallthru
        _
      // Predicated region
      $region85: #{mints_pallas_forward.1} parent=43 // pred_check
        %p613 = pneg %p368
      $region86: #{mints_pallas_forward.1} parent=43 // pred_check_branch
        %615 = sbr.rel (%p613) target = $region88
      $region87: #{mints_pallas_forward.1} parent=43 // pred_region
        %p616 = scmp.lt.s32.totalorder %s25, 1
        %s617 = scalar_select %p616, %s25, 1
        %s618 = scalar_lea.vmem %s13, %s617
      $region88: #{mints_pallas_forward.1} parent=43 // pred_fallthru
        _
      // Predicated region
      $region89: #{mints_pallas_forward.1} parent=43 // pred_check
        %p619 = pneg %p394
      $region90: #{mints_pallas_forward.1} parent=43 // pred_check_branch
        %621 = sbr.rel (%p619) target = $region92
      $region91: #{mints_pallas_forward.1} parent=43 // pred_region
        %p622 = scmp.lt.s32.totalorder %s25, 1
        %s623 = scalar_select %p622, %s25, 1
        %s624 = scalar_lea.vmem %s14, %s623
      $region92: #{mints_pallas_forward.1} parent=43 // pred_fallthru
        _
    $region44: #{mints_pallas_forward.1} parent=5 // pred_fallthru
      _
    %p625 = scmp.le.s32.totalorder 1, %s25
    %p626 = scmp.lt.s32.totalorder %s25, 3
    %p627 = pnand %p625, %p626
    %p628 = pneg %p627
    // Predicated region
    $region93: #{mints_pallas_forward.1} parent=5 // pred_check
      _
    $region94: #{mints_pallas_forward.1} parent=5 // pred_check_branch
      %630 = sbr.rel (%p627) target = $region96
    $region95: #{mints_pallas_forward.1} parent=5 // pred_region
      %s631 = ssub.s32 %s25, 1
      %p632 = pneg %p46
      %p633 = pneg %p43
      %p634 = pneg %p67
      %p635 = pneg %p64
      %p636 = pneg %p88
      %p637 = pneg %p85
      %p638 = scmp.lt.s32.totalorder %s30, 1
      %s639 = scalar_select %p638, %s30, 1
      %s640 = smul.addr %s639, 4
      %s641 = smul.addr %s640, 4
      %s642 = scalar_lea.vmem %s3, %s641
      %p643 = pneg %p114
      %p644 = pneg %p111
      %p645 = scmp.lt.s32.totalorder %s30, 1
      %s646 = scalar_select %p645, %s30, 1
      %s647 = scalar_lea.vmem %s4, %s646
      %p648 = pneg %p140
      %p649 = pneg %p137
      %p650 = scmp.lt.s32.totalorder %s30, 1
      %s651 = scalar_select %p650, %s30, 1
      %s652 = smul.addr %s651, 4
      %s653 = smul.addr %s652, 4
      %s654 = scalar_lea.vmem %s5, %s653
      %p655 = pneg %p166
      %p656 = pneg %p163
      %p657 = scmp.lt.s32.totalorder %s30, 1
      %s658 = scalar_select %p657, %s30, 1
      %s659 = scalar_lea.vmem %s6, %s658
      %p660 = pneg %p192
      %p661 = pneg %p189
      %p662 = scmp.lt.s32.totalorder %s30, 1
      %s663 = scalar_select %p662, %s30, 1
      %s664 = smul.addr %s663, 4
      %s665 = smul.addr %s664, 4
      %s666 = scalar_lea.vmem %s7, %s665
      %p667 = pneg %p218
      %p668 = pneg %p215
      %p669 = scmp.lt.s32.totalorder %s30, 1
      %s670 = scalar_select %p669, %s30, 1
      %s671 = scalar_lea.vmem %s8, %s670
      %p672 = pneg %p244
      %p673 = pneg %p241
      %p674 = scmp.lt.s32.totalorder %s30, 1
      %s675 = scalar_select %p674, %s30, 1
      %s676 = smul.addr %s675, 16
      %s677 = smul.addr %s676, 4
      %s678 = scalar_lea.vmem %s9, %s677
      %p679 = pneg %p270
      %p680 = pneg %p267
      %p681 = scmp.lt.s32.totalorder %s30, 1
      %s682 = scalar_select %p681, %s30, 1
      %s683 = scalar_lea.vmem %s10, %s682
      %p684 = pneg %p296
      %p685 = pneg %p293
      %p686 = scmp.lt.s32.totalorder %s30, 1
      %s687 = scalar_select %p686, %s30, 1
      %s688 = scalar_lea.vmem %s11, %s687
      %p689 = pneg %p322
      %p690 = pneg %p319
      %p691 = scmp.lt.s32.totalorder %s30, 1
      %s692 = scalar_select %p691, %s30, 1
      %s693 = scalar_lea.vmem %s12, %s692
      %p694 = pneg %p348
      %p695 = pneg %p345
      %p696 = scmp.lt.s32.totalorder %s30, 1
      %s697 = scalar_select %p696, %s30, 1
      %s698 = scalar_lea.vmem %s13, %s697
      %p699 = pneg %p374
      %p700 = pneg %p371
      %p701 = scmp.lt.s32.totalorder %s30, 1
      %s702 = scalar_select %p701, %s30, 1
      %s703 = scalar_lea.vmem %s14, %s702
      %p704 = pneg %p400
      %p705 = pneg %p397
      %p706 = pneg %p421
      %p707 = pneg %p418
      %p708 = pneg %p442
      %p709 = pneg %p439
      %p710 = pneg %p463
      %p711 = pneg %p460
      %p712 = pneg %p484
      %p713 = pneg %p481
      %p714 = pneg %p505
      %p715 = pneg %p502
      %p716 = scmp.lt.s32.totalorder %s30, 1
      %s717 = scalar_select %p716, %s30, 1
      %s718 = smul.addr %s717, 4
      %s719 = smul.addr %s718, 4
      %s720 = scalar_lea.vmem %s3, %s719
      %p721 = scmp.lt.s32.totalorder %s30, 1
      %s722 = scalar_select %p721, %s30, 1
      %s723 = scalar_lea.vmem %s4, %s722
      %p724 = scmp.lt.s32.totalorder %s30, 1
      %s725 = scalar_select %p724, %s30, 1
      %s726 = smul.addr %s725, 4
      %s727 = smul.addr %s726, 4
      %s728 = scalar_lea.vmem %s5, %s727
      %p729 = scmp.lt.s32.totalorder %s30, 1
      %s730 = scalar_select %p729, %s30, 1
      %s731 = scalar_lea.vmem %s6, %s730
      %p732 = scmp.lt.s32.totalorder %s30, 1
      %s733 = scalar_select %p732, %s30, 1
      %s734 = smul.addr %s733, 4
      %s735 = smul.addr %s734, 4
      %s736 = scalar_lea.vmem %s7, %s735
      %p737 = scmp.lt.s32.totalorder %s30, 1
      %s738 = scalar_select %p737, %s30, 1
      %s739 = scalar_lea.vmem %s8, %s738
      %p740 = scmp.lt.s32.totalorder %s30, 1
      %s741 = scalar_select %p740, %s30, 1
      %s742 = smul.addr %s741, 16
      %s743 = smul.addr %s742, 4
      %s744 = scalar_lea.vmem %s9, %s743
      %p745 = scmp.lt.s32.totalorder %s30, 1
      %s746 = scalar_select %p745, %s30, 1
      %s747 = scalar_lea.vmem %s10, %s746
      %p748 = scmp.lt.s32.totalorder %s30, 1
      %s749 = scalar_select %p748, %s30, 1
      %s750 = scalar_lea.vmem %s11, %s749
      %p751 = scmp.lt.s32.totalorder %s30, 1
      %s752 = scalar_select %p751, %s30, 1
      %s753 = scalar_lea.vmem %s12, %s752
      %p754 = scmp.lt.s32.totalorder %s30, 1
      %s755 = scalar_select %p754, %s30, 1
      %s756 = scalar_lea.vmem %s13, %s755
      %p757 = scmp.lt.s32.totalorder %s30, 1
      %s758 = scalar_select %p757, %s30, 1
      %s759 = scalar_lea.vmem %s14, %s758
      %p761 = scmp.eq.s32.totalorder %s30, 0
      // Predicated region
      $region97: #{mints_pallas_forward.1} parent=95 // pred_check
        %p762 = pneg %p761
      $region98: #{mints_pallas_forward.1} parent=95 // pred_check_branch
        %764 = sbr.rel (%p762) target = $region100
      $region99: #{mints_pallas_forward.1} parent=95 // pred_region
        %v765 = vld [vmem:[%s0] sm:$0xff]
        %v766 = vld [vmem:[%s0 + $0x8] sm:$0xff]
        %v767 = vld [vmem:[%s1] sm:$0xf]
        %v768 = vpack.c.bf16 %v766, %v765
        %v769 = vld [vmem:[%s2] sm:$0xff]
        %v770 = vld [vmem:[%s2 + $0x8] sm:$0xff]
        %vm771 = vcmask 64512
        %v773 = vsel %vm771, %v768, 0
        %vm775 = vcmask 1043456
        %v777 = vsel %vm775, %v767, 0
        %779 = vmatprep.subr.bf16.mxu0 0
        %780 = vmatpush1.bf16.msra.mxu0 %v777
        %781 = vmatprep.subr.bf16.mxu0 0
        %782 = vmatpush1.bf16.msra.mxu0 0
        %783 = vmatprep.subr.bf16.mxu0 0
        %784 = vmatpush1.bf16.msra.mxu0 0
        %785 = vmatprep.subr.bf16.mxu0 0
        %786 = vmatpush1.bf16.msra.mxu0 0
        %787 = vmatprep.subr.bf16.mxu0 0
        %788 = vmatpush1.bf16.msra.mxu0 0
        %789 = vmatprep.subr.bf16.mxu0 0
        %790 = vmatpush1.bf16.msra.mxu0 0
        %791 = vmatprep.subr.bf16.mxu0 0
        %792 = vmatpush1.bf16.msra.mxu0 0
        %793 = vmatprep.subr.bf16.mxu0 0
        %794 = vmatpush1.bf16.msra.mxu0 0
        %795 = vmatprep.subr.bf16.mxu0 0
        %796 = vmatpush1.bf16.msra.mxu0 0
        %797 = vmatprep.subr.bf16.mxu0 0
        %798 = vmatpush1.bf16.msra.mxu0 0
        %799 = vmatprep.subr.bf16.mxu0 0
        %800 = vmatpush1.bf16.msra.mxu0 0
        %801 = vmatprep.subr.bf16.mxu0 0
        %802 = vmatpush1.bf16.msra.mxu0 0
        %803 = vmatprep.subr.bf16.mxu0 0
        %804 = vmatpush1.bf16.msra.mxu0 0
        %805 = vmatprep.subr.bf16.mxu0 0
        %806 = vmatpush1.bf16.msra.mxu0 0
        %807 = vmatprep.subr.bf16.mxu0 0
        %808 = vmatpush1.bf16.msra.mxu0 0
        %809 = vmatprep.subr.bf16.mxu0 0
        %810 = vmatpush1.bf16.msra.mxu0 0
        %811 = vmatprep.mubr.bf16.mxu0 0
        %812 = vmatmul.mubr.bf16.gmra.mrb[0].mxu0 %v773
        %v813 = vpop.f32.mrb[0].mxu0
        %v814 = vadd.f32 %v769, %v813
        %v815 = vpop.f32.mrb[0].mxu0
        %v816 = vpop.f32.mrb[0].mxu0
        %v817 = vadd.f32 %v770, %v816
        %v818 = vpop.f32.mrb[0].mxu0
        %819 = vdwg.mxu0
        %vm820 = vcmask 261120
        %821 = vst.msk [vmem:[#allocation2] sm:$0xff] %vm820, %v814
        %822 = vst.msk [vmem:[#allocation2 + $0x8] sm:$0xff] %vm820, %v817
      $region100: #{mints_pallas_forward.1} parent=95 // pred_fallthru
        _
      %v823 = vld [vmem:[#allocation2] sm:$0xff]
      %v824 = vld [vmem:[#allocation2 + $0x8] sm:$0xff]
      %v825 = vld [vmem:[%s720] sm:$0xf]
      %v826 = vld [vmem:[%s720 + $0x4] sm:$0xf]
      %v827 = vld [vmem:[%s720 + $0x8] sm:$0xf]
      %v828 = vld [vmem:[%s720 + $0xc] sm:$0xf]
      %v829 = vpack.c.bf16 %v824, %v823
      %v830 = vld [vmem:[%s723] sm:$0x1]
      %v832 = vlaneseq
      %v833 = vshrl.u32 %v832, 7
      %v834 = vsub.s32 0, %v833
      %v835 = vrot.slane %v830, %v834
      %v841 = vunpack.c.l.b16 %v825
      %v842 = vunpack.c.l.b16 %v826
      %v843 = vunpack.c.l.b16 %v827
      %v844 = vunpack.c.l.b16 %v828
      %v845 = vpack.c.b16 %v842, %v841
      %v846 = vpack.c.b16 %v844, %v843
      %vm849 = vcmask 261120
      %v851 = vsel %vm849, %v829, 0
      %853 = vmatprep.subr.bf16.mxu0 0
      %854 = vmatpush1.bf16.msra.mxu0 %v845
      %855 = vmatprep.subr.bf16.mxu0 0
      %856 = vmatpush1.bf16.msra.mxu0 %v846
      %857 = vmatprep.subr.bf16.mxu0 0
      %858 = vmatpush1.bf16.msra.mxu0 0
      %859 = vmatprep.subr.bf16.mxu0 0
      %860 = vmatpush1.bf16.msra.mxu0 0
      %861 = vmatprep.subr.bf16.mxu0 0
      %862 = vmatpush1.bf16.msra.mxu0 0
      %863 = vmatprep.subr.bf16.mxu0 0
      %864 = vmatpush1.bf16.msra.mxu0 0
      %865 = vmatprep.subr.bf16.mxu0 0
      %866 = vmatpush1.bf16.msra.mxu0 0
      %867 = vmatprep.subr.bf16.mxu0 0
      %868 = vmatpush1.bf16.msra.mxu0 0
      %869 = vmatprep.subr.bf16.mxu0 0
      %870 = vmatpush1.bf16.msra.mxu0 0
      %871 = vmatprep.subr.bf16.mxu0 0
      %872 = vmatpush1.bf16.msra.mxu0 0
      %873 = vmatprep.subr.bf16.mxu0 0
      %874 = vmatpush1.bf16.msra.mxu0 0
      %875 = vmatprep.subr.bf16.mxu0 0
      %876 = vmatpush1.bf16.msra.mxu0 0
      %877 = vmatprep.subr.bf16.mxu0 0
      %878 = vmatpush1.bf16.msra.mxu0 0
      %879 = vmatprep.subr.bf16.mxu0 0
      %880 = vmatpush1.bf16.msra.mxu0 0
      %881 = vmatprep.subr.bf16.mxu0 0
      %882 = vmatpush1.bf16.msra.mxu0 0
      %883 = vmatprep.subr.bf16.mxu0 0
      %884 = vmatpush1.bf16.msra.mxu0 0
      %885 = vmatprep.mubr.bf16.mxu0 0
      %886 = vmatmul.mubr.bf16.gmra.mrb[0].mxu0 %v851
      %v887 = vpop.f32.mrb[0].mxu0
      %v888 = vadd.f32 %v835, %v887
      %v889 = vpop.f32.mrb[0].mxu0
      %v890 = vpop.f32.mrb[0].mxu0
      %v891 = vadd.f32 %v835, %v890
      %v892 = vpop.f32.mrb[0].mxu0
      %893 = vdwg.mxu0
      %v894 = vmul.f32 %v888, 0.35355338
      %v895 = vmul.f32 %v891, 0.35355338
      %v896 = vld [vmem:[%s728] sm:$0xf]
      %v897 = vld [vmem:[%s728 + $0x4] sm:$0xf]
      %v898 = vld [vmem:[%s728 + $0x8] sm:$0xf]
      %v899 = vld [vmem:[%s728 + $0xc] sm:$0xf]
      %v900 = vpack.c.bf16 %v894, %v894
      %v901 = vpack.c.bf16 %v895, %v895
      %v902 = vpack.c.bf16 %v888, %v888
      %v903 = vpack.c.bf16 %v891, %v891
      %905 = vrot.lane.b32.xlu0 %v902, 96
      %v906 = vpop.permute.xlu0 %905
      %vm907 = vcmask 64512
      %v909 = vsel %vm907, %v900, 0
      %v912 = vsel %vm907, %v906, 0
      %914 = vmatprep.subr.bf16.mxu0 0
      %915 = vmatpush1.bf16.xpose.msra.mxu0 %v912
      %916 = vmatprep.subr.bf16.mxu0 0
      %917 = vmatpush1.bf16.xpose.msra.mxu0 0
      %918 = vmatprep.subr.bf16.mxu0 0
      %919 = vmatpush1.bf16.xpose.msra.mxu0 0
      %920 = vmatprep.subr.bf16.mxu0 0
      %921 = vmatpush1.bf16.xpose.msra.mxu0 0
      %922 = vmatprep.subr.bf16.mxu0 0
      %923 = vmatpush1.bf16.xpose.msra.mxu0 0
      %924 = vmatprep.subr.bf16.mxu0 0
      %925 = vmatpush1.bf16.xpose.msra.mxu0 0
      %926 = vmatprep.subr.bf16.mxu0 0
      %927 = vmatpush1.bf16.xpose.msra.mxu0 0
      %928 = vmatprep.subr.bf16.mxu0 0
      %929 = vmatpush1.bf16.xpose.msra.mxu0 0
      %930 = vmatprep.subr.bf16.mxu0 0
      %931 = vmatpush1.bf16.xpose.msra.mxu0 0
      %932 = vmatprep.subr.bf16.mxu0 0
      %933 = vmatpush1.bf16.xpose.msra.mxu0 0
      %934 = vmatprep.subr.bf16.mxu0 0
      %935 = vmatpush1.bf16.xpose.msra.mxu0 0
      %936 = vmatprep.subr.bf16.mxu0 0
      %937 = vmatpush1.bf16.xpose.msra.mxu0 0
      %938 = vmatprep.subr.bf16.mxu0 0
      %939 = vmatpush1.bf16.xpose.msra.mxu0 0
      %940 = vmatprep.subr.bf16.mxu0 0
      %941 = vmatpush1.bf16.xpose.msra.mxu0 0
      %942 = vmatprep.subr.bf16.mxu0 0
      %943 = vmatpush1.bf16.xpose.msra.mxu0 0
      %944 = vmatprep.subr.bf16.mxu0 0
      %945 = vmatpush1.bf16.xpose.msra.mxu0 0
      %946 = vmatprep.mubr.bf16.mxu0 0
      %947 = vmatmul.mubr.bf16.gmra.mrb[0].mxu0 %v909
      %v948 = vpop.f32.mrb[0].mxu0
      %v949 = vadd.f32 0.0, %v948
      %v950 = vpop.f32.mrb[0].mxu0
      %v951 = vpop.f32.mrb[0].mxu0
      %v952 = vpop.f32.mrb[0].mxu0
      %953 = vdwg.mxu0
      %955 = vrot.lane.b32.xlu0 %v903, 96
      %v956 = vpop.permute.xlu0 %955
      %v958 = vsel %vm907, %v901, 0
      %v961 = vsel %vm907, %v956, 0
      %963 = vmatprep.subr.bf16.mxu0 0
      %964 = vmatpush1.bf16.xpose.msra.mxu0 %v961
      %965 = vmatprep.subr.bf16.mxu0 0
      %966 = vmatpush1.bf16.xpose.msra.mxu0 0
      %967 = vmatprep.subr.bf16.mxu0 0
      %968 = vmatpush1.bf16.xpose.msra.mxu0 0
      %969 = vmatprep.subr.bf16.mxu0 0
      %970 = vmatpush1.bf16.xpose.msra.mxu0 0
      %971 = vmatprep.subr.bf16.mxu0 0
      %972 = vmatpush1.bf16.xpose.msra.mxu0 0
      %973 = vmatprep.subr.bf16.mxu0 0
      %974 = vmatpush1.bf16.xpose.msra.mxu0 0
      %975 = vmatprep.subr.bf16.mxu0 0
      %976 = vmatpush1.bf16.xpose.msra.mxu0 0
      %977 = vmatprep.subr.bf16.mxu0 0
      %978 = vmatpush1.bf16.xpose.msra.mxu0 0
      %979 = vmatprep.subr.bf16.mxu0 0
      %980 = vmatpush1.bf16.xpose.msra.mxu0 0
      %981 = vmatprep.subr.bf16.mxu0 0
      %982 = vmatpush1.bf16.xpose.msra.mxu0 0
      %983 = vmatprep.subr.bf16.mxu0 0
      %984 = vmatpush1.bf16.xpose.msra.mxu0 0
      %985 = vmatprep.subr.bf16.mxu0 0
      %986 = vmatpush1.bf16.xpose.msra.mxu0 0
      %987 = vmatprep.subr.bf16.mxu0 0
      %988 = vmatpush1.bf16.xpose.msra.mxu0 0
      %989 = vmatprep.subr.bf16.mxu0 0
      %990 = vmatpush1.bf16.xpose.msra.mxu0 0
      %991 = vmatprep.subr.bf16.mxu0 0
      %992 = vmatpush1.bf16.xpose.msra.mxu0 0
      %993 = vmatprep.subr.bf16.mxu0 0
      %994 = vmatpush1.bf16.xpose.msra.mxu0 0
      %995 = vmatprep.mubr.bf16.mxu0 0
      %996 = vmatmul.mubr.bf16.gmra.mrb[0].mxu0 %v958
      %v997 = vpop.f32.mrb[0].mxu0
      %v998 = vadd.f32 0.0, %v997
      %v999 = vpop.f32.mrb[0].mxu0
      %v1000 = vpop.f32.mrb[0].mxu0
      %v1001 = vpop.f32.mrb[0].mxu0
      %1002 = vdwg.mxu0
      %v1003 = vsel %vm907, %v949, -inf
      %1004 = vmax.xlane.f32.xlu0 %v1003
      %v1005 = vpop.xlane.xlu0 %1004
      %v1006 = vsel %vm907, %v998, -inf
      %1007 = vmax.xlane.f32.xlu0 %v1006
      %v1008 = vpop.xlane.xlu0 %1007
      %v1009 = vsub.f32 %v949, %v1005
      %v1010 = vsub.f32 %v998, %v1008
      %v1011 = vmul.f32 %v1009, 1.442695
      %v1012 = vpow.pop %v1011
      %v1013 = vmul.f32 %v1010, 1.442695
      %v1014 = vpow.pop %v1013
      %v1015 = vsel %vm907, %v1012, 0.0
      %1016 = vadd.xlane.f32.xlu0 %v1015
      %v1017 = vpop.xlane.xlu0 %1016
      %v1018 = vsel %vm907, %v1014, 0.0
      %1019 = vadd.xlane.f32.xlu0 %v1018
      %v1020 = vpop.xlane.xlu0 %1019
      %v1021 = vrcp.pop %v1017
      %v1022 = vrcp.pop %v1020
      %v1023 = vmul.f32 %v1012, %v1021
      %v1024 = vmul.f32 %v1014, %v1022
      %v1025 = vpack.c.bf16 %v1023, %v1023
      %v1026 = vpack.c.bf16 %v1024, %v1024
      %1027 = vrot.lane.b32.xlu0 %v902, 64
      %v1028 = vpop.permute.xlu0 %1027
      %v1030 = vsel %vm907, %v1025, 0
      %vm1032 = vcmask 1043456
      %v1034 = vsel %vm1032, %v1028, 0
      %1036 = vmatprep.subr.bf16.mxu0 0
      %1037 = vmatpush1.bf16.msra.mxu0 %v1034
      %1038 = vmatprep.subr.bf16.mxu0 0
      %1039 = vmatpush1.bf16.msra.mxu0 0
      %1040 = vmatprep.subr.bf16.mxu0 0
      %1041 = vmatpush1.bf16.msra.mxu0 0
      %1042 = vmatprep.subr.bf16.mxu0 0
      %1043 = vmatpush1.bf16.msra.mxu0 0
      %1044 = vmatprep.subr.bf16.mxu0 0
      %1045 = vmatpush1.bf16.msra.mxu0 0
      %1046 = vmatprep.subr.bf16.mxu0 0
      %1047 = vmatpush1.bf16.msra.mxu0 0
      %1048 = vmatprep.subr.bf16.mxu0 0
      %1049 = vmatpush1.bf16.msra.mxu0 0
      %1050 = vmatprep.subr.bf16.mxu0 0
      %1051 = vmatpush1.bf16.msra.mxu0 0
      %1052 = vmatprep.subr.bf16.mxu0 0
      %1053 = vmatpush1.bf16.msra.mxu0 0
      %1054 = vmatprep.subr.bf16.mxu0 0
      %1055 = vmatpush1.bf16.msra.mxu0 0
      %1056 = vmatprep.subr.bf16.mxu0 0
      %1057 = vmatpush1.bf16.msra.mxu0 0
      %1058 = vmatprep.subr.bf16.mxu0 0
      %1059 = vmatpush1.bf16.msra.mxu0 0
      %1060 = vmatprep.subr.bf16.mxu0 0
      %1061 = vmatpush1.bf16.msra.mxu0 0
      %1062 = vmatprep.subr.bf16.mxu0 0
      %1063 = vmatpush1.bf16.msra.mxu0 0
      %1064 = vmatprep.subr.bf16.mxu0 0
      %1065 = vmatpush1.bf16.msra.mxu0 0
      %1066 = vmatprep.subr.bf16.mxu0 0
      %1067 = vmatpush1.bf16.msra.mxu0 0
      %1068 = vmatprep.mubr.bf16.mxu0 0
      %1069 = vmatmul.mubr.bf16.gmra.mrb[0].mxu0 %v1030
      %v1070 = vpop.f32.mrb[0].mxu0
      %v1071 = vadd.f32 0.0, %v1070
      %v1072 = vpop.f32.mrb[0].mxu0
      %v1073 = vpop.f32.mrb[0].mxu0
      %v1074 = vpop.f32.mrb[0].mxu0
      %1075 = vdwg.mxu0
      %1076 = vrot.lane.b32.xlu0 %v903, 64
      %v1077 = vpop.permute.xlu0 %1076
      %v1079 = vsel %vm907, %v1026, 0
      %v1082 = vsel %vm1032, %v1077, 0
      %1084 = vmatprep.subr.bf16.mxu0 0
      %1085 = vmatpush1.bf16.msra.mxu0 %v1082
      %1086 = vmatprep.subr.bf16.mxu0 0
      %1087 = vmatpush1.bf16.msra.mxu0 0
      %1088 = vmatprep.subr.bf16.mxu0 0
      %1089 = vmatpush1.bf16.msra.mxu0 0
      %1090 = vmatprep.subr.bf16.mxu0 0
      %1091 = vmatpush1.bf16.msra.mxu0 0
      %1092 = vmatprep.subr.bf16.mxu0 0
      %1093 = vmatpush1.bf16.msra.mxu0 0
      %1094 = vmatprep.subr.bf16.mxu0 0
      %1095 = vmatpush1.bf16.msra.mxu0 0
      %1096 = vmatprep.subr.bf16.mxu0 0
      %1097 = vmatpush1.bf16.msra.mxu0 0
      %1098 = vmatprep.subr.bf16.mxu0 0
      %1099 = vmatpush1.bf16.msra.mxu0 0
      %1100 = vmatprep.subr.bf16.mxu0 0
      %1101 = vmatpush1.bf16.msra.mxu0 0
      %1102 = vmatprep.subr.bf16.mxu0 0
      %1103 = vmatpush1.bf16.msra.mxu0 0
      %1104 = vmatprep.subr.bf16.mxu0 0
      %1105 = vmatpush1.bf16.msra.mxu0 0
      %1106 = vmatprep.subr.bf16.mxu0 0
      %1107 = vmatpush1.bf16.msra.mxu0 0
      %1108 = vmatprep.subr.bf16.mxu0 0
      %1109 = vmatpush1.bf16.msra.mxu0 0
      %1110 = vmatprep.subr.bf16.mxu0 0
      %1111 = vmatpush1.bf16.msra.mxu0 0
      %1112 = vmatprep.subr.bf16.mxu0 0
      %1113 = vmatpush1.bf16.msra.mxu0 0
      %1114 = vmatprep.subr.bf16.mxu0 0
      %1115 = vmatpush1.bf16.msra.mxu0 0
      %1116 = vmatprep.mubr.bf16.mxu0 0
      %1117 = vmatmul.mubr.bf16.gmra.mrb[0].mxu0 %v1079
      %v1118 = vpop.f32.mrb[0].mxu0
      %v1119 = vadd.f32 0.0, %v1118
      %v1120 = vpop.f32.mrb[0].mxu0
      %v1121 = vpop.f32.mrb[0].mxu0
      %v1122 = vpop.f32.mrb[0].mxu0
      %1123 = vdwg.mxu0
      %v1124 = vpack.c.bf16 %v1119, %v1071
      %1126 = vrot.lane.b32.xlu0 %v900, 120
      %v1127 = vpop.permute.xlu0 %1126
      %1128 = vrot.lane.b32.xlu0 %v902, 88
      %v1129 = vpop.permute.xlu0 %1128
      %v1131 = vsel %vm907, %v1127, 0
      %v1134 = vsel %vm907, %v1129, 0
      %1136 = vmatprep.subr.bf16.mxu0 0
      %1137 = vmatpush1.bf16.xpose.msra.mxu0 %v1134
      %1138 = vmatprep.subr.bf16.mxu0 0
      %1139 = vmatpush1.bf16.xpose.msra.mxu0 0
      %1140 = vmatprep.subr.bf16.mxu0 0
      %1141 = vmatpush1.bf16.xpose.msra.mxu0 0
      %1142 = vmatprep.subr.bf16.mxu0 0
      %1143 = vmatpush1.bf16.xpose.msra.mxu0 0
      %1144 = vmatprep.subr.bf16.mxu0 0
      %1145 = vmatpush1.bf16.xpose.msra.mxu0 0
      %1146 = vmatprep.subr.bf16.mxu0 0
      %1147 = vmatpush1.bf16.xpose.msra.mxu0 0
      %1148 = vmatprep.subr.bf16.mxu0 0
      %1149 = vmatpush1.bf16.xpose.msra.mxu0 0
      %1150 = vmatprep.subr.bf16.mxu0 0
      %1151 = vmatpush1.bf16.xpose.msra.mxu0 0
      %1152 = vmatprep.subr.bf16.mxu0 0
      %1153 = vmatpush1.bf16.xpose.msra.mxu0 0
      %1154 = vmatprep.subr.bf16.mxu0 0
      %1155 = vmatpush1.bf16.xpose.msra.mxu0 0
      %1156 = vmatprep.subr.bf16.mxu0 0
      %1157 = vmatpush1.bf16.xpose.msra.mxu0 0
      %1158 = vmatprep.subr.bf16.mxu0 0
      %1159 = vmatpush1.bf16.xpose.msra.mxu0 0
      %1160 = vmatprep.subr.bf16.mxu0 0
      %1161 = vmatpush1.bf16.xpose.msra.mxu0 0
      %1162 = vmatprep.subr.bf16.mxu0 0
      %1163 = vmatpush1.bf16.xpose.msra.mxu0 0
      %1164 = vmatprep.subr.bf16.mxu0 0
      %1165 = vmatpush1.bf16.xpose.msra.mxu0 0
      %1166 = vmatprep.subr.bf16.mxu0 0
      %1167 = vmatpush1.bf16.xpose.msra.mxu0 0
      %1168 = vmatprep.mubr.bf16.mxu0 0
      %1169 = vmatmul.mubr.bf16.gmra.mrb[0].mxu0 %v1131
      %v1170 = vpop.f32.mrb[0].mxu0
      %v1171 = vadd.f32 0.0, %v1170
      %v1172 = vpop.f32.mrb[0].mxu0
      %v1173 = vpop.f32.mrb[0].mxu0
      %v1174 = vpop.f32.mrb[0].mxu0
      %1175 = vdwg.mxu0
      %1177 = vrot.lane.b32.xlu0 %v901, 120
      %v1178 = vpop.permute.xlu0 %1177
      %1179 = vrot.lane.b32.xlu0 %v903, 88
      %v1180 = vpop.permute.xlu0 %1179
      %v1182 = vsel %vm907, %v1178, 0
      %v1185 = vsel %vm907, %v1180, 0
      %1187 = vmatprep.subr.bf16.mxu0 0
      %1188 = vmatpush1.bf16.xpose.msra.mxu0 %v1185
      %1189 = vmatprep.subr.bf16.mxu0 0
      %1190 = vmatpush1.bf16.xpose.msra.mxu0 0
      %1191 = vmatprep.subr.bf16.mxu0 0
      %1192 = vmatpush1.bf16.xpose.msra.mxu0 0
      %1193 = vmatprep.subr.bf16.mxu0 0
      %1194 = vmatpush1.bf16.xpose.msra.mxu0 0
      %1195 = vmatprep.subr.bf16.mxu0 0
      %1196 = vmatpush1.bf16.xpose.msra.mxu0 0
      %1197 = vmatprep.subr.bf16.mxu0 0
      %1198 = vmatpush1.bf16.xpose.msra.mxu0 0
      %1199 = vmatprep.subr.bf16.mxu0 0
      %1200 = vmatpush1.bf16.xpose.msra.mxu0 0
      %1201 = vmatprep.subr.bf16.mxu0 0
      %1202 = vmatpush1.bf16.xpose.msra.mxu0 0
      %1203 = vmatprep.subr.bf16.mxu0 0
      %1204 = vmatpush1.bf16.xpose.msra.mxu0 0
      %1205 = vmatprep.subr.bf16.mxu0 0
      %1206 = vmatpush1.bf16.xpose.msra.mxu0 0
      %1207 = vmatprep.subr.bf16.mxu0 0
      %1208 = vmatpush1.bf16.xpose.msra.mxu0 0
      %1209 = vmatprep.subr.bf16.mxu0 0
      %1210 = vmatpush1.bf16.xpose.msra.mxu0 0
      %1211 = vmatprep.subr.bf16.mxu0 0
      %1212 = vmatpush1.bf16.xpose.msra.mxu0 0
      %1213 = vmatprep.subr.bf16.mxu0 0
      %1214 = vmatpush1.bf16.xpose.msra.mxu0 0
      %1215 = vmatprep.subr.bf16.mxu0 0
      %1216 = vmatpush1.bf16.xpose.msra.mxu0 0
      %1217 = vmatprep.subr.bf16.mxu0 0
      %1218 = vmatpush1.bf16.xpose.msra.mxu0 0
      %1219 = vmatprep.mubr.bf16.mxu0 0
      %1220 = vmatmul.mubr.bf16.gmra.mrb[0].mxu0 %v1182
      %v1221 = vpop.f32.mrb[0].mxu0
      %v1222 = vadd.f32 0.0, %v1221
      %v1223 = vpop.f32.mrb[0].mxu0
      %v1224 = vpop.f32.mrb[0].mxu0
      %v1225 = vpop.f32.mrb[0].mxu0
      %1226 = vdwg.mxu0
      %v1227 = vsel %vm907, %v1171, -inf
      %1228 = vmax.xlane.f32.xlu0 %v1227
      %v1229 = vpop.xlane.xlu0 %1228
      %v1230 = vsel %vm907, %v1222, -inf
      %1231 = vmax.xlane.f32.xlu0 %v1230
      %v1232 = vpop.xlane.xlu0 %1231
      %v1233 = vsub.f32 %v1171, %v1229
      %v1234 = vsub.f32 %v1222, %v1232
      %v1235 = vmul.f32 %v1233, 1.442695
      %v1236 = vpow.pop %v1235
      %v1237 = vmul.f32 %v1234, 1.442695
      %v1238 = vpow.pop %v1237
      %v1239 = vsel %vm907, %v1236, 0.0
      %1240 = vadd.xlane.f32.xlu0 %v1239
      %v1241 = vpop.xlane.xlu0 %1240
      %v1242 = vsel %vm907, %v1238, 0.0
      %1243 = vadd.xlane.f32.xlu0 %v1242
      %v1244 = vpop.xlane.xlu0 %1243
      %v1245 = vrcp.pop %v1241
      %v1246 = vrcp.pop %v1244
      %v1247 = vmul.f32 %v1236, %v1245
      %v1248 = vmul.f32 %v1238, %v1246
      %v1249 = vpack.c.bf16 %v1247, %v1247
      %v1250 = vpack.c.bf16 %v1248, %v1248
      %1251 = vrot.lane.b32.xlu0 %v902, 56
      %v1252 = vpop.permute.xlu0 %1251
      %v1254 = vsel %vm907, %v1249, 0
      %v1257 = vsel %vm1032, %v1252, 0
      %1259 = vmatprep.subr.bf16.mxu0 0
      %1260 = vmatpush1.bf16.msra.mxu0 %v1257
      %1261 = vmatprep.subr.bf16.mxu0 0
      %1262 = vmatpush1.bf16.msra.mxu0 0
      %1263 = vmatprep.subr.bf16.mxu0 0
      %1264 = vmatpush1.bf16.msra.mxu0 0
      %1265 = vmatprep.subr.bf16.mxu0 0
      %1266 = vmatpush1.bf16.msra.mxu0 0
      %1267 = vmatprep.subr.bf16.mxu0 0
      %1268 = vmatpush1.bf16.msra.mxu0 0
      %1269 = vmatprep.subr.bf16.mxu0 0
      %1270 = vmatpush1.bf16.msra.mxu0 0
      %1271 = vmatprep.subr.bf16.mxu0 0
      %1272 = vmatpush1.bf16.msra.mxu0 0
      %1273 = vmatprep.subr.bf16.mxu0 0
      %1274 = vmatpush1.bf16.msra.mxu0 0
      %1275 = vmatprep.subr.bf16.mxu0 0
      %1276 = vmatpush1.bf16.msra.mxu0 0
      %1277 = vmatprep.subr.bf16.mxu0 0
      %1278 = vmatpush1.bf16.msra.mxu0 0
      %1279 = vmatprep.subr.bf16.mxu0 0
      %1280 = vmatpush1.bf16.msra.mxu0 0
      %1281 = vmatprep.subr.bf16.mxu0 0
      %1282 = vmatpush1.bf16.msra.mxu0 0
      %1283 = vmatprep.subr.bf16.mxu0 0
      %1284 = vmatpush1.bf16.msra.mxu0 0
      %1285 = vmatprep.subr.bf16.mxu0 0
      %1286 = vmatpush1.bf16.msra.mxu0 0
      %1287 = vmatprep.subr.bf16.mxu0 0
      %1288 = vmatpush1.bf16.msra.mxu0 0
      %1289 = vmatprep.subr.bf16.mxu0 0
      %1290 = vmatpush1.bf16.msra.mxu0 0
      %1291 = vmatprep.mubr.bf16.mxu0 0
      %1292 = vmatmul.mubr.bf16.gmra.mrb[0].mxu0 %v1254
      %v1293 = vpop.f32.mrb[0].mxu0
      %v1294 = vadd.f32 0.0, %v1293
      %v1295 = vpop.f32.mrb[0].mxu0
      %v1296 = vpop.f32.mrb[0].mxu0
      %v1297 = vpop.f32.mrb[0].mxu0
      %1298 = vdwg.mxu0
      %1299 = vrot.lane.b32.xlu0 %v903, 56
      %v1300 = vpop.permute.xlu0 %1299
      %v1302 = vsel %vm907, %v1250, 0
      %v1305 = vsel %vm1032, %v1300, 0
      %1307 = vmatprep.subr.bf16.mxu0 0
      %1308 = vmatpush1.bf16.msra.mxu0 %v1305
      %1309 = vmatprep.subr.bf16.mxu0 0
      %1310 = vmatpush1.bf16.msra.mxu0 0
      %1311 = vmatprep.subr.bf16.mxu0 0
      %1312 = vmatpush1.bf16.msra.mxu0 0
      %1313 = vmatprep.subr.bf16.mxu0 0
      %1314 = vmatpush1.bf16.msra.mxu0 0
      %1315 = vmatprep.subr.bf16.mxu0 0
      %1316 = vmatpush1.bf16.msra.mxu0 0
      %1317 = vmatprep.subr.bf16.mxu0 0
      %1318 = vmatpush1.bf16.msra.mxu0 0
      %1319 = vmatprep.subr.bf16.mxu0 0
      %1320 = vmatpush1.bf16.msra.mxu0 0
      %1321 = vmatprep.subr.bf16.mxu0 0
      %1322 = vmatpush1.bf16.msra.mxu0 0
      %1323 = vmatprep.subr.bf16.mxu0 0
      %1324 = vmatpush1.bf16.msra.mxu0 0
      %1325 = vmatprep.subr.bf16.mxu0 0
      %1326 = vmatpush1.bf16.msra.mxu0 0
      %1327 = vmatprep.subr.bf16.mxu0 0
      %1328 = vmatpush1.bf16.msra.mxu0 0
      %1329 = vmatprep.subr.bf16.mxu0 0
      %1330 = vmatpush1.bf16.msra.mxu0 0
      %1331 = vmatprep.subr.bf16.mxu0 0
      %1332 = vmatpush1.bf16.msra.mxu0 0
      %1333 = vmatprep.subr.bf16.mxu0 0
      %1334 = vmatpush1.bf16.msra.mxu0 0
      %1335 = vmatprep.subr.bf16.mxu0 0
      %1336 = vmatpush1.bf16.msra.mxu0 0
      %1337 = vmatprep.subr.bf16.mxu0 0
      %1338 = vmatpush1.bf16.msra.mxu0 0
      %1339 = vmatprep.mubr.bf16.mxu0 0
      %1340 = vmatmul.mubr.bf16.gmra.mrb[0].mxu0 %v1302
      %v1341 = vpop.f32.mrb[0].mxu0
      %v1342 = vadd.f32 0.0, %v1341
      %v1343 = vpop.f32.mrb[0].mxu0
      %v1344 = vpop.f32.mrb[0].mxu0
      %v1345 = vpop.f32.mrb[0].mxu0
      %1346 = vdwg.mxu0
      %v1347 = vpack.c.bf16 %v1342, %v1294
      %v1349 = vsel %vm907, %v1347, 0
      %v1352 = vsel %vm1032, %v897, 0
      %1354 = vmatprep.subr.bf16.mxu0 0
      %1355 = vmatpush1.bf16.msra.mxu0 %v1352
      %1356 = vmatprep.subr.bf16.mxu0 0
      %1357 = vmatpush1.bf16.msra.mxu0 0
      %1358 = vmatprep.subr.bf16.mxu0 0
      %1359 = vmatpush1.bf16.msra.mxu0 0
      %1360 = vmatprep.subr.bf16.mxu0 0
      %1361 = vmatpush1.bf16.msra.mxu0 0
      %1362 = vmatprep.subr.bf16.mxu0 0
      %1363 = vmatpush1.bf16.msra.mxu0 0
      %1364 = vmatprep.subr.bf16.mxu0 0
      %1365 = vmatpush1.bf16.msra.mxu0 0
      %1366 = vmatprep.subr.bf16.mxu0 0
      %1367 = vmatpush1.bf16.msra.mxu0 0
      %1368 = vmatprep.subr.bf16.mxu0 0
      %1369 = vmatpush1.bf16.msra.mxu0 0
      %1370 = vmatprep.subr.bf16.mxu0 0
      %1371 = vmatpush1.bf16.msra.mxu0 0
      %1372 = vmatprep.subr.bf16.mxu0 0
      %1373 = vmatpush1.bf16.msra.mxu0 0
      %1374 = vmatprep.subr.bf16.mxu0 0
      %1375 = vmatpush1.bf16.msra.mxu0 0
      %1376 = vmatprep.subr.bf16.mxu0 0
      %1377 = vmatpush1.bf16.msra.mxu0 0
      %1378 = vmatprep.subr.bf16.mxu0 0
      %1379 = vmatpush1.bf16.msra.mxu0 0
      %1380 = vmatprep.subr.bf16.mxu0 0
      %1381 = vmatpush1.bf16.msra.mxu0 0
      %1382 = vmatprep.subr.bf16.mxu0 0
      %1383 = vmatpush1.bf16.msra.mxu0 0
      %1384 = vmatprep.subr.bf16.mxu0 0
      %1385 = vmatpush1.bf16.msra.mxu0 0
      %1386 = vmatprep.mubr.bf16.mxu0 0
      %1387 = vmatmul.mubr.bf16.gmra.mrb[0].mxu0 %v1349
      %v1388 = vpop.f32.mrb[0].mxu0
      %v1389 = vadd.f32 0.0, %v1388
      %v1390 = vpop.f32.mrb[0].mxu0
      %v1391 = vpop.f32.mrb[0].mxu0
      %v1392 = vadd.f32 0.0, %v1391
      %v1393 = vpop.f32.mrb[0].mxu0
      %1394 = vdwg.mxu0
      %v1396 = vsel %vm907, %v1124, 0
      %v1399 = vsel %vm1032, %v896, 0
      %1401 = vmatprep.subr.bf16.mxu0 0
      %1402 = vmatpush1.bf16.msra.mxu0 %v1399
      %1403 = vmatprep.subr.bf16.mxu0 0
      %1404 = vmatpush1.bf16.msra.mxu0 0
      %1405 = vmatprep.subr.bf16.mxu0 0
      %1406 = vmatpush1.bf16.msra.mxu0 0
      %1407 = vmatprep.subr.bf16.mxu0 0
      %1408 = vmatpush1.bf16.msra.mxu0 0
      %1409 = vmatprep.subr.bf16.mxu0 0
      %1410 = vmatpush1.bf16.msra.mxu0 0
      %1411 = vmatprep.subr.bf16.mxu0 0
      %1412 = vmatpush1.bf16.msra.mxu0 0
      %1413 = vmatprep.subr.bf16.mxu0 0
      %1414 = vmatpush1.bf16.msra.mxu0 0
      %1415 = vmatprep.subr.bf16.mxu0 0
      %1416 = vmatpush1.bf16.msra.mxu0 0
      %1417 = vmatprep.subr.bf16.mxu0 0
      %1418 = vmatpush1.bf16.msra.mxu0 0
      %1419 = vmatprep.subr.bf16.mxu0 0
      %1420 = vmatpush1.bf16.msra.mxu0 0
      %1421 = vmatprep.subr.bf16.mxu0 0
      %1422 = vmatpush1.bf16.msra.mxu0 0
      %1423 = vmatprep.subr.bf16.mxu0 0
      %1424 = vmatpush1.bf16.msra.mxu0 0
      %1425 = vmatprep.subr.bf16.mxu0 0
      %1426 = vmatpush1.bf16.msra.mxu0 0
      %1427 = vmatprep.subr.bf16.mxu0 0
      %1428 = vmatpush1.bf16.msra.mxu0 0
      %1429 = vmatprep.subr.bf16.mxu0 0
      %1430 = vmatpush1.bf16.msra.mxu0 0
      %1431 = vmatprep.subr.bf16.mxu0 0
      %1432 = vmatpush1.bf16.msra.mxu0 0
      %1433 = vmatprep.mubr.bf16.mxu0 0
      %1434 = vmatmul.mubr.bf16.gmra.mrb[0].mxu0 %v1396
      %v1435 = vpop.f32.mrb[0].mxu0
      %v1436 = vadd.f32 %v1389, %v1435
      %v1437 = vpop.f32.mrb[0].mxu0
      %v1438 = vpop.f32.mrb[0].mxu0
      %v1439 = vadd.f32 %v1392, %v1438
      %v1440 = vpop.f32.mrb[0].mxu0
      %1441 = vdwg.mxu0
      %1442 = vrot.lane.b32.xlu0 %v900, 112
      %v1443 = vpop.permute.xlu0 %1442
      %1444 = vrot.lane.b32.xlu0 %v902, 80
      %v1445 = vpop.permute.xlu0 %1444
      %v1447 = vsel %vm907, %v1443, 0
      %v1450 = vsel %vm907, %v1445, 0
      %1452 = vmatprep.subr.bf16.mxu0 0
      %1453 = vmatpush1.bf16.xpose.msra.mxu0 %v1450
      %1454 = vmatprep.subr.bf16.mxu0 0
      %1455 = vmatpush1.bf16.xpose.msra.mxu0 0
      %1456 = vmatprep.subr.bf16.mxu0 0
      %1457 = vmatpush1.bf16.xpose.msra.mxu0 0
      %1458 = vmatprep.subr.bf16.mxu0 0
      %1459 = vmatpush1.bf16.xpose.msra.mxu0 0
      %1460 = vmatprep.subr.bf16.mxu0 0
      %1461 = vmatpush1.bf16.xpose.msra.mxu0 0
      %1462 = vmatprep.subr.bf16.mxu0 0
      %1463 = vmatpush1.bf16.xpose.msra.mxu0 0
      %1464 = vmatprep.subr.bf16.mxu0 0
      %1465 = vmatpush1.bf16.xpose.msra.mxu0 0
      %1466 = vmatprep.subr.bf16.mxu0 0
      %1467 = vmatpush1.bf16.xpose.msra.mxu0 0
      %1468 = vmatprep.subr.bf16.mxu0 0
      %1469 = vmatpush1.bf16.xpose.msra.mxu0 0
      %1470 = vmatprep.subr.bf16.mxu0 0
      %1471 = vmatpush1.bf16.xpose.msra.mxu0 0
      %1472 = vmatprep.subr.bf16.mxu0 0
      %1473 = vmatpush1.bf16.xpose.msra.mxu0 0
      %1474 = vmatprep.subr.bf16.mxu0 0
      %1475 = vmatpush1.bf16.xpose.msra.mxu0 0
      %1476 = vmatprep.subr.bf16.mxu0 0
      %1477 = vmatpush1.bf16.xpose.msra.mxu0 0
      %1478 = vmatprep.subr.bf16.mxu0 0
      %1479 = vmatpush1.bf16.xpose.msra.mxu0 0
      %1480 = vmatprep.subr.bf16.mxu0 0
      %1481 = vmatpush1.bf16.xpose.msra.mxu0 0
      %1482 = vmatprep.subr.bf16.mxu0 0
      %1483 = vmatpush1.bf16.xpose.msra.mxu0 0
      %1484 = vmatprep.mubr.bf16.mxu0 0
      %1485 = vmatmul.mubr.bf16.gmra.mrb[0].mxu0 %v1447
      %v1486 = vpop.f32.mrb[0].mxu0
      %v1487 = vadd.f32 0.0, %v1486
      %v1488 = vpop.f32.mrb[0].mxu0
      %v1489 = vpop.f32.mrb[0].mxu0
      %v1490 = vpop.f32.mrb[0].mxu0
      %1491 = vdwg.mxu0
      %1492 = vrot.lane.b32.xlu0 %v901, 112
      %v1493 = vpop.permute.xlu0 %1492
      %1494 = vrot.lane.b32.xlu0 %v903, 80
      %v1495 = vpop.permute.xlu0 %1494
      %v1497 = vsel %vm907, %v1493, 0
      %v1500 = vsel %vm907, %v1495, 0
      %1502 = vmatprep.subr.bf16.mxu0 0
      %1503 = vmatpush1.bf16.xpose.msra.mxu0 %v1500
      %1504 = vmatprep.subr.bf16.mxu0 0
      %1505 = vmatpush1.bf16.xpose.msra.mxu0 0
      %1506 = vmatprep.subr.bf16.mxu0 0
      %1507 = vmatpush1.bf16.xpose.msra.mxu0 0
      %1508 = vmatprep.subr.bf16.mxu0 0
      %1509 = vmatpush1.bf16.xpose.msra.mxu0 0
      %1510 = vmatprep.subr.bf16.mxu0 0
      %1511 = vmatpush1.bf16.xpose.msra.mxu0 0
      %1512 = vmatprep.subr.bf16.mxu0 0
      %1513 = vmatpush1.bf16.xpose.msra.mxu0 0
      %1514 = vmatprep.subr.bf16.mxu0 0
      %1515 = vmatpush1.bf16.xpose.msra.mxu0 0
      %1516 = vmatprep.subr.bf16.mxu0 0
      %1517 = vmatpush1.bf16.xpose.msra.mxu0 0
      %1518 = vmatprep.subr.bf16.mxu0 0
      %1519 = vmatpush1.bf16.xpose.msra.mxu0 0
      %1520 = vmatprep.subr.bf16.mxu0 0
      %1521 = vmatpush1.bf16.xpose.msra.mxu0 0
      %1522 = vmatprep.subr.bf16.mxu0 0
      %1523 = vmatpush1.bf16.xpose.msra.mxu0 0
      %1524 = vmatprep.subr.bf16.mxu0 0
      %1525 = vmatpush1.bf16.xpose.msra.mxu0 0
      %1526 = vmatprep.subr.bf16.mxu0 0
      %1527 = vmatpush1.bf16.xpose.msra.mxu0 0
      %1528 = vmatprep.subr.bf16.mxu0 0
      %1529 = vmatpush1.bf16.xpose.msra.mxu0 0
      %1530 = vmatprep.subr.bf16.mxu0 0
      %1531 = vmatpush1.bf16.xpose.msra.mxu0 0
      %1532 = vmatprep.subr.bf16.mxu0 0
      %1533 = vmatpush1.bf16.xpose.msra.mxu0 0
      %1534 = vmatprep.mubr.bf16.mxu0 0
      %1535 = vmatmul.mubr.bf16.gmra.mrb[0].mxu0 %v1497
      %v1536 = vpop.f32.mrb[0].mxu0
      %v1537 = vadd.f32 0.0, %v1536
      %v1538 = vpop.f32.mrb[0].mxu0
      %v1539 = vpop.f32.mrb[0].mxu0
      %v1540 = vpop.f32.mrb[0].mxu0
      %1541 = vdwg.mxu0
      %v1542 = vsel %vm907, %v1487, -inf
      %1543 = vmax.xlane.f32.xlu0 %v1542
      %v1544 = vpop.xlane.xlu0 %1543
      %v1545 = vsel %vm907, %v1537, -inf
      %1546 = vmax.xlane.f32.xlu0 %v1545
      %v1547 = vpop.xlane.xlu0 %1546
      %v1548 = vsub.f32 %v1487, %v1544
      %v1549 = vsub.f32 %v1537, %v1547
      %v1550 = vmul.f32 %v1548, 1.442695
      %v1551 = vpow.pop %v1550
      %v1552 = vmul.f32 %v1549, 1.442695
      %v1553 = vpow.pop %v1552
      %v1554 = vsel %vm907, %v1551, 0.0
      %1555 = vadd.xlane.f32.xlu0 %v1554
      %v1556 = vpop.xlane.xlu0 %1555
      %v1557 = vsel %vm907, %v1553, 0.0
      %1558 = vadd.xlane.f32.xlu0 %v1557
      %v1559 = vpop.xlane.xlu0 %1558
      %v1560 = vrcp.pop %v1556
      %v1561 = vrcp.pop %v1559
      %v1562 = vmul.f32 %v1551, %v1560
      %v1563 = vmul.f32 %v1553, %v1561
      %v1564 = vpack.c.bf16 %v1562, %v1562
      %v1565 = vpack.c.bf16 %v1563, %v1563
      %1566 = vrot.lane.b32.xlu0 %v902, 48
      %v1567 = vpop.permute.xlu0 %1566
      %v1569 = vsel %vm907, %v1564, 0
      %v1572 = vsel %vm1032, %v1567, 0
      %1574 = vmatprep.subr.bf16.mxu0 0
      %1575 = vmatpush1.bf16.msra.mxu0 %v1572
      %1576 = vmatprep.subr.bf16.mxu0 0
      %1577 = vmatpush1.bf16.msra.mxu0 0
      %1578 = vmatprep.subr.bf16.mxu0 0
      %1579 = vmatpush1.bf16.msra.mxu0 0
      %1580 = vmatprep.subr.bf16.mxu0 0
      %1581 = vmatpush1.bf16.msra.mxu0 0
      %1582 = vmatprep.subr.bf16.mxu0 0
      %1583 = vmatpush1.bf16.msra.mxu0 0
      %1584 = vmatprep.subr.bf16.mxu0 0
      %1585 = vmatpush1.bf16.msra.mxu0 0
      %1586 = vmatprep.subr.bf16.mxu0 0
      %1587 = vmatpush1.bf16.msra.mxu0 0
      %1588 = vmatprep.subr.bf16.mxu0 0
      %1589 = vmatpush1.bf16.msra.mxu0 0
      %1590 = vmatprep.subr.bf16.mxu0 0
      %1591 = vmatpush1.bf16.msra.mxu0 0
      %1592 = vmatprep.subr.bf16.mxu0 0
      %1593 = vmatpush1.bf16.msra.mxu0 0
      %1594 = vmatprep.subr.bf16.mxu0 0
      %1595 = vmatpush1.bf16.msra.mxu0 0
      %1596 = vmatprep.subr.bf16.mxu0 0
      %1597 = vmatpush1.bf16.msra.mxu0 0
      %1598 = vmatprep.subr.bf16.mxu0 0
      %1599 = vmatpush1.bf16.msra.mxu0 0
      %1600 = vmatprep.subr.bf16.mxu0 0
      %1601 = vmatpush1.bf16.msra.mxu0 0
      %1602 = vmatprep.subr.bf16.mxu0 0
      %1603 = vmatpush1.bf16.msra.mxu0 0
      %1604 = vmatprep.subr.bf16.mxu0 0
      %1605 = vmatpush1.bf16.msra.mxu0 0
      %1606 = vmatprep.mubr.bf16.mxu0 0
      %1607 = vmatmul.mubr.bf16.gmra.mrb[0].mxu0 %v1569
      %v1608 = vpop.f32.mrb[0].mxu0
      %v1609 = vadd.f32 0.0, %v1608
      %v1610 = vpop.f32.mrb[0].mxu0
      %v1611 = vpop.f32.mrb[0].mxu0
      %v1612 = vpop.f32.mrb[0].mxu0
      %1613 = vdwg.mxu0
      %1614 = vrot.lane.b32.xlu0 %v903, 48
      %v1615 = vpop.permute.xlu0 %1614
      %v1617 = vsel %vm907, %v1565, 0
      %v1620 = vsel %vm1032, %v1615, 0
      %1622 = vmatprep.subr.bf16.mxu0 0
      %1623 = vmatpush1.bf16.msra.mxu0 %v1620
      %1624 = vmatprep.subr.bf16.mxu0 0
      %1625 = vmatpush1.bf16.msra.mxu0 0
      %1626 = vmatprep.subr.bf16.mxu0 0
      %1627 = vmatpush1.bf16.msra.mxu0 0
      %1628 = vmatprep.subr.bf16.mxu0 0
      %1629 = vmatpush1.bf16.msra.mxu0 0
      %1630 = vmatprep.subr.bf16.mxu0 0
      %1631 = vmatpush1.bf16.msra.mxu0 0
      %1632 = vmatprep.subr.bf16.mxu0 0
      %1633 = vmatpush1.bf16.msra.mxu0 0
      %1634 = vmatprep.subr.bf16.mxu0 0
      %1635 = vmatpush1.bf16.msra.mxu0 0
      %1636 = vmatprep.subr.bf16.mxu0 0
      %1637 = vmatpush1.bf16.msra.mxu0 0
      %1638 = vmatprep.subr.bf16.mxu0 0
      %1639 = vmatpush1.bf16.msra.mxu0 0
      %1640 = vmatprep.subr.bf16.mxu0 0
      %1641 = vmatpush1.bf16.msra.mxu0 0
      %1642 = vmatprep.subr.bf16.mxu0 0
      %1643 = vmatpush1.bf16.msra.mxu0 0
      %1644 = vmatprep.subr.bf16.mxu0 0
      %1645 = vmatpush1.bf16.msra.mxu0 0
      %1646 = vmatprep.subr.bf16.mxu0 0
      %1647 = vmatpush1.bf16.msra.mxu0 0
      %1648 = vmatprep.subr.bf16.mxu0 0
      %1649 = vmatpush1.bf16.msra.mxu0 0
      %1650 = vmatprep.subr.bf16.mxu0 0
      %1651 = vmatpush1.bf16.msra.mxu0 0
      %1652 = vmatprep.subr.bf16.mxu0 0
      %1653 = vmatpush1.bf16.msra.mxu0 0
      %1654 = vmatprep.mubr.bf16.mxu0 0
      %1655 = vmatmul.mubr.bf16.gmra.mrb[0].mxu0 %v1617
      %v1656 = vpop.f32.mrb[0].mxu0
      %v1657 = vadd.f32 0.0, %v1656
      %v1658 = vpop.f32.mrb[0].mxu0
      %v1659 = vpop.f32.mrb[0].mxu0
      %v1660 = vpop.f32.mrb[0].mxu0
      %1661 = vdwg.mxu0
      %v1662 = vpack.c.bf16 %v1657, %v1609
      %v1664 = vsel %vm907, %v1662, 0
      %v1667 = vsel %vm1032, %v898, 0
      %1669 = vmatprep.subr.bf16.mxu0 0
      %1670 = vmatpush1.bf16.msra.mxu0 %v1667
      %1671 = vmatprep.subr.bf16.mxu0 0
      %1672 = vmatpush1.bf16.msra.mxu0 0
      %1673 = vmatprep.subr.bf16.mxu0 0
      %1674 = vmatpush1.bf16.msra.mxu0 0
      %1675 = vmatprep.subr.bf16.mxu0 0
      %1676 = vmatpush1.bf16.msra.mxu0 0
      %1677 = vmatprep.subr.bf16.mxu0 0
      %1678 = vmatpush1.bf16.msra.mxu0 0
      %1679 = vmatprep.subr.bf16.mxu0 0
      %1680 = vmatpush1.bf16.msra.mxu0 0
      %1681 = vmatprep.subr.bf16.mxu0 0
      %1682 = vmatpush1.bf16.msra.mxu0 0
      %1683 = vmatprep.subr.bf16.mxu0 0
      %1684 = vmatpush1.bf16.msra.mxu0 0
      %1685 = vmatprep.subr.bf16.mxu0 0
      %1686 = vmatpush1.bf16.msra.mxu0 0
      %1687 = vmatprep.subr.bf16.mxu0 0
      %1688 = vmatpush1.bf16.msra.mxu0 0
      %1689 = vmatprep.subr.bf16.mxu0 0
      %1690 = vmatpush1.bf16.msra.mxu0 0
      %1691 = vmatprep.subr.bf16.mxu0 0
      %1692 = vmatpush1.bf16.msra.mxu0 0
      %1693 = vmatprep.subr.bf16.mxu0 0
      %1694 = vmatpush1.bf16.msra.mxu0 0
      %1695 = vmatprep.subr.bf16.mxu0 0
      %1696 = vmatpush1.bf16.msra.mxu0 0
      %1697 = vmatprep.subr.bf16.mxu0 0
      %1698 = vmatpush1.bf16.msra.mxu0 0
      %1699 = vmatprep.subr.bf16.mxu0 0
      %1700 = vmatpush1.bf16.msra.mxu0 0
      %1701 = vmatprep.mubr.bf16.mxu0 0
      %1702 = vmatmul.mubr.bf16.gmra.mrb[0].mxu0 %v1664
      %v1703 = vpop.f32.mrb[0].mxu0
      %v1704 = vadd.f32 0.0, %v1703
      %v1705 = vpop.f32.mrb[0].mxu0
      %v1706 = vpop.f32.mrb[0].mxu0
      %v1707 = vadd.f32 0.0, %v1706
      %v1708 = vpop.f32.mrb[0].mxu0
      %1709 = vdwg.mxu0
      %v1710 = vadd.f32 %v1436, %v1704
      %v1711 = vadd.f32 %v1439, %v1707
      %1712 = vrot.lane.b32.xlu0 %v900, 104
      %v1713 = vpop.permute.xlu0 %1712
      %1714 = vrot.lane.b32.xlu0 %v902, 72
      %v1715 = vpop.permute.xlu0 %1714
      %v1717 = vsel %vm907, %v1713, 0
      %v1720 = vsel %vm907, %v1715, 0
      %1722 = vmatprep.subr.bf16.mxu0 0
      %1723 = vmatpush1.bf16.xpose.msra.mxu0 %v1720
      %1724 = vmatprep.subr.bf16.mxu0 0
      %1725 = vmatpush1.bf16.xpose.msra.mxu0 0
      %1726 = vmatprep.subr.bf16.mxu0 0
      %1727 = vmatpush1.bf16.xpose.msra.mxu0 0
      %1728 = vmatprep.subr.bf16.mxu0 0
      %1729 = vmatpush1.bf16.xpose.msra.mxu0 0
      %1730 = vmatprep.subr.bf16.mxu0 0
      %1731 = vmatpush1.bf16.xpose.msra.mxu0 0
      %1732 = vmatprep.subr.bf16.mxu0 0
      %1733 = vmatpush1.bf16.xpose.msra.mxu0 0
      %1734 = vmatprep.subr.bf16.mxu0 0
      %1735 = vmatpush1.bf16.xpose.msra.mxu0 0
      %1736 = vmatprep.subr.bf16.mxu0 0
      %1737 = vmatpush1.bf16.xpose.msra.mxu0 0
      %1738 = vmatprep.subr.bf16.mxu0 0
      %1739 = vmatpush1.bf16.xpose.msra.mxu0 0
      %1740 = vmatprep.subr.bf16.mxu0 0
      %1741 = vmatpush1.bf16.xpose.msra.mxu0 0
      %1742 = vmatprep.subr.bf16.mxu0 0
      %1743 = vmatpush1.bf16.xpose.msra.mxu0 0
      %1744 = vmatprep.subr.bf16.mxu0 0
      %1745 = vmatpush1.bf16.xpose.msra.mxu0 0
      %1746 = vmatprep.subr.bf16.mxu0 0
      %1747 = vmatpush1.bf16.xpose.msra.mxu0 0
      %1748 = vmatprep.subr.bf16.mxu0 0
      %1749 = vmatpush1.bf16.xpose.msra.mxu0 0
      %1750 = vmatprep.subr.bf16.mxu0 0
      %1751 = vmatpush1.bf16.xpose.msra.mxu0 0
      %1752 = vmatprep.subr.bf16.mxu0 0
      %1753 = vmatpush1.bf16.xpose.msra.mxu0 0
      %1754 = vmatprep.mubr.bf16.mxu0 0
      %1755 = vmatmul.mubr.bf16.gmra.mrb[0].mxu0 %v1717
      %v1756 = vpop.f32.mrb[0].mxu0
      %v1757 = vadd.f32 0.0, %v1756
      %v1758 = vpop.f32.mrb[0].mxu0
      %v1759 = vpop.f32.mrb[0].mxu0
      %v1760 = vpop.f32.mrb[0].mxu0
      %1761 = vdwg.mxu0
      %1762 = vrot.lane.b32.xlu0 %v901, 104
      %v1763 = vpop.permute.xlu0 %1762
      %1764 = vrot.lane.b32.xlu0 %v903, 72
      %v1765 = vpop.permute.xlu0 %1764
      %v1767 = vsel %vm907, %v1763, 0
      %v1770 = vsel %vm907, %v1765, 0
      %1772 = vmatprep.subr.bf16.mxu0 0
      %1773 = vmatpush1.bf16.xpose.msra.mxu0 %v1770
      %1774 = vmatprep.subr.bf16.mxu0 0
      %1775 = vmatpush1.bf16.xpose.msra.mxu0 0
      %1776 = vmatprep.subr.bf16.mxu0 0
      %1777 = vmatpush1.bf16.xpose.msra.mxu0 0
      %1778 = vmatprep.subr.bf16.mxu0 0
      %1779 = vmatpush1.bf16.xpose.msra.mxu0 0
      %1780 = vmatprep.subr.bf16.mxu0 0
      %1781 = vmatpush1.bf16.xpose.msra.mxu0 0
      %1782 = vmatprep.subr.bf16.mxu0 0
      %1783 = vmatpush1.bf16.xpose.msra.mxu0 0
      %1784 = vmatprep.subr.bf16.mxu0 0
      %1785 = vmatpush1.bf16.xpose.msra.mxu0 0
      %1786 = vmatprep.subr.bf16.mxu0 0
      %1787 = vmatpush1.bf16.xpose.msra.mxu0 0
      %1788 = vmatprep.subr.bf16.mxu0 0
      %1789 = vmatpush1.bf16.xpose.msra.mxu0 0
      %1790 = vmatprep.subr.bf16.mxu0 0
      %1791 = vmatpush1.bf16.xpose.msra.mxu0 0
      %1792 = vmatprep.subr.bf16.mxu0 0
      %1793 = vmatpush1.bf16.xpose.msra.mxu0 0
      %1794 = vmatprep.subr.bf16.mxu0 0
      %1795 = vmatpush1.bf16.xpose.msra.mxu0 0
      %1796 = vmatprep.subr.bf16.mxu0 0
      %1797 = vmatpush1.bf16.xpose.msra.mxu0 0
      %1798 = vmatprep.subr.bf16.mxu0 0
      %1799 = vmatpush1.bf16.xpose.msra.mxu0 0
      %1800 = vmatprep.subr.bf16.mxu0 0
      %1801 = vmatpush1.bf16.xpose.msra.mxu0 0
      %1802 = vmatprep.subr.bf16.mxu0 0
      %1803 = vmatpush1.bf16.xpose.msra.mxu0 0
      %1804 = vmatprep.mubr.bf16.mxu0 0
      %1805 = vmatmul.mubr.bf16.gmra.mrb[0].mxu0 %v1767
      %v1806 = vpop.f32.mrb[0].mxu0
      %v1807 = vadd.f32 0.0, %v1806
      %v1808 = vpop.f32.mrb[0].mxu0
      %v1809 = vpop.f32.mrb[0].mxu0
      %v1810 = vpop.f32.mrb[0].mxu0
      %1811 = vdwg.mxu0
      %v1812 = vsel %vm907, %v1757, -inf
      %1813 = vmax.xlane.f32.xlu0 %v1812
      %v1814 = vpop.xlane.xlu0 %1813
      %v1815 = vsel %vm907, %v1807, -inf
      %1816 = vmax.xlane.f32.xlu0 %v1815
      %v1817 = vpop.xlane.xlu0 %1816
      %v1818 = vsub.f32 %v1757, %v1814
      %v1819 = vsub.f32 %v1807, %v1817
      %v1820 = vmul.f32 %v1818, 1.442695
      %v1821 = vpow.pop %v1820
      %v1822 = vmul.f32 %v1819, 1.442695
      %v1823 = vpow.pop %v1822
      %v1824 = vsel %vm907, %v1821, 0.0
      %1825 = vadd.xlane.f32.xlu0 %v1824
      %v1826 = vpop.xlane.xlu0 %1825
      %v1827 = vsel %vm907, %v1823, 0.0
      %1828 = vadd.xlane.f32.xlu0 %v1827
      %v1829 = vpop.xlane.xlu0 %1828
      %v1830 = vrcp.pop %v1826
      %v1831 = vrcp.pop %v1829
      %v1832 = vmul.f32 %v1821, %v1830
      %v1833 = vmul.f32 %v1823, %v1831
      %v1834 = vpack.c.bf16 %v1832, %v1832
      %v1835 = vpack.c.bf16 %v1833, %v1833
      %1836 = vrot.lane.b32.xlu0 %v902, 40
      %v1837 = vpop.permute.xlu0 %1836
      %v1839 = vsel %vm907, %v1834, 0
      %v1842 = vsel %vm1032, %v1837, 0
      %1844 = vmatprep.subr.bf16.mxu0 0
      %1845 = vmatpush1.bf16.msra.mxu0 %v1842
      %1846 = vmatprep.subr.bf16.mxu0 0
      %1847 = vmatpush1.bf16.msra.mxu0 0
      %1848 = vmatprep.subr.bf16.mxu0 0
      %1849 = vmatpush1.bf16.msra.mxu0 0
      %1850 = vmatprep.subr.bf16.mxu0 0
      %1851 = vmatpush1.bf16.msra.mxu0 0
      %1852 = vmatprep.subr.bf16.mxu0 0
      %1853 = vmatpush1.bf16.msra.mxu0 0
      %1854 = vmatprep.subr.bf16.mxu0 0
      %1855 = vmatpush1.bf16.msra.mxu0 0
      %1856 = vmatprep.subr.bf16.mxu0 0
      %1857 = vmatpush1.bf16.msra.mxu0 0
      %1858 = vmatprep.subr.bf16.mxu0 0
      %1859 = vmatpush1.bf16.msra.mxu0 0
      %1860 = vmatprep.subr.bf16.mxu0 0
      %1861 = vmatpush1.bf16.msra.mxu0 0
      %1862 = vmatprep.subr.bf16.mxu0 0
      %1863 = vmatpush1.bf16.msra.mxu0 0
      %1864 = vmatprep.subr.bf16.mxu0 0
      %1865 = vmatpush1.bf16.msra.mxu0 0
      %1866 = vmatprep.subr.bf16.mxu0 0
      %1867 = vmatpush1.bf16.msra.mxu0 0
      %1868 = vmatprep.subr.bf16.mxu0 0
      %1869 = vmatpush1.bf16.msra.mxu0 0
      %1870 = vmatprep.subr.bf16.mxu0 0
      %1871 = vmatpush1.bf16.msra.mxu0 0
      %1872 = vmatprep.subr.bf16.mxu0 0
      %1873 = vmatpush1.bf16.msra.mxu0 0
      %1874 = vmatprep.subr.bf16.mxu0 0
      %1875 = vmatpush1.bf16.msra.mxu0 0
      %1876 = vmatprep.mubr.bf16.mxu0 0
      %1877 = vmatmul.mubr.bf16.gmra.mrb[0].mxu0 %v1839
      %v1878 = vpop.f32.mrb[0].mxu0
      %v1879 = vadd.f32 0.0, %v1878
      %v1880 = vpop.f32.mrb[0].mxu0
      %v1881 = vpop.f32.mrb[0].mxu0
      %v1882 = vpop.f32.mrb[0].mxu0
      %1883 = vdwg.mxu0
      %1884 = vrot.lane.b32.xlu0 %v903, 40
      %v1885 = vpop.permute.xlu0 %1884
      %v1887 = vsel %vm907, %v1835, 0
      %v1890 = vsel %vm1032, %v1885, 0
      %1892 = vmatprep.subr.bf16.mxu0 0
      %1893 = vmatpush1.bf16.msra.mxu0 %v1890
      %1894 = vmatprep.subr.bf16.mxu0 0
      %1895 = vmatpush1.bf16.msra.mxu0 0
      %1896 = vmatprep.subr.bf16.mxu0 0
      %1897 = vmatpush1.bf16.msra.mxu0 0
      %1898 = vmatprep.subr.bf16.mxu0 0
      %1899 = vmatpush1.bf16.msra.mxu0 0
      %1900 = vmatprep.subr.bf16.mxu0 0
      %1901 = vmatpush1.bf16.msra.mxu0 0
      %1902 = vmatprep.subr.bf16.mxu0 0
      %1903 = vmatpush1.bf16.msra.mxu0 0
      %1904 = vmatprep.subr.bf16.mxu0 0
      %1905 = vmatpush1.bf16.msra.mxu0 0
      %1906 = vmatprep.subr.bf16.mxu0 0
      %1907 = vmatpush1.bf16.msra.mxu0 0
      %1908 = vmatprep.subr.bf16.mxu0 0
      %1909 = vmatpush1.bf16.msra.mxu0 0
      %1910 = vmatprep.subr.bf16.mxu0 0
      %1911 = vmatpush1.bf16.msra.mxu0 0
      %1912 = vmatprep.subr.bf16.mxu0 0
      %1913 = vmatpush1.bf16.msra.mxu0 0
      %1914 = vmatprep.subr.bf16.mxu0 0
      %1915 = vmatpush1.bf16.msra.mxu0 0
      %1916 = vmatprep.subr.bf16.mxu0 0
      %1917 = vmatpush1.bf16.msra.mxu0 0
      %1918 = vmatprep.subr.bf16.mxu0 0
      %1919 = vmatpush1.bf16.msra.mxu0 0
      %1920 = vmatprep.subr.bf16.mxu0 0
      %1921 = vmatpush1.bf16.msra.mxu0 0
      %1922 = vmatprep.subr.bf16.mxu0 0
      %1923 = vmatpush1.bf16.msra.mxu0 0
      %1924 = vmatprep.mubr.bf16.mxu0 0
      %1925 = vmatmul.mubr.bf16.gmra.mrb[0].mxu0 %v1887
      %v1926 = vpop.f32.mrb[0].mxu0
      %v1927 = vadd.f32 0.0, %v1926
      %v1928 = vpop.f32.mrb[0].mxu0
      %v1929 = vpop.f32.mrb[0].mxu0
      %v1930 = vpop.f32.mrb[0].mxu0
      %1931 = vdwg.mxu0
      %v1932 = vpack.c.bf16 %v1927, %v1879
      %v1934 = vsel %vm907, %v1932, 0
      %v1937 = vsel %vm1032, %v899, 0
      %1939 = vmatprep.subr.bf16.mxu0 0
      %1940 = vmatpush1.bf16.msra.mxu0 %v1937
      %1941 = vmatprep.subr.bf16.mxu0 0
      %1942 = vmatpush1.bf16.msra.mxu0 0
      %1943 = vmatprep.subr.bf16.mxu0 0
      %1944 = vmatpush1.bf16.msra.mxu0 0
      %1945 = vmatprep.subr.bf16.mxu0 0
      %1946 = vmatpush1.bf16.msra.mxu0 0
      %1947 = vmatprep.subr.bf16.mxu0 0
      %1948 = vmatpush1.bf16.msra.mxu0 0
      %1949 = vmatprep.subr.bf16.mxu0 0
      %1950 = vmatpush1.bf16.msra.mxu0 0
      %1951 = vmatprep.subr.bf16.mxu0 0
      %1952 = vmatpush1.bf16.msra.mxu0 0
      %1953 = vmatprep.subr.bf16.mxu0 0
      %1954 = vmatpush1.bf16.msra.mxu0 0
      %1955 = vmatprep.subr.bf16.mxu0 0
      %1956 = vmatpush1.bf16.msra.mxu0 0
      %1957 = vmatprep.subr.bf16.mxu0 0
      %1958 = vmatpush1.bf16.msra.mxu0 0
      %1959 = vmatprep.subr.bf16.mxu0 0
      %1960 = vmatpush1.bf16.msra.mxu0 0
      %1961 = vmatprep.subr.bf16.mxu0 0
      %1962 = vmatpush1.bf16.msra.mxu0 0
      %1963 = vmatprep.subr.bf16.mxu0 0
      %1964 = vmatpush1.bf16.msra.mxu0 0
      %1965 = vmatprep.subr.bf16.mxu0 0
      %1966 = vmatpush1.bf16.msra.mxu0 0
      %1967 = vmatprep.subr.bf16.mxu0 0
      %1968 = vmatpush1.bf16.msra.mxu0 0
      %1969 = vmatprep.subr.bf16.mxu0 0
      %1970 = vmatpush1.bf16.msra.mxu0 0
      %1971 = vmatprep.mubr.bf16.mxu0 0
      %1972 = vmatmul.mubr.bf16.gmra.mrb[0].mxu0 %v1934
      %v1973 = vpop.f32.mrb[0].mxu0
      %v1974 = vadd.f32 0.0, %v1973
      %v1975 = vpop.f32.mrb[0].mxu0
      %v1976 = vpop.f32.mrb[0].mxu0
      %v1977 = vadd.f32 0.0, %v1976
      %v1978 = vpop.f32.mrb[0].mxu0
      %1979 = vdwg.mxu0
      %v1980 = vadd.f32 %v1710, %v1974
      %v1981 = vadd.f32 %v1711, %v1977
      %v1982 = vld [vmem:[%s731] sm:$0x1]
      %v1984 = vlaneseq
      %v1985 = vshrl.u32 %v1984, 7
      %v1986 = vsub.s32 0, %v1985
      %v1987 = vrot.slane %v1982, %v1986
      %v1989 = vadd.f32 %v1980, %v1987
      %v1990 = vadd.f32 %v1981, %v1987
      %v1991 = vadd.f32 %v823, %v1989
      %v1992 = vadd.f32 %v824, %v1990
      %v1993 = vld [vmem:[%s750] sm:$0x1]
      %v1994 = vld [vmem:[%s753] sm:$0x1]
      %v1995 = vsel %vm849, %v1991, 0.0
      %1996 = vadd.xlane.f32.xlu0 %v1995
      %v1997 = vpop.xlane.xlu0 %1996
      %v1998 = vsel %vm849, %v1992, 0.0
      %1999 = vadd.xlane.f32.xlu0 %v1998
      %v2000 = vpop.xlane.xlu0 %1999
      %v2001 = vrcp.pop 32.0
      %v2002 = vmul.f32 %v1997, %v2001
      %v2003 = vmul.f32 %v2000, %v2001
      %v2004 = vsub.f32 %v1991, %v2002
      %v2005 = vsub.f32 %v1992, %v2003
      %v2006 = vmul.f32 %v2004, %v2004
      %v2007 = vmul.f32 %v2005, %v2005
      %v2008 = vsel %vm849, %v2006, 0.0
      %2009 = vadd.xlane.f32.xlu0 %v2008
      %v2010 = vpop.xlane.xlu0 %2009
      %v2011 = vsel %vm849, %v2007, 0.0
      %2012 = vadd.xlane.f32.xlu0 %v2011
      %v2013 = vpop.xlane.xlu0 %2012
      %v2014 = vmul.f32 %v2010, %v2001
      %v2015 = vmul.f32 %v2013, %v2001
      %v2016 = vadd.f32 %v2014, 1e-05
      %v2017 = vadd.f32 %v2015, 1e-05
      %v2018 = vrsqrt.pop %v2016
      %v2019 = vrsqrt.pop %v2017
      %v2020 = vmul.f32 %v2004, %v2018
      %v2021 = vmul.f32 %v2005, %v2019
      %v2023 = vlaneseq
      %v2024 = vshrl.u32 %v2023, 7
      %v2025 = vsub.s32 0, %v2024
      %v2026 = vrot.slane %v1993, %v2025
      %v2028 = vmul.f32 %v2020, %v2026
      %v2029 = vmul.f32 %v2021, %v2026
      %v2031 = vlaneseq
      %v2032 = vshrl.u32 %v2031, 7
      %v2033 = vsub.s32 0, %v2032
      %v2034 = vrot.slane %v1994, %v2033
      %v2036 = vadd.f32 %v2028, %v2034
      %v2037 = vadd.f32 %v2029, %v2034
      %v2038 = vld [vmem:[%s736] sm:$0xf]
      %v2039 = vld [vmem:[%s736 + $0x4] sm:$0xf]
      %v2040 = vld [vmem:[%s736 + $0x8] sm:$0xf]
      %v2041 = vld [vmem:[%s736 + $0xc] sm:$0xf]
      %v2042 = vpack.c.bf16 %v2037, %v2036
      %v2043 = vld [vmem:[%s739] sm:$0x1]
      %v2045 = vlaneseq
      %v2046 = vshrl.u32 %v2045, 7
      %v2047 = vsub.s32 0, %v2046
      %v2048 = vrot.slane %v2043, %v2047
      %v2054 = vunpack.c.l.b16 %v2038
      %v2055 = vunpack.c.l.b16 %v2039
      %v2056 = vunpack.c.l.b16 %v2040
      %v2057 = vunpack.c.l.b16 %v2041
      %v2058 = vpack.c.b16 %v2055, %v2054
      %v2059 = vpack.c.b16 %v2057, %v2056
      %v2063 = vsel %vm849, %v2042, 0
      %2065 = vmatprep.subr.bf16.mxu0 0
      %2066 = vmatpush1.bf16.msra.mxu0 %v2058
      %2067 = vmatprep.subr.bf16.mxu0 0
      %2068 = vmatpush1.bf16.msra.mxu0 %v2059
      %2069 = vmatprep.subr.bf16.mxu0 0
      %2070 = vmatpush1.bf16.msra.mxu0 0
      %2071 = vmatprep.subr.bf16.mxu0 0
      %2072 = vmatpush1.bf16.msra.mxu0 0
      %2073 = vmatprep.subr.bf16.mxu0 0
      %2074 = vmatpush1.bf16.msra.mxu0 0
      %2075 = vmatprep.subr.bf16.mxu0 0
      %2076 = vmatpush1.bf16.msra.mxu0 0
      %2077 = vmatprep.subr.bf16.mxu0 0
      %2078 = vmatpush1.bf16.msra.mxu0 0
      %2079 = vmatprep.subr.bf16.mxu0 0
      %2080 = vmatpush1.bf16.msra.mxu0 0
      %2081 = vmatprep.subr.bf16.mxu0 0
      %2082 = vmatpush1.bf16.msra.mxu0 0
      %2083 = vmatprep.subr.bf16.mxu0 0
      %2084 = vmatpush1.bf16.msra.mxu0 0
      %2085 = vmatprep.subr.bf16.mxu0 0
      %2086 = vmatpush1.bf16.msra.mxu0 0
      %2087 = vmatprep.subr.bf16.mxu0 0
      %2088 = vmatpush1.bf16.msra.mxu0 0
      %2089 = vmatprep.subr.bf16.mxu0 0
      %2090 = vmatpush1.bf16.msra.mxu0 0
      %2091 = vmatprep.subr.bf16.mxu0 0
      %2092 = vmatpush1.bf16.msra.mxu0 0
      %2093 = vmatprep.subr.bf16.mxu0 0
      %2094 = vmatpush1.bf16.msra.mxu0 0
      %2095 = vmatprep.subr.bf16.mxu0 0
      %2096 = vmatpush1.bf16.msra.mxu0 0
      %2097 = vmatprep.mubr.bf16.mxu0 0
      %2098 = vmatmul.mubr.bf16.gmra.mrb[0].mxu0 %v2063
      %v2099 = vpop.f32.mrb[0].mxu0
      %v2100 = vadd.f32 %v2048, %v2099
      %v2101 = vpop.f32.mrb[0].mxu0
      %v2102 = vpop.f32.mrb[0].mxu0
      %v2103 = vadd.f32 %v2048, %v2102
      %v2104 = vpop.f32.mrb[0].mxu0
      %2105 = vdwg.mxu0
      %v2106 = vmul.f32 %v2100, 0.5
      %v2107 = vmul.f32 %v2103, 0.5
      %v2108 = vmul.f32 %v2100, 0.70710677
      %v2109 = vmul.f32 %v2103, 0.70710677
      %vm2110 = vcmp.lt.f32.partialorder %v2108, 0.0
      %vm2111 = vcmp.lt.f32.partialorder %v2109, 0.0
      %v2112 = vsel %vm2110, -1.0, 1.0
      %v2113 = vsel %vm2111, -1.0, 1.0
      %v2114 = vand.u32 2147483647, %v2108
      %v2115 = vand.u32 2147483647, %v2109
      %v2116 = vmul.f32 %v2114, 0.3275911
      %v2117 = vmul.f32 %v2115, 0.3275911
      %v2118 = vadd.f32 %v2116, 1.0
      %v2119 = vadd.f32 %v2117, 1.0
      %v2120 = vrcp.pop %v2118
      %v2121 = vmul.f32 1.0, %v2120
      %v2122 = vrcp.pop %v2119
      %v2123 = vmul.f32 1.0, %v2122
      %v2124 = vmul.f32 %v2121, 1.0614054
      %v2125 = vmul.f32 %v2123, 1.0614054
      %v2126 = vadd.f32 %v2124, -1.4531521
      %v2127 = vadd.f32 %v2125, -1.4531521
      %v2128 = vmul.f32 %v2121, %v2126
      %v2129 = vmul.f32 %v2123, %v2127
      %v2130 = vadd.f32 %v2128, 1.4214138
      %v2131 = vadd.f32 %v2129, 1.4214138
      %v2132 = vmul.f32 %v2121, %v2130
      %v2133 = vmul.f32 %v2123, %v2131
      %v2134 = vadd.f32 %v2132, -0.28449672
      %v2135 = vadd.f32 %v2133, -0.28449672
      %v2136 = vmul.f32 %v2121, %v2134
      %v2137 = vmul.f32 %v2123, %v2135
      %v2138 = vadd.f32 %v2136, 0.2548296
      %v2139 = vadd.f32 %v2137, 0.2548296
      %v2140 = vmul.f32 %v2121, %v2138
      %v2141 = vmul.f32 %v2123, %v2139
      %v2142 = vsub.f32 0.0, %v2114
      %v2143 = vsub.f32 0.0, %v2115
      %v2144 = vmul.f32 %v2142, %v2114
      %v2145 = vmul.f32 %v2143, %v2115
      %v2146 = vmul.f32 %v2144, 1.442695
      %v2147 = vpow.pop %v2146
      %v2148 = vmul.f32 %v2145, 1.442695
      %v2149 = vpow.pop %v2148
      %v2150 = vmul.f32 %v2140, %v2147
      %v2151 = vmul.f32 %v2141, %v2149
      %v2152 = vsub.f32 1.0, %v2150
      %v2153 = vsub.f32 1.0, %v2151
      %v2154 = vmul.f32 %v2112, %v2152
      %v2155 = vmul.f32 %v2113, %v2153
      %v2156 = vadd.f32 %v2154, 1.0
      %v2157 = vadd.f32 %v2155, 1.0
      %v2158 = vmul.f32 %v2106, %v2156
      %v2159 = vmul.f32 %v2107, %v2157
      %v2160 = vld [vmem:[%s744] sm:$0xf]
      %v2161 = vld [vmem:[%s744 + $0x4] sm:$0xf]
      %v2162 = vld [vmem:[%s744 + $0x8] sm:$0xf]
      %v2163 = vld [vmem:[%s744 + $0xc] sm:$0xf]
      %v2164 = vld [vmem:[%s744 + $0x10] sm:$0xf]
      %v2165 = vld [vmem:[%s744 + $0x14] sm:$0xf]
      %v2166 = vld [vmem:[%s744 + $0x18] sm:$0xf]
      %v2167 = vld [vmem:[%s744 + $0x1c] sm:$0xf]
      %v2168 = vld [vmem:[%s744 + $0x20] sm:$0xf]
      %v2169 = vld [vmem:[%s744 + $0x24] sm:$0xf]
      %v2170 = vld [vmem:[%s744 + $0x28] sm:$0xf]
      %v2171 = vld [vmem:[%s744 + $0x2c] sm:$0xf]
      %v2172 = vld [vmem:[%s744 + $0x30] sm:$0xf]
      %v2173 = vld [vmem:[%s744 + $0x34] sm:$0xf]
      %v2174 = vld [vmem:[%s744 + $0x38] sm:$0xf]
      %v2175 = vld [vmem:[%s744 + $0x3c] sm:$0xf]
      %v2176 = vpack.c.bf16 %v2159, %v2158
      %v2177 = vld [vmem:[%s747] sm:$0x1]
      %v2179 = vlaneseq
      %v2180 = vshrl.u32 %v2179, 7
      %v2181 = vsub.s32 0, %v2180
      %v2182 = vrot.slane %v2177, %v2181
      %v2200 = vunpack.c.l.b16 %v2160
      %v2201 = vunpack.c.l.b16 %v2161
      %v2202 = vunpack.c.l.b16 %v2162
      %v2203 = vunpack.c.l.b16 %v2163
      %v2204 = vunpack.c.l.b16 %v2164
      %v2205 = vunpack.c.l.b16 %v2165
      %v2206 = vunpack.c.l.b16 %v2166
      %v2207 = vunpack.c.l.b16 %v2167
      %v2208 = vunpack.c.l.b16 %v2168
      %v2209 = vunpack.c.l.b16 %v2169
      %v2210 = vunpack.c.l.b16 %v2170
      %v2211 = vunpack.c.l.b16 %v2171
      %v2212 = vunpack.c.l.b16 %v2172
      %v2213 = vunpack.c.l.b16 %v2173
      %v2214 = vunpack.c.l.b16 %v2174
      %v2215 = vunpack.c.l.b16 %v2175
      %v2216 = vpack.c.b16 %v2201, %v2200
      %v2217 = vpack.c.b16 %v2203, %v2202
      %v2218 = vpack.c.b16 %v2205, %v2204
      %v2219 = vpack.c.b16 %v2207, %v2206
      %v2220 = vpack.c.b16 %v2209, %v2208
      %v2221 = vpack.c.b16 %v2211, %v2210
      %v2222 = vpack.c.b16 %v2213, %v2212
      %v2223 = vpack.c.b16 %v2215, %v2214
      %2232 = vmatprep.subr.bf16.mxu0 0
      %2233 = vmatpush1.bf16.msra.mxu0 %v2216
      %2234 = vmatprep.subr.bf16.mxu0 0
      %2235 = vmatpush1.bf16.msra.mxu0 %v2217
      %2236 = vmatprep.subr.bf16.mxu0 0
      %2237 = vmatpush1.bf16.msra.mxu0 %v2218
      %2238 = vmatprep.subr.bf16.mxu0 0
      %2239 = vmatpush1.bf16.msra.mxu0 %v2219
      %2240 = vmatprep.subr.bf16.mxu0 0
      %2241 = vmatpush1.bf16.msra.mxu0 %v2220
      %2242 = vmatprep.subr.bf16.mxu0 0
      %2243 = vmatpush1.bf16.msra.mxu0 %v2221
      %2244 = vmatprep.subr.bf16.mxu0 0
      %2245 = vmatpush1.bf16.msra.mxu0 %v2222
      %2246 = vmatprep.subr.bf16.mxu0 0
      %2247 = vmatpush1.bf16.msra.mxu0 %v2223
      %2248 = vmatprep.subr.bf16.mxu0 0
      %2249 = vmatpush1.bf16.msra.mxu0 0
      %2250 = vmatprep.subr.bf16.mxu0 0
      %2251 = vmatpush1.bf16.msra.mxu0 0
      %2252 = vmatprep.subr.bf16.mxu0 0
      %2253 = vmatpush1.bf16.msra.mxu0 0
      %2254 = vmatprep.subr.bf16.mxu0 0
      %2255 = vmatpush1.bf16.msra.mxu0 0
      %2256 = vmatprep.subr.bf16.mxu0 0
      %2257 = vmatpush1.bf16.msra.mxu0 0
      %2258 = vmatprep.subr.bf16.mxu0 0
      %2259 = vmatpush1.bf16.msra.mxu0 0
      %2260 = vmatprep.subr.bf16.mxu0 0
      %2261 = vmatpush1.bf16.msra.mxu0 0
      %2262 = vmatprep.subr.bf16.mxu0 0
      %2263 = vmatpush1.bf16.msra.mxu0 0
      %2264 = vmatprep.mubr.bf16.mxu0 0
      %2265 = vmatmul.mubr.bf16.gmra.mrb[0].mxu0 %v2176
      %v2266 = vpop.f32.mrb[0].mxu0
      %v2267 = vadd.f32 %v2182, %v2266
      %v2268 = vpop.f32.mrb[0].mxu0
      %v2269 = vpop.f32.mrb[0].mxu0
      %v2270 = vadd.f32 %v2182, %v2269
      %v2271 = vpop.f32.mrb[0].mxu0
      %2272 = vdwg.mxu0
      %v2273 = vadd.f32 %v2036, %v2267
      %v2274 = vadd.f32 %v2037, %v2270
      %v2275 = vld [vmem:[%s756] sm:$0x1]
      %v2276 = vld [vmem:[%s759] sm:$0x1]
      %v2277 = vsel %vm849, %v2273, 0.0
      %2278 = vadd.xlane.f32.xlu0 %v2277
      %v2279 = vpop.xlane.xlu0 %2278
      %v2280 = vsel %vm849, %v2274, 0.0
      %2281 = vadd.xlane.f32.xlu0 %v2280
      %v2282 = vpop.xlane.xlu0 %2281
      %v2283 = vmul.f32 %v2279, %v2001
      %v2284 = vmul.f32 %v2282, %v2001
      %v2285 = vsub.f32 %v2273, %v2283
      %v2286 = vsub.f32 %v2274, %v2284
      %v2287 = vmul.f32 %v2285, %v2285
      %v2288 = vmul.f32 %v2286, %v2286
      %v2289 = vsel %vm849, %v2287, 0.0
      %2290 = vadd.xlane.f32.xlu0 %v2289
      %v2291 = vpop.xlane.xlu0 %2290
      %v2292 = vsel %vm849, %v2288, 0.0
      %2293 = vadd.xlane.f32.xlu0 %v2292
      %v2294 = vpop.xlane.xlu0 %2293
      %v2295 = vmul.f32 %v2291, %v2001
      %v2296 = vmul.f32 %v2294, %v2001
      %v2297 = vadd.f32 %v2295, 1e-05
      %v2298 = vadd.f32 %v2296, 1e-05
      %v2299 = vrsqrt.pop %v2297
      %v2300 = vrsqrt.pop %v2298
      %v2301 = vmul.f32 %v2285, %v2299
      %v2302 = vmul.f32 %v2286, %v2300
      %v2304 = vlaneseq
      %v2305 = vshrl.u32 %v2304, 7
      %v2306 = vsub.s32 0, %v2305
      %v2307 = vrot.slane %v2275, %v2306
      %v2309 = vmul.f32 %v2301, %v2307
      %v2310 = vmul.f32 %v2302, %v2307
      %v2312 = vlaneseq
      %v2313 = vshrl.u32 %v2312, 7
      %v2314 = vsub.s32 0, %v2313
      %v2315 = vrot.slane %v2276, %v2314
      %v2317 = vadd.f32 %v2309, %v2315
      %v2318 = vadd.f32 %v2310, %v2315
      %2319 = vst.msk [vmem:[#allocation2] sm:$0xff] %vm849, %v2317
      %2320 = vst.msk [vmem:[#allocation2 + $0x8] sm:$0xff] %vm849, %v2318
      %p2321 = scmp.eq.s32.totalorder %s30, 1
      // Predicated region
      $region101: #{mints_pallas_forward.1} parent=95 // pred_check
        %p2322 = pneg %p2321
      $region102: #{mints_pallas_forward.1} parent=95 // pred_check_branch
        %2324 = sbr.rel (%p2322) target = $region104
      $region103: #{mints_pallas_forward.1} parent=95 // pred_region
        %v2325 = vld [vmem:[%s15] sm:$0x1]
        %v2326 = vld [vmem:[%s16] sm:$0x1]
        %v2327 = vsel %vm849, %v2317, 0.0
        %2328 = vadd.xlane.f32.xlu0 %v2327
        %v2329 = vpop.xlane.xlu0 %2328
        %v2330 = vsel %vm849, %v2318, 0.0
        %2331 = vadd.xlane.f32.xlu0 %v2330
        %v2332 = vpop.xlane.xlu0 %2331
        %v2333 = vmul.f32 %v2329, %v2001
        %v2334 = vmul.f32 %v2332, %v2001
        %v2335 = vsub.f32 %v2317, %v2333
        %v2336 = vsub.f32 %v2318, %v2334
        %v2337 = vmul.f32 %v2335, %v2335
        %v2338 = vmul.f32 %v2336, %v2336
        %v2339 = vsel %vm849, %v2337, 0.0
        %2340 = vadd.xlane.f32.xlu0 %v2339
        %v2341 = vpop.xlane.xlu0 %2340
        %v2342 = vsel %vm849, %v2338, 0.0
        %2343 = vadd.xlane.f32.xlu0 %v2342
        %v2344 = vpop.xlane.xlu0 %2343
        %v2345 = vmul.f32 %v2341, %v2001
        %v2346 = vmul.f32 %v2344, %v2001
        %v2347 = vadd.f32 %v2345, 1e-05
        %v2348 = vadd.f32 %v2346, 1e-05
        %v2349 = vrsqrt.pop %v2347
        %v2350 = vrsqrt.pop %v2348
        %v2351 = vmul.f32 %v2335, %v2349
        %v2352 = vmul.f32 %v2336, %v2350
        %v2354 = vlaneseq
        %v2355 = vshrl.u32 %v2354, 7
        %v2356 = vsub.s32 0, %v2355
        %v2357 = vrot.slane %v2325, %v2356
        %v2359 = vmul.f32 %v2351, %v2357
        %v2360 = vmul.f32 %v2352, %v2357
        %v2362 = vlaneseq
        %v2363 = vshrl.u32 %v2362, 7
        %v2364 = vsub.s32 0, %v2363
        %v2365 = vrot.slane %v2326, %v2364
        %v2367 = vadd.f32 %v2359, %v2365
        %v2368 = vadd.f32 %v2360, %v2365
        %v2369 = vld [vmem:[%s17] sm:$0xf]
        %v2370 = vld [vmem:[%s17 + $0x4] sm:$0xf]
        %v2371 = vld [vmem:[%s17 + $0x8] sm:$0xf]
        %v2372 = vld [vmem:[%s17 + $0xc] sm:$0xf]
        %v2373 = vpack.c.bf16 %v2368, %v2367
        %v2374 = vld [vmem:[%s18] sm:$0x1]
        %v2376 = vlaneseq
        %v2377 = vshrl.u32 %v2376, 7
        %v2378 = vsub.s32 0, %v2377
        %v2379 = vrot.slane %v2374, %v2378
        %v2385 = vunpack.c.l.b16 %v2369
        %v2386 = vunpack.c.l.b16 %v2370
        %v2387 = vunpack.c.l.b16 %v2371
        %v2388 = vunpack.c.l.b16 %v2372
        %v2389 = vpack.c.b16 %v2386, %v2385
        %v2390 = vpack.c.b16 %v2388, %v2387
        %v2394 = vsel %vm849, %v2373, 0
        %2396 = vmatprep.subr.bf16.mxu0 0
        %2397 = vmatpush1.bf16.msra.mxu0 %v2389
        %2398 = vmatprep.subr.bf16.mxu0 0
        %2399 = vmatpush1.bf16.msra.mxu0 %v2390
        %2400 = vmatprep.subr.bf16.mxu0 0
        %2401 = vmatpush1.bf16.msra.mxu0 0
        %2402 = vmatprep.subr.bf16.mxu0 0
        %2403 = vmatpush1.bf16.msra.mxu0 0
        %2404 = vmatprep.subr.bf16.mxu0 0
        %2405 = vmatpush1.bf16.msra.mxu0 0
        %2406 = vmatprep.subr.bf16.mxu0 0
        %2407 = vmatpush1.bf16.msra.mxu0 0
        %2408 = vmatprep.subr.bf16.mxu0 0
        %2409 = vmatpush1.bf16.msra.mxu0 0
        %2410 = vmatprep.subr.bf16.mxu0 0
        %2411 = vmatpush1.bf16.msra.mxu0 0
        %2412 = vmatprep.subr.bf16.mxu0 0
        %2413 = vmatpush1.bf16.msra.mxu0 0
        %2414 = vmatprep.subr.bf16.mxu0 0
        %2415 = vmatpush1.bf16.msra.mxu0 0
        %2416 = vmatprep.subr.bf16.mxu0 0
        %2417 = vmatpush1.bf16.msra.mxu0 0
        %2418 = vmatprep.subr.bf16.mxu0 0
        %2419 = vmatpush1.bf16.msra.mxu0 0
        %2420 = vmatprep.subr.bf16.mxu0 0
        %2421 = vmatpush1.bf16.msra.mxu0 0
        %2422 = vmatprep.subr.bf16.mxu0 0
        %2423 = vmatpush1.bf16.msra.mxu0 0
        %2424 = vmatprep.subr.bf16.mxu0 0
        %2425 = vmatpush1.bf16.msra.mxu0 0
        %2426 = vmatprep.subr.bf16.mxu0 0
        %2427 = vmatpush1.bf16.msra.mxu0 0
        %2428 = vmatprep.mubr.bf16.mxu0 0
        %2429 = vmatmul.mubr.bf16.gmra.mrb[0].mxu0 %v2394
        %v2430 = vpop.f32.mrb[0].mxu0
        %v2431 = vadd.f32 %v2379, %v2430
        %v2432 = vpop.f32.mrb[0].mxu0
        %v2433 = vpop.f32.mrb[0].mxu0
        %v2434 = vadd.f32 %v2379, %v2433
        %v2435 = vpop.f32.mrb[0].mxu0
        %2436 = vdwg.mxu0
        %2437 = vst [vmem:[%s19] sm:$0xff] %v2431
        %2438 = vst [vmem:[%s19 + $0x8] sm:$0xff] %v2434
      $region104: #{mints_pallas_forward.1} parent=95 // pred_fallthru
        _
      // Predicated region
      $region105: #{mints_pallas_forward.1} parent=95 // pred_check
        %p2439 = pneg %p502
      $region106: #{mints_pallas_forward.1} parent=95 // pred_check_branch
        %2441 = sbr.rel (%p2439) target = $region108
      $region107: #{mints_pallas_forward.1} parent=95 // pred_region
        _
      $region108: #{mints_pallas_forward.1} parent=95 // pred_fallthru
        _
      // Predicated region
      $region109: #{mints_pallas_forward.1} parent=95 // pred_check
        %p2442 = pneg %p502
      $region110: #{mints_pallas_forward.1} parent=95 // pred_check_branch
        %2444 = sbr.rel (%p2442) target = $region112
      $region111: #{mints_pallas_forward.1} parent=95 // pred_region
        _
      $region112: #{mints_pallas_forward.1} parent=95 // pred_fallthru
        _
    $region96: #{mints_pallas_forward.1} parent=5 // pred_fallthru
      _
    %p2445 = scmp.le.s32.totalorder 2, %s25
    // Predicated region
    $region113: #{mints_pallas_forward.1} parent=5 // pred_check
      %p2446 = pneg %p2445
    $region114: #{mints_pallas_forward.1} parent=5 // pred_check_branch
      %2448 = sbr.rel (%p2446) target = $region116
    $region115: #{mints_pallas_forward.1} parent=5 // pred_region
      %s2449 = ssub.s32 %s25, 2
    $region116: #{mints_pallas_forward.1} parent=5 // pred_fallthru
      _
  $region6: #{mints_pallas_forward.1} parent=0 // loop_footer
    %s29 = sadd.s32 1, %s25
  $region7: #{mints_pallas_forward.1} parent=0 // loop_footer_branch
    %24 = sbr.rel target = $region3
  $region8: #{mints_pallas_forward.1} parent=0 // loop_exit
    _

</llo_original>
